<compile_context>
chip_gen: v7x
topology: tpu7x:2x2x1
jax: 0.10.0
libtpu: 0.0.40
codegen_flags: <defaults>
</compile_context>

<pallas_src>
import jax
import jax.numpy as jnp
from jax.experimental import pallas as pl
from jax.experimental.pallas import tpu as pltpu

# ----------------------------- config -------------------------------------- #
N_VOCAB = 512
N_EMBD = 128
N_TOKEN = 16          # sequence length (77 in the real model)
N_HEAD = 4
N_LAYERS = 2
BATCH = 2
LN_EPS = 1e-5


# --------------------------- Pallas kernel ---------------------------------- #
def _layernorm(x, g, b):
    mu = jnp.mean(x, axis=-1, keepdims=True)
    var = jnp.mean((x - mu) ** 2, axis=-1, keepdims=True)
    return (x - mu) * jax.lax.rsqrt(var + LN_EPS) * g + b


def clip_fused_kernel(x_ref,
                      ln1_g, ln1_b, wqkv, bqkv, wo, bo,
                      ln2_g, ln2_b, w1, b1, w2, b2,
                      lnf_g, lnf_b,
                      o_ref, x_scr, mask_scr):
    """grid=(n_layers,). One step = one CLIPLayer over the whole (B*S, D) slab.

    The fp32 activation lives in x_scr across grid steps; per-layer bf16 weights
    are the only per-step DMA traffic and are (multi-)buffered by Pallas.
    """
    layer = pl.program_id(0)
    n_layers = pl.num_programs(0)
    M, D = x_ref.shape          # M = B * S
    B = BATCH
    S = M // B
    H = N_HEAD
    Hd = D // H

    @pl.when(layer == 0)
    def _():
        x_scr[...] = x_ref[...]
        rows = jax.lax.broadcasted_iota(jnp.int32, (S, S), 0)
        cols = jax.lax.broadcasted_iota(jnp.int32, (S, S), 1)
        mask_scr[...] = jnp.where(cols > rows, -1e30, 0.0).astype(jnp.float32)

    x = x_scr[...]                                            # (M, D) fp32
    # Hoisted out of the head loop (JAX does not CSE broadcast_in_dim).
    mask_b = jnp.broadcast_to(mask_scr[...][None], (B, S, S))

    # ---------------- self-attention branch -------------------------------- #
    h = _layernorm(x, ln1_g[0], ln1_b[0])                     # fp32
    # 1/sqrt(head_dim) is folded into the q columns of wqkv/bqkv at init time.
    qkv = jnp.dot(h.astype(jnp.bfloat16), wqkv[0],
                  preferred_element_type=jnp.float32) + bqkv[0]   # (M, 3D) fp32

    q16 = qkv[:, :D].astype(jnp.bfloat16).reshape(B, S, D)
    k16 = qkv[:, D:2 * D].astype(jnp.bfloat16).reshape(B, S, D)
    v16 = qkv[:, 2 * D:].astype(jnp.bfloat16).reshape(B, S, D)

    ctx_parts = []
    for hh in range(H):                      # static loop over heads only;
        lo = hh * Hd                         # slices are lane-aligned column blocks
        s = jnp.einsum('bqd,bkd->bqk',
                       q16[:, :, lo:lo + Hd], k16[:, :, lo:lo + Hd],
                       preferred_element_type=jnp.float32)    # (B, S, S) fp32
        s = s + mask_b
        s = s - jnp.max(s, axis=-1, keepdims=True)
        p = jnp.exp(s)
        p = p * pl.reciprocal(jnp.sum(p, axis=-1, keepdims=True), approx=True)
        ctx_parts.append(
            jnp.einsum('bqk,bkd->bqd', p.astype(jnp.bfloat16),
                       v16[:, :, lo:lo + Hd],
                       preferred_element_type=jnp.float32))   # (B, S, Hd) fp32
    ctx = jnp.concatenate(ctx_parts, axis=-1).reshape(M, D)

    attn = jnp.dot(ctx.astype(jnp.bfloat16), wo[0],
                   preferred_element_type=jnp.float32) + bo[0]
    x = x + attn                                              # residual 1

    # ---------------- MLP branch (quick-GELU) ------------------------------ #
    h2 = _layernorm(x, ln2_g[0], ln2_b[0])
    ff = jnp.dot(h2.astype(jnp.bfloat16), w1[0],
                 preferred_element_type=jnp.float32) + b1[0]  # (M, 4D) fp32
    ff16 = ff.astype(jnp.bfloat16)
    act = ff16 * jax.nn.sigmoid(1.702 * ff16)                 # quick-GELU in bf16
    ff2 = jnp.dot(act, w2[0],
                  preferred_element_type=jnp.float32) + b2[0]
    x = x + ff2                                               # residual 2

    x_scr[...] = x

    @pl.when(layer == n_layers - 1)
    def _():
        o_ref[...] = _layernorm(x, lnf_g[...], lnf_b[...])


# ------------------------------ wrapper ------------------------------------- #
def _vmem_limit_bytes():
    # ~40 MiB on v7x (64 MiB VMEM), ~96 MiB on v5e/v6e (128 MiB VMEM).
    try:
        cap = int(pltpu.get_tpu_info().vmem_capacity_bytes)
    except Exception:
        cap = 128 * 1024 * 1024
    return int(max(32 * 1024 * 1024,
                   min(cap - 24 * 1024 * 1024, 96 * 1024 * 1024)))


@jax.jit
def clip_forward(tokens, params):
    tokens = tokens.astype(jnp.int32)
    # CLIPEmbedding: token-embedding gather + learned position values (XLA glue).
    x = (params["token_embedding"][tokens] +
         params["position_value"][None, :, :]).astype(jnp.float32)
    B, S, D = x.shape
    L = params["wqkv"].shape[0]
    # TODO(synk): at the real config (S=77), pad S to 80 here so the flattening
    #             below never crosses a sublane tile; slice pad rows off output.
    x2d = x.reshape(B * S, D)

    nbuf = max(2, min(3, L))   # deepen weight prefetch only when L is big enough

    def layer_spec(shape, *, buffered=False):
        nd_rest = len(shape) - 1
        kwargs = {}
        if buffered and nbuf > 2:
            kwargs["pipeline_mode"] = pl.Buffered(nbuf)
        return pl.BlockSpec((1,) + tuple(shape[1:]),
                            lambda l, _n=nd_rest: (l,) + (0,) * _n, **kwargs)

    def full_spec(arr):
        nd = arr.ndim
        return pl.BlockSpec(arr.shape, lambda l, _nd=nd: (0,) * _nd)

    layer_names = ["ln1_g", "ln1_b", "wqkv", "bqkv", "wo", "bo",
                   "ln2_g", "ln2_b", "w1", "b1", "w2", "b2"]
    big_weights = {"wqkv", "wo", "w1", "w2"}
    layer_args = [params[n] for n in layer_names]

    in_specs = ([pl.BlockSpec((B * S, D), lambda l: (0, 0))]
                + [layer_spec(params[n].shape, buffered=(n in big_weights))
                   for n in layer_names]
                + [full_spec(params["ln_g"]), full_spec(params["ln_b"])])

    # Advisory cost estimate (helps XLA schedule around the fused custom call).
    D4 = 4 * D
    flops = L * (2 * B * S * D * (3 * D + D + 2 * D4) + 4 * B * S * S * D)
    transcendentals = L * B * (N_HEAD * S * S + S * D4)
    bytes_accessed = (sum(int(a.size) * a.dtype.itemsize for a in layer_args)
                      + 3 * B * S * D * 4)

    out2d = pl.pallas_call(
        clip_fused_kernel,
        out_shape=jax.ShapeDtypeStruct((B * S, D), jnp.float32),
        grid_spec=pltpu.PrefetchScalarGridSpec(
            num_scalar_prefetch=0,
            grid=(L,),
            in_specs=in_specs,
            out_specs=pl.BlockSpec((B * S, D), lambda l: (0, 0)),
            scratch_shapes=[pltpu.VMEM((B * S, D), jnp.float32),
                            pltpu.VMEM((S, S), jnp.float32)],
        ),
        compiler_params=pltpu.CompilerParams(
            dimension_semantics=("arbitrary",),      # layer axis carries state
            vmem_limit_bytes=_vmem_limit_bytes(),
        ),
        cost_estimate=pl.CostEstimate(flops=flops,
                                      transcendentals=transcendentals,
                                      bytes_accessed=bytes_accessed),
    )(x2d, *layer_args, params["ln_g"], params["ln_b"])
    return out2d.reshape(B, S, D)


# --------------------------- parameter init --------------------------------- #
def init_params(key):
    D, H4, L = N_EMBD, 4 * N_EMBD, N_LAYERS
    keys = iter(jax.random.split(key, 24))

    def nrm(shape, std=0.02):
        return (std * jax.random.normal(next(keys), shape)).astype(jnp.float32)

    # Fold the 1/sqrt(head_dim) attention scale into the q projection
    # (PyTorch MultiheadAttention scales q by 1/sqrt(head_dim)).
    scale = 1.0 / float(D // N_HEAD) ** 0.5
    wq, wk, wv = nrm((L, D, D)), nrm((L, D, D)), nrm((L, D, D))
    bq, bk, bv = nrm((L, 1, D)), nrm((L, 1, D)), nrm((L, 1, D))

    params = {
        "token_embedding": nrm((N_VOCAB, D)),
        "position_value": nrm((N_TOKEN, D)),       # nn.Parameter (zeros in torch init)
        "ln_g": jnp.ones((1, D), jnp.float32),
        "ln_b": jnp.zeros((1, D), jnp.float32),
        # Per-layer params stacked on a leading L axis. Matmul weights are
        # pre-transposed (kernel computes x @ W) and stored in bf16 — HBM weight
        # DMA is the bottleneck; fp32 accumulation preserved inside the kernel.
        "ln1_g": jnp.ones((L, 1, D), jnp.float32),
        "ln1_b": jnp.zeros((L, 1, D), jnp.float32),
        "wqkv": jnp.concatenate([wq * scale, wk, wv], axis=-1).astype(jnp.bfloat16),
        "bqkv": jnp.concatenate([bq * scale, bk, bv], axis=-1),
        "wo":   nrm((L, D, D)).astype(jnp.bfloat16),       # out_proj.weight.T
        "bo":   nrm((L, 1, D)),
        "ln2_g": jnp.ones((L, 1, D), jnp.float32),
        "ln2_b": jnp.zeros((L, 1, D), jnp.float32),
        "w1": nrm((L, D, H4)).astype(jnp.bfloat16),        # linear_1.weight.T
        "b1": nrm((L, 1, H4)),
        "w2": nrm((L, H4, D)).astype(jnp.bfloat16),        # linear_2.weight.T
        "b2": nrm((L, 1, D)),
    }
    return params


# --------------------------------- main ------------------------------------- #
if __name__ == "__main__":
    key = jax.random.PRNGKey(0)
    pkey, tkey = jax.random.split(key)
    params = init_params(pkey)
    tokens = jax.random.randint(tkey, (BATCH, N_TOKEN), 0, N_VOCAB, dtype=jnp.int32)

    out = jax.block_until_ready(clip_forward(tokens, params))

    assert out.shape == (BATCH, N_TOKEN, N_EMBD), out.shape
    assert bool(jnp.all(jnp.isfinite(out)))
    print("KERNEL_OK")
</pallas_src>

<mosaic_0001>
module attributes {stable_mosaic.version = 11 : i64} {
  func.func @clip_fused_kernel(%arg0: i32, %arg1: memref<32x128xf32, #tpu.memory_space<vmem>>, %arg2: memref<1x1x128xf32, #tpu.memory_space<vmem>>, %arg3: memref<1x1x128xf32, #tpu.memory_space<vmem>>, %arg4: memref<1x128x384xbf16, #tpu.memory_space<vmem>>, %arg5: memref<1x1x384xf32, #tpu.memory_space<vmem>>, %arg6: memref<1x128x128xbf16, #tpu.memory_space<vmem>>, %arg7: memref<1x1x128xf32, #tpu.memory_space<vmem>>, %arg8: memref<1x1x128xf32, #tpu.memory_space<vmem>>, %arg9: memref<1x1x128xf32, #tpu.memory_space<vmem>>, %arg10: memref<1x128x512xbf16, #tpu.memory_space<vmem>>, %arg11: memref<1x1x512xf32, #tpu.memory_space<vmem>>, %arg12: memref<1x512x128xbf16, #tpu.memory_space<vmem>>, %arg13: memref<1x1x128xf32, #tpu.memory_space<vmem>>, %arg14: memref<1x128xf32, #tpu.memory_space<vmem>>, %arg15: memref<1x128xf32, #tpu.memory_space<vmem>>, %arg16: memref<32x128xf32, #tpu.memory_space<vmem>>, %arg17: memref<32x128xf32, #tpu.memory_space<vmem>>, %arg18: memref<16x16xf32, #tpu.memory_space<vmem>>) attributes {dimension_semantics = [#tpu.dimension_semantics<arbitrary>], iteration_bounds = array<i64: 2>, scalar_prefetch = 0 : i64, scratch_operands = 2 : i64, tpu.core_type = #tpu.core_type<tc>, window_params = [{pipeline_mode = #tpu.pipeline_mode<synchronous>, transform_indices = @transform_0, window_bounds = array<i64: 32, 128>}, {transform_indices = @transform_1, window_bounds = array<i64: 1, 1, 128>}, {transform_indices = @transform_2, window_bounds = array<i64: 1, 1, 128>}, {transform_indices = @transform_3, window_bounds = array<i64: 1, 128, 384>}, {transform_indices = @transform_4, window_bounds = array<i64: 1, 1, 384>}, {transform_indices = @transform_5, window_bounds = array<i64: 1, 128, 128>}, {transform_indices = @transform_6, window_bounds = array<i64: 1, 1, 128>}, {transform_indices = @transform_7, window_bounds = array<i64: 1, 1, 128>}, {transform_indices = @transform_8, window_bounds = array<i64: 1, 1, 128>}, {transform_indices = @transform_9, window_bounds = array<i64: 1, 128, 512>}, {transform_indices = @transform_10, window_bounds = array<i64: 1, 1, 512>}, {transform_indices = @transform_11, window_bounds = array<i64: 1, 512, 128>}, {transform_indices = @transform_12, window_bounds = array<i64: 1, 1, 128>}, {pipeline_mode = #tpu.pipeline_mode<synchronous>, transform_indices = @transform_13, window_bounds = array<i64: 1, 128>}, {pipeline_mode = #tpu.pipeline_mode<synchronous>, transform_indices = @transform_14, window_bounds = array<i64: 1, 128>}, {pipeline_mode = #tpu.pipeline_mode<synchronous>, transform_indices = @transform_15, window_bounds = array<i64: 32, 128>}]} {
    %c0_i32 = arith.constant 0 : i32
    %0 = arith.cmpi eq, %arg0, %c0_i32 : i32
    %1 = arith.extui %0 : i1 to i32
    %c0_i32_0 = arith.constant 0 : i32
    %2 = arith.cmpi ne, %1, %c0_i32_0 : i32
    scf.if %2 {
      %c0_74 = arith.constant 0 : index
      %c0_75 = arith.constant 0 : index
      %185 = vector.load %arg1[%c0_74, %c0_75] : memref<32x128xf32, #tpu.memory_space<vmem>>, vector<32x128xf32>
      %c0_76 = arith.constant 0 : index
      %c0_77 = arith.constant 0 : index
      %186 = vector.load %arg17[%c0_76, %c0_77] : memref<32x128xf32, #tpu.memory_space<vmem>>, vector<32x128xf32>
      tpu.vector_store %arg17[%c0_76, %c0_77], %185 {strides = array<i32>} : memref<32x128xf32, #tpu.memory_space<vmem>>, vector<32x128xf32>,
      %187 = tpu.iota {dimensions = array<i32: 0>} : vector<16x16xi32>
      %188 = tpu.iota {dimensions = array<i32: 1>} : vector<16x16xi32>
      %189 = arith.cmpi sgt, %188, %187 : vector<16x16xi32>
      %cst_78 = arith.constant -1.000000e+30 : f32
      %cst_79 = arith.constant 0.000000e+00 : f32
      %190 = vector.broadcast %cst_78 : f32 to vector<16x16xf32>
      %191 = vector.broadcast %cst_79 : f32 to vector<16x16xf32>
      %192 = arith.select %189, %190, %191 : vector<16x16xi1>, vector<16x16xf32>
      %c0_80 = arith.constant 0 : index
      %c0_81 = arith.constant 0 : index
      %193 = vector.load %arg18[%c0_80, %c0_81] : memref<16x16xf32, #tpu.memory_space<vmem>>, vector<16x16xf32>
      tpu.vector_store %arg18[%c0_80, %c0_81], %192 {strides = array<i32>} : memref<16x16xf32, #tpu.memory_space<vmem>>, vector<16x16xf32>,
    } else {
    }
    %c0 = arith.constant 0 : index
    %c0_1 = arith.constant 0 : index
    %3 = vector.load %arg17[%c0, %c0_1] : memref<32x128xf32, #tpu.memory_space<vmem>>, vector<32x128xf32>
    %c0_2 = arith.constant 0 : index
    %c0_3 = arith.constant 0 : index
    %4 = vector.load %arg18[%c0_2, %c0_3] : memref<16x16xf32, #tpu.memory_space<vmem>>, vector<16x16xf32>
    %5 = vector.shape_cast %4 : vector<16x16xf32> to vector<1x16x16xf32>
    %6 = vector.shape_cast %5 : vector<1x16x16xf32> to vector<1x16x16xf32>
    %7 = vector.broadcast %6 : vector<1x16x16xf32> to vector<2x16x16xf32>
    %c0_4 = arith.constant 0 : index
    %c0_5 = arith.constant 0 : index
    %c0_6 = arith.constant 0 : index
    %8 = vector.load %arg2[%c0_4, %c0_5, %c0_6] : memref<1x1x128xf32, #tpu.memory_space<vmem>>, vector<1x1x128xf32>
    %9 = vector.shape_cast %8 : vector<1x1x128xf32> to vector<1x128xf32>
    %c0_7 = arith.constant 0 : index
    %c0_8 = arith.constant 0 : index
    %c0_9 = arith.constant 0 : index
    %10 = vector.load %arg3[%c0_7, %c0_8, %c0_9] : memref<1x1x128xf32, #tpu.memory_space<vmem>>, vector<1x1x128xf32>
    %11 = vector.shape_cast %10 : vector<1x1x128xf32> to vector<1x128xf32>
    %cst = arith.constant dense<0.000000e+00> : vector<32xf32>
    %12 = vector.multi_reduction <add>, %3, %cst [1] : vector<32x128xf32> to vector<32xf32>
    %13 = vector.shape_cast %12 : vector<32xf32> to vector<32x1xf32>
    %cst_10 = arith.constant 1.280000e+02 : f32
    %14 = vector.broadcast %cst_10 : f32 to vector<32x1xf32>
    %15 = arith.divf %13, %14 : vector<32x1xf32>
    %16 = vector.broadcast %15 : vector<32x1xf32> to vector<32x128xf32>
    %17 = arith.subf %3, %16 : vector<32x128xf32>
    %18 = arith.mulf %17, %17 : vector<32x128xf32>
    %cst_11 = arith.constant dense<0.000000e+00> : vector<32xf32>
    %19 = vector.multi_reduction <add>, %18, %cst_11 [1] : vector<32x128xf32> to vector<32xf32>
    %20 = vector.shape_cast %19 : vector<32xf32> to vector<32x1xf32>
    %cst_12 = arith.constant 1.280000e+02 : f32
    %21 = vector.broadcast %cst_12 : f32 to vector<32x1xf32>
    %22 = arith.divf %20, %21 : vector<32x1xf32>
    %23 = vector.broadcast %15 : vector<32x1xf32> to vector<32x128xf32>
    %24 = arith.subf %3, %23 : vector<32x128xf32>
    %cst_13 = arith.constant 9.99999974E-6 : f32
    %25 = vector.broadcast %cst_13 : f32 to vector<32x1xf32>
    %26 = arith.addf %22, %25 : vector<32x1xf32>
    %27 = math.rsqrt %26 : vector<32x1xf32>
    %28 = vector.broadcast %27 : vector<32x1xf32> to vector<32x128xf32>
    %29 = arith.mulf %24, %28 : vector<32x128xf32>
    %30 = vector.broadcast %9 : vector<1x128xf32> to vector<32x128xf32>
    %31 = arith.mulf %29, %30 : vector<32x128xf32>
    %32 = vector.broadcast %11 : vector<1x128xf32> to vector<32x128xf32>
    %33 = arith.addf %31, %32 : vector<32x128xf32>
    %34 = arith.truncf %33 : vector<32x128xf32> to vector<32x128xbf16>
    %c0_14 = arith.constant 0 : index
    %c0_15 = arith.constant 0 : index
    %c0_16 = arith.constant 0 : index
    %35 = vector.load %arg4[%c0_14, %c0_15, %c0_16] : memref<1x128x384xbf16, #tpu.memory_space<vmem>>, vector<1x128x384xbf16>
    %36 = vector.shape_cast %35 : vector<1x128x384xbf16> to vector<128x384xbf16>
    %cst_17 = arith.constant dense<0.000000e+00> : vector<32x384xf32>
    %37 = tpu.matmul %34, %36, %cst_17 {dimension_numbers = #tpu.dot_dimension_numbers<[1], [0], [0], [1], [0, 0, 1, 1], [], []>} : vector<32x128xbf16>, vector<128x384xbf16>, vector<32x384xf32> -> vector<32x384xf32>
    %c0_18 = arith.constant 0 : index
    %c0_19 = arith.constant 0 : index
    %c0_20 = arith.constant 0 : index
    %38 = vector.load %arg5[%c0_18, %c0_19, %c0_20] : memref<1x1x384xf32, #tpu.memory_space<vmem>>, vector<1x1x384xf32>
    %39 = vector.shape_cast %38 : vector<1x1x384xf32> to vector<1x384xf32>
    %40 = vector.broadcast %39 : vector<1x384xf32> to vector<32x384xf32>
    %41 = arith.addf %37, %40 : vector<32x384xf32>
    %42 = vector.extract_strided_slice %41 {offsets = [0, 0], sizes = [32, 128], strides = [1, 1]} : vector<32x384xf32> to vector<32x128xf32>
    %43 = arith.truncf %42 : vector<32x128xf32> to vector<32x128xbf16>
    %44 = vector.shape_cast %43 : vector<32x128xbf16> to vector<2x16x128xbf16>
    %45 = vector.extract_strided_slice %41 {offsets = [0, 128], sizes = [32, 128], strides = [1, 1]} : vector<32x384xf32> to vector<32x128xf32>
    %46 = arith.truncf %45 : vector<32x128xf32> to vector<32x128xbf16>
    %47 = vector.shape_cast %46 : vector<32x128xbf16> to vector<2x16x128xbf16>
    %48 = vector.extract_strided_slice %41 {offsets = [0, 256], sizes = [32, 128], strides = [1, 1]} : vector<32x384xf32> to vector<32x128xf32>
    %49 = arith.truncf %48 : vector<32x128xf32> to vector<32x128xbf16>
    %50 = vector.shape_cast %49 : vector<32x128xbf16> to vector<2x16x128xbf16>
    %51 = vector.extract_strided_slice %44 {offsets = [0, 0, 0], sizes = [2, 16, 32], strides = [1, 1, 1]} : vector<2x16x128xbf16> to vector<2x16x32xbf16>
    %52 = vector.extract_strided_slice %47 {offsets = [0, 0, 0], sizes = [2, 16, 32], strides = [1, 1, 1]} : vector<2x16x128xbf16> to vector<2x16x32xbf16>
    "tpu.trace_start"() <{level = 10 : i32, message = "bqd,bkd->bqk"}> : () -> ()
    %cst_21 = arith.constant dense<0.000000e+00> : vector<2x16x16xf32>
    %53 = tpu.matmul %51, %52, %cst_21 {dimension_numbers = #tpu.dot_dimension_numbers<[2], [2], [1], [1], [0, 0, 0, 1, 1, 1], [0], [0]>} : vector<2x16x32xbf16>, vector<2x16x32xbf16>, vector<2x16x16xf32> -> vector<2x16x16xf32>
    "tpu.trace_stop"() : () -> ()
    %54 = arith.addf %53, %7 : vector<2x16x16xf32>
    %cst_22 = arith.constant dense<0xFF800000> : vector<2x16xf32>
    %55 = vector.multi_reduction <maximumf>, %54, %cst_22 [2] : vector<2x16x16xf32> to vector<2x16xf32>
    %56 = vector.shape_cast %55 : vector<2x16xf32> to vector<2x16x1xf32>
    %57 = vector.broadcast %56 : vector<2x16x1xf32> to vector<2x16x16xf32>
    %58 = arith.subf %54, %57 : vector<2x16x16xf32>
    %59 = math.exp %58 : vector<2x16x16xf32>
    %cst_23 = arith.constant dense<0.000000e+00> : vector<2x16xf32>
    %60 = vector.multi_reduction <add>, %59, %cst_23 [2] : vector<2x16x16xf32> to vector<2x16xf32>
    %61 = vector.shape_cast %60 : vector<2x16xf32> to vector<2x16x1xf32>
    %62 = tpu.reciprocal %61 {approx = true} : vector<2x16x1xf32> -> vector<2x16x1xf32>
    %63 = vector.broadcast %62 : vector<2x16x1xf32> to vector<2x16x16xf32>
    %64 = arith.mulf %59, %63 : vector<2x16x16xf32>
    %65 = arith.truncf %64 : vector<2x16x16xf32> to vector<2x16x16xbf16>
    %66 = vector.extract_strided_slice %50 {offsets = [0, 0, 0], sizes = [2, 16, 32], strides = [1, 1, 1]} : vector<2x16x128xbf16> to vector<2x16x32xbf16>
    "tpu.trace_start"() <{level = 10 : i32, message = "bqk,bkd->bqd"}> : () -> ()
    %cst_24 = arith.constant dense<0.000000e+00> : vector<2x16x32xf32>
    %67 = tpu.matmul %65, %66, %cst_24 {dimension_numbers = #tpu.dot_dimension_numbers<[2], [1], [1], [2], [0, 0, 0, 1, 1, 2], [0], [0]>} : vector<2x16x16xbf16>, vector<2x16x32xbf16>, vector<2x16x32xf32> -> vector<2x16x32xf32>
    "tpu.trace_stop"() : () -> ()
    %68 = vector.extract_strided_slice %44 {offsets = [0, 0, 32], sizes = [2, 16, 32], strides = [1, 1, 1]} : vector<2x16x128xbf16> to vector<2x16x32xbf16>
    %69 = vector.extract_strided_slice %47 {offsets = [0, 0, 32], sizes = [2, 16, 32], strides = [1, 1, 1]} : vector<2x16x128xbf16> to vector<2x16x32xbf16>
    "tpu.trace_start"() <{level = 10 : i32, message = "bqd,bkd->bqk"}> : () -> ()
    %cst_25 = arith.constant dense<0.000000e+00> : vector<2x16x16xf32>
    %70 = tpu.matmul %68, %69, %cst_25 {dimension_numbers = #tpu.dot_dimension_numbers<[2], [2], [1], [1], [0, 0, 0, 1, 1, 1], [0], [0]>} : vector<2x16x32xbf16>, vector<2x16x32xbf16>, vector<2x16x16xf32> -> vector<2x16x16xf32>
    "tpu.trace_stop"() : () -> ()
    %71 = arith.addf %70, %7 : vector<2x16x16xf32>
    %cst_26 = arith.constant dense<0xFF800000> : vector<2x16xf32>
    %72 = vector.multi_reduction <maximumf>, %71, %cst_26 [2] : vector<2x16x16xf32> to vector<2x16xf32>
    %73 = vector.shape_cast %72 : vector<2x16xf32> to vector<2x16x1xf32>
    %74 = vector.broadcast %73 : vector<2x16x1xf32> to vector<2x16x16xf32>
    %75 = arith.subf %71, %74 : vector<2x16x16xf32>
    %76 = math.exp %75 : vector<2x16x16xf32>
    %cst_27 = arith.constant dense<0.000000e+00> : vector<2x16xf32>
    %77 = vector.multi_reduction <add>, %76, %cst_27 [2] : vector<2x16x16xf32> to vector<2x16xf32>
    %78 = vector.shape_cast %77 : vector<2x16xf32> to vector<2x16x1xf32>
    %79 = tpu.reciprocal %78 {approx = true} : vector<2x16x1xf32> -> vector<2x16x1xf32>
    %80 = vector.broadcast %79 : vector<2x16x1xf32> to vector<2x16x16xf32>
    %81 = arith.mulf %76, %80 : vector<2x16x16xf32>
    %82 = arith.truncf %81 : vector<2x16x16xf32> to vector<2x16x16xbf16>
    %83 = vector.extract_strided_slice %50 {offsets = [0, 0, 32], sizes = [2, 16, 32], strides = [1, 1, 1]} : vector<2x16x128xbf16> to vector<2x16x32xbf16>
    "tpu.trace_start"() <{level = 10 : i32, message = "bqk,bkd->bqd"}> : () -> ()
    %cst_28 = arith.constant dense<0.000000e+00> : vector<2x16x32xf32>
    %84 = tpu.matmul %82, %83, %cst_28 {dimension_numbers = #tpu.dot_dimension_numbers<[2], [1], [1], [2], [0, 0, 0, 1, 1, 2], [0], [0]>} : vector<2x16x16xbf16>, vector<2x16x32xbf16>, vector<2x16x32xf32> -> vector<2x16x32xf32>
    "tpu.trace_stop"() : () -> ()
    %85 = vector.extract_strided_slice %44 {offsets = [0, 0, 64], sizes = [2, 16, 32], strides = [1, 1, 1]} : vector<2x16x128xbf16> to vector<2x16x32xbf16>
    %86 = vector.extract_strided_slice %47 {offsets = [0, 0, 64], sizes = [2, 16, 32], strides = [1, 1, 1]} : vector<2x16x128xbf16> to vector<2x16x32xbf16>
    "tpu.trace_start"() <{level = 10 : i32, message = "bqd,bkd->bqk"}> : () -> ()
    %cst_29 = arith.constant dense<0.000000e+00> : vector<2x16x16xf32>
    %87 = tpu.matmul %85, %86, %cst_29 {dimension_numbers = #tpu.dot_dimension_numbers<[2], [2], [1], [1], [0, 0, 0, 1, 1, 1], [0], [0]>} : vector<2x16x32xbf16>, vector<2x16x32xbf16>, vector<2x16x16xf32> -> vector<2x16x16xf32>
    "tpu.trace_stop"() : () -> ()
    %88 = arith.addf %87, %7 : vector<2x16x16xf32>
    %cst_30 = arith.constant dense<0xFF800000> : vector<2x16xf32>
    %89 = vector.multi_reduction <maximumf>, %88, %cst_30 [2] : vector<2x16x16xf32> to vector<2x16xf32>
    %90 = vector.shape_cast %89 : vector<2x16xf32> to vector<2x16x1xf32>
    %91 = vector.broadcast %90 : vector<2x16x1xf32> to vector<2x16x16xf32>
    %92 = arith.subf %88, %91 : vector<2x16x16xf32>
    %93 = math.exp %92 : vector<2x16x16xf32>
    %cst_31 = arith.constant dense<0.000000e+00> : vector<2x16xf32>
    %94 = vector.multi_reduction <add>, %93, %cst_31 [2] : vector<2x16x16xf32> to vector<2x16xf32>
    %95 = vector.shape_cast %94 : vector<2x16xf32> to vector<2x16x1xf32>
    %96 = tpu.reciprocal %95 {approx = true} : vector<2x16x1xf32> -> vector<2x16x1xf32>
    %97 = vector.broadcast %96 : vector<2x16x1xf32> to vector<2x16x16xf32>
    %98 = arith.mulf %93, %97 : vector<2x16x16xf32>
    %99 = arith.truncf %98 : vector<2x16x16xf32> to vector<2x16x16xbf16>
    %100 = vector.extract_strided_slice %50 {offsets = [0, 0, 64], sizes = [2, 16, 32], strides = [1, 1, 1]} : vector<2x16x128xbf16> to vector<2x16x32xbf16>
    "tpu.trace_start"() <{level = 10 : i32, message = "bqk,bkd->bqd"}> : () -> ()
    %cst_32 = arith.constant dense<0.000000e+00> : vector<2x16x32xf32>
    %101 = tpu.matmul %99, %100, %cst_32 {dimension_numbers = #tpu.dot_dimension_numbers<[2], [1], [1], [2], [0, 0, 0, 1, 1, 2], [0], [0]>} : vector<2x16x16xbf16>, vector<2x16x32xbf16>, vector<2x16x32xf32> -> vector<2x16x32xf32>
    "tpu.trace_stop"() : () -> ()
    %102 = vector.extract_strided_slice %44 {offsets = [0, 0, 96], sizes = [2, 16, 32], strides = [1, 1, 1]} : vector<2x16x128xbf16> to vector<2x16x32xbf16>
    %103 = vector.extract_strided_slice %47 {offsets = [0, 0, 96], sizes = [2, 16, 32], strides = [1, 1, 1]} : vector<2x16x128xbf16> to vector<2x16x32xbf16>
    "tpu.trace_start"() <{level = 10 : i32, message = "bqd,bkd->bqk"}> : () -> ()
    %cst_33 = arith.constant dense<0.000000e+00> : vector<2x16x16xf32>
    %104 = tpu.matmul %102, %103, %cst_33 {dimension_numbers = #tpu.dot_dimension_numbers<[2], [2], [1], [1], [0, 0, 0, 1, 1, 1], [0], [0]>} : vector<2x16x32xbf16>, vector<2x16x32xbf16>, vector<2x16x16xf32> -> vector<2x16x16xf32>
    "tpu.trace_stop"() : () -> ()
    %105 = arith.addf %104, %7 : vector<2x16x16xf32>
    %cst_34 = arith.constant dense<0xFF800000> : vector<2x16xf32>
    %106 = vector.multi_reduction <maximumf>, %105, %cst_34 [2] : vector<2x16x16xf32> to vector<2x16xf32>
    %107 = vector.shape_cast %106 : vector<2x16xf32> to vector<2x16x1xf32>
    %108 = vector.broadcast %107 : vector<2x16x1xf32> to vector<2x16x16xf32>
    %109 = arith.subf %105, %108 : vector<2x16x16xf32>
    %110 = math.exp %109 : vector<2x16x16xf32>
    %cst_35 = arith.constant dense<0.000000e+00> : vector<2x16xf32>
    %111 = vector.multi_reduction <add>, %110, %cst_35 [2] : vector<2x16x16xf32> to vector<2x16xf32>
    %112 = vector.shape_cast %111 : vector<2x16xf32> to vector<2x16x1xf32>
    %113 = tpu.reciprocal %112 {approx = true} : vector<2x16x1xf32> -> vector<2x16x1xf32>
    %114 = vector.broadcast %113 : vector<2x16x1xf32> to vector<2x16x16xf32>
    %115 = arith.mulf %110, %114 : vector<2x16x16xf32>
    %116 = arith.truncf %115 : vector<2x16x16xf32> to vector<2x16x16xbf16>
    %117 = vector.extract_strided_slice %50 {offsets = [0, 0, 96], sizes = [2, 16, 32], strides = [1, 1, 1]} : vector<2x16x128xbf16> to vector<2x16x32xbf16>
    "tpu.trace_start"() <{level = 10 : i32, message = "bqk,bkd->bqd"}> : () -> ()
    %cst_36 = arith.constant dense<0.000000e+00> : vector<2x16x32xf32>
    %118 = tpu.matmul %116, %117, %cst_36 {dimension_numbers = #tpu.dot_dimension_numbers<[2], [1], [1], [2], [0, 0, 0, 1, 1, 2], [0], [0]>} : vector<2x16x16xbf16>, vector<2x16x32xbf16>, vector<2x16x32xf32> -> vector<2x16x32xf32>
    "tpu.trace_stop"() : () -> ()
    %119 = tpu.concatenate %67, %84, %101, %118 in 2 : vector<2x16x32xf32>, vector<2x16x32xf32>, vector<2x16x32xf32>, vector<2x16x32xf32> -> vector<2x16x128xf32>
    %120 = vector.shape_cast %119 : vector<2x16x128xf32> to vector<32x128xf32>
    %121 = arith.truncf %120 : vector<32x128xf32> to vector<32x128xbf16>
    %c0_37 = arith.constant 0 : index
    %c0_38 = arith.constant 0 : index
    %c0_39 = arith.constant 0 : index
    %122 = vector.load %arg6[%c0_37, %c0_38, %c0_39] : memref<1x128x128xbf16, #tpu.memory_space<vmem>>, vector<1x128x128xbf16>
    %123 = vector.shape_cast %122 : vector<1x128x128xbf16> to vector<128x128xbf16>
    %cst_40 = arith.constant dense<0.000000e+00> : vector<32x128xf32>
    %124 = tpu.matmul %121, %123, %cst_40 {dimension_numbers = #tpu.dot_dimension_numbers<[1], [0], [0], [1], [0, 0, 1, 1], [], []>} : vector<32x128xbf16>, vector<128x128xbf16>, vector<32x128xf32> -> vector<32x128xf32>
    %c0_41 = arith.constant 0 : index
    %c0_42 = arith.constant 0 : index
    %c0_43 = arith.constant 0 : index
    %125 = vector.load %arg7[%c0_41, %c0_42, %c0_43] : memref<1x1x128xf32, #tpu.memory_space<vmem>>, vector<1x1x128xf32>
    %126 = vector.shape_cast %125 : vector<1x1x128xf32> to vector<1x128xf32>
    %127 = vector.broadcast %126 : vector<1x128xf32> to vector<32x128xf32>
    %128 = arith.addf %124, %127 : vector<32x128xf32>
    %129 = arith.addf %3, %128 : vector<32x128xf32>
    %c0_44 = arith.constant 0 : index
    %c0_45 = arith.constant 0 : index
    %c0_46 = arith.constant 0 : index
    %130 = vector.load %arg8[%c0_44, %c0_45, %c0_46] : memref<1x1x128xf32, #tpu.memory_space<vmem>>, vector<1x1x128xf32>
    %131 = vector.shape_cast %130 : vector<1x1x128xf32> to vector<1x128xf32>
    %c0_47 = arith.constant 0 : index
    %c0_48 = arith.constant 0 : index
    %c0_49 = arith.constant 0 : index
    %132 = vector.load %arg9[%c0_47, %c0_48, %c0_49] : memref<1x1x128xf32, #tpu.memory_space<vmem>>, vector<1x1x128xf32>
    %133 = vector.shape_cast %132 : vector<1x1x128xf32> to vector<1x128xf32>
    %cst_50 = arith.constant dense<0.000000e+00> : vector<32xf32>
    %134 = vector.multi_reduction <add>, %129, %cst_50 [1] : vector<32x128xf32> to vector<32xf32>
    %135 = vector.shape_cast %134 : vector<32xf32> to vector<32x1xf32>
    %cst_51 = arith.constant 1.280000e+02 : f32
    %136 = vector.broadcast %cst_51 : f32 to vector<32x1xf32>
    %137 = arith.divf %135, %136 : vector<32x1xf32>
    %138 = vector.broadcast %137 : vector<32x1xf32> to vector<32x128xf32>
    %139 = arith.subf %129, %138 : vector<32x128xf32>
    %140 = arith.mulf %139, %139 : vector<32x128xf32>
    %cst_52 = arith.constant dense<0.000000e+00> : vector<32xf32>
    %141 = vector.multi_reduction <add>, %140, %cst_52 [1] : vector<32x128xf32> to vector<32xf32>
    %142 = vector.shape_cast %141 : vector<32xf32> to vector<32x1xf32>
    %cst_53 = arith.constant 1.280000e+02 : f32
    %143 = vector.broadcast %cst_53 : f32 to vector<32x1xf32>
    %144 = arith.divf %142, %143 : vector<32x1xf32>
    %145 = vector.broadcast %137 : vector<32x1xf32> to vector<32x128xf32>
    %146 = arith.subf %129, %145 : vector<32x128xf32>
    %cst_54 = arith.constant 9.99999974E-6 : f32
    %147 = vector.broadcast %cst_54 : f32 to vector<32x1xf32>
    %148 = arith.addf %144, %147 : vector<32x1xf32>
    %149 = math.rsqrt %148 : vector<32x1xf32>
    %150 = vector.broadcast %149 : vector<32x1xf32> to vector<32x128xf32>
    %151 = arith.mulf %146, %150 : vector<32x128xf32>
    %152 = vector.broadcast %131 : vector<1x128xf32> to vector<32x128xf32>
    %153 = arith.mulf %151, %152 : vector<32x128xf32>
    %154 = vector.broadcast %133 : vector<1x128xf32> to vector<32x128xf32>
    %155 = arith.addf %153, %154 : vector<32x128xf32>
    %156 = arith.truncf %155 : vector<32x128xf32> to vector<32x128xbf16>
    %c0_55 = arith.constant 0 : index
    %c0_56 = arith.constant 0 : index
    %c0_57 = arith.constant 0 : index
    %157 = vector.load %arg10[%c0_55, %c0_56, %c0_57] : memref<1x128x512xbf16, #tpu.memory_space<vmem>>, vector<1x128x512xbf16>
    %158 = vector.shape_cast %157 : vector<1x128x512xbf16> to vector<128x512xbf16>
    %cst_58 = arith.constant dense<0.000000e+00> : vector<32x512xf32>
    %159 = tpu.matmul %156, %158, %cst_58 {dimension_numbers = #tpu.dot_dimension_numbers<[1], [0], [0], [1], [0, 0, 1, 1], [], []>} : vector<32x128xbf16>, vector<128x512xbf16>, vector<32x512xf32> -> vector<32x512xf32>
    %c0_59 = arith.constant 0 : index
    %c0_60 = arith.constant 0 : index
    %c0_61 = arith.constant 0 : index
    %160 = vector.load %arg11[%c0_59, %c0_60, %c0_61] : memref<1x1x512xf32, #tpu.memory_space<vmem>>, vector<1x1x512xf32>
    %161 = vector.shape_cast %160 : vector<1x1x512xf32> to vector<1x512xf32>
    %162 = vector.broadcast %161 : vector<1x512xf32> to vector<32x512xf32>
    %163 = arith.addf %159, %162 : vector<32x512xf32>
    %164 = arith.truncf %163 : vector<32x512xf32> to vector<32x512xbf16>
    %cst_62 = arith.constant 1.703130e+00 : bf16
    %165 = vector.broadcast %cst_62 : bf16 to vector<32x512xbf16>
    %166 = arith.mulf %165, %164 : vector<32x512xbf16>
    %167 = arith.negf %166 : vector<32x512xbf16>
    %168 = math.exp %167 : vector<32x512xbf16>
    %cst_63 = arith.constant 1.000000e+00 : bf16
    %169 = vector.broadcast %cst_63 : bf16 to vector<32x512xbf16>
    %170 = arith.addf %169, %168 : vector<32x512xbf16>
    %171 = arith.divf %169, %170 : vector<32x512xbf16>
    %172 = arith.mulf %164, %171 : vector<32x512xbf16>
    %c0_64 = arith.constant 0 : index
    %c0_65 = arith.constant 0 : index
    %c0_66 = arith.constant 0 : index
    %173 = vector.load %arg12[%c0_64, %c0_65, %c0_66] : memref<1x512x128xbf16, #tpu.memory_space<vmem>>, vector<1x512x128xbf16>
    %174 = vector.shape_cast %173 : vector<1x512x128xbf16> to vector<512x128xbf16>
    %cst_67 = arith.constant dense<0.000000e+00> : vector<32x128xf32>
    %175 = tpu.matmul %172, %174, %cst_67 {dimension_numbers = #tpu.dot_dimension_numbers<[1], [0], [0], [1], [0, 0, 1, 1], [], []>} : vector<32x512xbf16>, vector<512x128xbf16>, vector<32x128xf32> -> vector<32x128xf32>
    %c0_68 = arith.constant 0 : index
    %c0_69 = arith.constant 0 : index
    %c0_70 = arith.constant 0 : index
    %176 = vector.load %arg13[%c0_68, %c0_69, %c0_70] : memref<1x1x128xf32, #tpu.memory_space<vmem>>, vector<1x1x128xf32>
    %177 = vector.shape_cast %176 : vector<1x1x128xf32> to vector<1x128xf32>
    %178 = vector.broadcast %177 : vector<1x128xf32> to vector<32x128xf32>
    %179 = arith.addf %175, %178 : vector<32x128xf32>
    %180 = arith.addf %129, %179 : vector<32x128xf32>
    %c0_71 = arith.constant 0 : index
    %c0_72 = arith.constant 0 : index
    %181 = vector.load %arg17[%c0_71, %c0_72] : memref<32x128xf32, #tpu.memory_space<vmem>>, vector<32x128xf32>
    tpu.vector_store %arg17[%c0_71, %c0_72], %180 {strides = array<i32>} : memref<32x128xf32, #tpu.memory_space<vmem>>, vector<32x128xf32>,
    %c1_i32 = arith.constant 1 : i32
    %182 = arith.cmpi eq, %arg0, %c1_i32 : i32
    %183 = arith.extui %182 : i1 to i32
    %c0_i32_73 = arith.constant 0 : i32
    %184 = arith.cmpi ne, %183, %c0_i32_73 : i32
    scf.if %184 {
      %c0_74 = arith.constant 0 : index
      %c0_75 = arith.constant 0 : index
      %185 = vector.load %arg14[%c0_74, %c0_75] : memref<1x128xf32, #tpu.memory_space<vmem>>, vector<1x128xf32>
      %c0_76 = arith.constant 0 : index
      %c0_77 = arith.constant 0 : index
      %186 = vector.load %arg15[%c0_76, %c0_77] : memref<1x128xf32, #tpu.memory_space<vmem>>, vector<1x128xf32>
      %cst_78 = arith.constant dense<0.000000e+00> : vector<32xf32>
      %187 = vector.multi_reduction <add>, %180, %cst_78 [1] : vector<32x128xf32> to vector<32xf32>
      %188 = vector.shape_cast %187 : vector<32xf32> to vector<32x1xf32>
      %cst_79 = arith.constant 1.280000e+02 : f32
      %189 = vector.broadcast %cst_79 : f32 to vector<32x1xf32>
      %190 = arith.divf %188, %189 : vector<32x1xf32>
      %191 = vector.broadcast %190 : vector<32x1xf32> to vector<32x128xf32>
      %192 = arith.subf %180, %191 : vector<32x128xf32>
      %193 = arith.mulf %192, %192 : vector<32x128xf32>
      %cst_80 = arith.constant dense<0.000000e+00> : vector<32xf32>
      %194 = vector.multi_reduction <add>, %193, %cst_80 [1] : vector<32x128xf32> to vector<32xf32>
      %195 = vector.shape_cast %194 : vector<32xf32> to vector<32x1xf32>
      %cst_81 = arith.constant 1.280000e+02 : f32
      %196 = vector.broadcast %cst_81 : f32 to vector<32x1xf32>
      %197 = arith.divf %195, %196 : vector<32x1xf32>
      %198 = vector.broadcast %190 : vector<32x1xf32> to vector<32x128xf32>
      %199 = arith.subf %180, %198 : vector<32x128xf32>
      %cst_82 = arith.constant 9.99999974E-6 : f32
      %200 = vector.broadcast %cst_82 : f32 to vector<32x1xf32>
      %201 = arith.addf %197, %200 : vector<32x1xf32>
      %202 = math.rsqrt %201 : vector<32x1xf32>
      %203 = vector.broadcast %202 : vector<32x1xf32> to vector<32x128xf32>
      %204 = arith.mulf %199, %203 : vector<32x128xf32>
      %205 = vector.broadcast %185 : vector<1x128xf32> to vector<32x128xf32>
      %206 = arith.mulf %204, %205 : vector<32x128xf32>
      %207 = vector.broadcast %186 : vector<1x128xf32> to vector<32x128xf32>
      %208 = arith.addf %206, %207 : vector<32x128xf32>
      %c0_83 = arith.constant 0 : index
      %c0_84 = arith.constant 0 : index
      %209 = vector.load %arg16[%c0_83, %c0_84] : memref<32x128xf32, #tpu.memory_space<vmem>>, vector<32x128xf32>
      tpu.vector_store %arg16[%c0_83, %c0_84], %208 {strides = array<i32>} : memref<32x128xf32, #tpu.memory_space<vmem>>, vector<32x128xf32>,
    } else {
    }
    return
  }
  func.func @transform_0(%arg0: i32) -> (i32, i32) {
    %c0_i32 = arith.constant 0 : i32
    %c0_i32_0 = arith.constant 0 : i32
    %c0_i32_1 = arith.constant 0 : i32
    return %c0_i32, %c0_i32_0 : i32, i32
  }
  func.func @transform_1(%arg0: i32) -> (i32, i32, i32) {
    %c0_i32 = arith.constant 0 : i32
    %c0_i32_0 = arith.constant 0 : i32
    %c0_i32_1 = arith.constant 0 : i32
    return %arg0, %c0_i32, %c0_i32_0 : i32, i32, i32
  }
  func.func @transform_2(%arg0: i32) -> (i32, i32, i32) {
    %c0_i32 = arith.constant 0 : i32
    %c0_i32_0 = arith.constant 0 : i32
    %c0_i32_1 = arith.constant 0 : i32
    return %arg0, %c0_i32, %c0_i32_0 : i32, i32, i32
  }
  func.func @transform_3(%arg0: i32) -> (i32, i32, i32) {
    %c0_i32 = arith.constant 0 : i32
    %c0_i32_0 = arith.constant 0 : i32
    %c0_i32_1 = arith.constant 0 : i32
    return %arg0, %c0_i32, %c0_i32_0 : i32, i32, i32
  }
  func.func @transform_4(%arg0: i32) -> (i32, i32, i32) {
    %c0_i32 = arith.constant 0 : i32
    %c0_i32_0 = arith.constant 0 : i32
    %c0_i32_1 = arith.constant 0 : i32
    return %arg0, %c0_i32, %c0_i32_0 : i32, i32, i32
  }
  func.func @transform_5(%arg0: i32) -> (i32, i32, i32) {
    %c0_i32 = arith.constant 0 : i32
    %c0_i32_0 = arith.constant 0 : i32
    %c0_i32_1 = arith.constant 0 : i32
    return %arg0, %c0_i32, %c0_i32_0 : i32, i32, i32
  }
  func.func @transform_6(%arg0: i32) -> (i32, i32, i32) {
    %c0_i32 = arith.constant 0 : i32
    %c0_i32_0 = arith.constant 0 : i32
    %c0_i32_1 = arith.constant 0 : i32
    return %arg0, %c0_i32, %c0_i32_0 : i32, i32, i32
  }
  func.func @transform_7(%arg0: i32) -> (i32, i32, i32) {
    %c0_i32 = arith.constant 0 : i32
    %c0_i32_0 = arith.constant 0 : i32
    %c0_i32_1 = arith.constant 0 : i32
    return %arg0, %c0_i32, %c0_i32_0 : i32, i32, i32
  }
  func.func @transform_8(%arg0: i32) -> (i32, i32, i32) {
    %c0_i32 = arith.constant 0 : i32
    %c0_i32_0 = arith.constant 0 : i32
    %c0_i32_1 = arith.constant 0 : i32
    return %arg0, %c0_i32, %c0_i32_0 : i32, i32, i32
  }
  func.func @transform_9(%arg0: i32) -> (i32, i32, i32) {
    %c0_i32 = arith.constant 0 : i32
    %c0_i32_0 = arith.constant 0 : i32
    %c0_i32_1 = arith.constant 0 : i32
    return %arg0, %c0_i32, %c0_i32_0 : i32, i32, i32
  }
  func.func @transform_10(%arg0: i32) -> (i32, i32, i32) {
    %c0_i32 = arith.constant 0 : i32
    %c0_i32_0 = arith.constant 0 : i32
    %c0_i32_1 = arith.constant 0 : i32
    return %arg0, %c0_i32, %c0_i32_0 : i32, i32, i32
  }
  func.func @transform_11(%arg0: i32) -> (i32, i32, i32) {
    %c0_i32 = arith.constant 0 : i32
    %c0_i32_0 = arith.constant 0 : i32
    %c0_i32_1 = arith.constant 0 : i32
    return %arg0, %c0_i32, %c0_i32_0 : i32, i32, i32
  }
  func.func @transform_12(%arg0: i32) -> (i32, i32, i32) {
    %c0_i32 = arith.constant 0 : i32
    %c0_i32_0 = arith.constant 0 : i32
    %c0_i32_1 = arith.constant 0 : i32
    return %arg0, %c0_i32, %c0_i32_0 : i32, i32, i32
  }
  func.func @transform_13(%arg0: i32) -> (i32, i32) {
    %c0_i32 = arith.constant 0 : i32
    %c0_i32_0 = arith.constant 0 : i32
    %c0_i32_1 = arith.constant 0 : i32
    return %c0_i32, %c0_i32_0 : i32, i32
  }
  func.func @transform_14(%arg0: i32) -> (i32, i32) {
    %c0_i32 = arith.constant 0 : i32
    %c0_i32_0 = arith.constant 0 : i32
    %c0_i32_1 = arith.constant 0 : i32
    return %c0_i32, %c0_i32_0 : i32, i32
  }
  func.func @transform_15(%arg0: i32) -> (i32, i32) {
    %c0_i32 = arith.constant 0 : i32
    %c0_i32_0 = arith.constant 0 : i32
    %c0_i32_1 = arith.constant 0 : i32
    return %c0_i32, %c0_i32_0 : i32, i32
  }
}

</mosaic_0001>

<llo_original>
// kernel: clip_forward.1
$region0: #{clip_forward.1}
  #allocation0 [shape = 'u32[]', space=smem, size = 0x4, offset = 0x4, fixed_abs, tag = 'smem constant byte address 0x4 - core index']
  #allocation1 [shape = 'u32[144,128]{1,0:T(1,128)}', space=vmem, size = 0x12000, scoped, tag = 'internal scratch']
  #allocation2 [shape = 'f32[32,128]{1,0:T(8,128)}', space=vmem, size = 0x4000, scoped, tag = 'scratch operand']
  #allocation3 [shape = 'f32[16,16]{1,0:T(8,128)}', space=vmem, size = 0x2000, scoped, tag = 'scratch operand']
  %s0 = inlined_call_operand.hbm [shape: f32[32,128], index: 0, kind: input, shape index: {}]
  %s1 = inlined_call_operand.hbm [shape: f32[2,1,128], index: 1, kind: input, shape index: {}]
  %s2 = inlined_call_operand.hbm [shape: f32[2,1,128], index: 2, kind: input, shape index: {}]
  %s3 = inlined_call_operand.hbm [shape: bf16[2,128,384], index: 3, kind: input, shape index: {}]
  %s4 = inlined_call_operand.hbm [shape: f32[2,1,384], index: 4, kind: input, shape index: {}]
  %s5 = inlined_call_operand.hbm [shape: bf16[2,128,128], index: 5, kind: input, shape index: {}]
  %s6 = inlined_call_operand.hbm [shape: f32[2,1,128], index: 6, kind: input, shape index: {}]
  %s7 = inlined_call_operand.hbm [shape: f32[2,1,128], index: 7, kind: input, shape index: {}]
  %s8 = inlined_call_operand.hbm [shape: f32[2,1,128], index: 8, kind: input, shape index: {}]
  %s9 = inlined_call_operand.hbm [shape: bf16[2,128,512], index: 9, kind: input, shape index: {}]
  %s10 = inlined_call_operand.hbm [shape: f32[2,1,512], index: 10, kind: input, shape index: {}]
  %s11 = inlined_call_operand.hbm [shape: bf16[2,512,128], index: 11, kind: input, shape index: {}]
  %s12 = inlined_call_operand.hbm [shape: f32[2,1,128], index: 12, kind: input, shape index: {}]
  %s13 = inlined_call_operand.hbm [shape: f32[1,128], index: 13, kind: input, shape index: {}]
  %s14 = inlined_call_operand.hbm [shape: f32[1,128], index: 14, kind: input, shape index: {}]
  %s15 = inlined_call_operand.hbm [shape: f32[32,128], index: 15, kind: output, shape index: {}]
  %s16 = sld [smem:[#allocation0]]
  $region161: #{clip_forward.1} parent=0
    _
  %s18 = ssub.s32 1, %s16
  %s19 = scalar_select 0, %s18, %s16
  $region1: #{clip_forward.1} parent=0
    #allocation4 [shape = 'u8[16384]{0}', space=vmem, size = 0x4000, scoped, tag = 'input window, operand 0, single buffered']
    #allocation5 [shape = 's32[2]{0}', space=sflag, size = 0x8, scoped, tag = 'scoped memory for clip_forward.1']
    #allocation6 [shape = 's32[2]{0}', space=sflag, size = 0x8, scoped, tag = 'scoped memory for clip_forward.1']
    #allocation7 [shape = 'u8[1024]{0}', space=vmem, size = 0x400, scoped, tag = 'input window, operand 1']
    #allocation8 [shape = 's32[2]{0}', space=sflag, size = 0x8, scoped, tag = 'scoped memory for clip_forward.1']
    #allocation9 [shape = 'u8[1024]{0}', space=vmem, size = 0x400, scoped, tag = 'input window, operand 2']
    #allocation10 [shape = 'u8[196608]{0}', space=vmem, size = 0x30000, scoped, tag = 'input window, operand 3']
    #allocation11 [shape = 's32[2]{0}', space=sflag, size = 0x8, scoped, tag = 'scoped memory for clip_forward.1']
    #allocation12 [shape = 'u8[3072]{0}', space=vmem, size = 0xc00, scoped, tag = 'input window, operand 4']
    #allocation13 [shape = 'u8[65536]{0}', space=vmem, size = 0x10000, scoped, tag = 'input window, operand 5']
    #allocation14 [shape = 's32[2]{0}', space=sflag, size = 0x8, scoped, tag = 'scoped memory for clip_forward.1']
    #allocation15 [shape = 'u8[1024]{0}', space=vmem, size = 0x400, scoped, tag = 'input window, operand 6']
    #allocation16 [shape = 'u8[1024]{0}', space=vmem, size = 0x400, scoped, tag = 'input window, operand 7']
    #allocation17 [shape = 's32[2]{0}', space=sflag, size = 0x8, scoped, tag = 'scoped memory for clip_forward.1']
    #allocation18 [shape = 'u8[1024]{0}', space=vmem, size = 0x400, scoped, tag = 'input window, operand 8']
    #allocation19 [shape = 'u8[262144]{0}', space=vmem, size = 0x40000, scoped, tag = 'input window, operand 9']
    #allocation20 [shape = 's32[2]{0}', space=sflag, size = 0x8, scoped, tag = 'scoped memory for clip_forward.1']
    #allocation21 [shape = 'u8[4096]{0}', space=vmem, size = 0x1000, scoped, tag = 'input window, operand 10']
    #allocation22 [shape = 'u8[262144]{0}', space=vmem, size = 0x40000, scoped, tag = 'input window, operand 11']
    #allocation23 [shape = 's32[2]{0}', space=sflag, size = 0x8, scoped, tag = 'scoped memory for clip_forward.1']
    #allocation24 [shape = 'u8[1024]{0}', space=vmem, size = 0x400, scoped, tag = 'input window, operand 12']
    #allocation25 [shape = 'u8[512]{0}', space=vmem, size = 0x400, scoped, tag = 'input window, operand 13, single buffered']
    #allocation26 [shape = 's32[1]{0}', space=sflag, size = 0x4, scoped, tag = 'scoped memory for clip_forward.1']
    #allocation27 [shape = 'u8[512]{0}', space=vmem, size = 0x400, scoped, tag = 'input window, operand 14, single buffered']
    #allocation28 [shape = 'u8[16384]{0}', space=vmem, size = 0x4000, scoped, tag = 'output window, operand 0, single buffered']
    %20 = vsyncpa [#allocation5], 0
    %21 = vsyncpa [#allocation8], 0
    %s22 = scalar_lea.sflag [#allocation8], 1
    %23 = vsyncpa %s22, 0
    %24 = vsyncpa [#allocation11], 0
    %s25 = scalar_lea.sflag [#allocation11], 1
    %26 = vsyncpa %s25, 0
    %27 = vsyncpa [#allocation14], 0
    %s28 = scalar_lea.sflag [#allocation14], 1
    %29 = vsyncpa %s28, 0
    %30 = vsyncpa [#allocation17], 0
    %s31 = scalar_lea.sflag [#allocation17], 1
    %32 = vsyncpa %s31, 0
    %33 = vsyncpa [#allocation20], 0
    %s34 = scalar_lea.sflag [#allocation20], 1
    %35 = vsyncpa %s34, 0
    %36 = vsyncpa [#allocation23], 0
    %s37 = scalar_lea.sflag [#allocation23], 1
    %38 = vsyncpa %s37, 0
    %39 = vsyncpa [#allocation26], 0
    %40 = vsyncpa [#allocation6], 0
    loop: start=0, step=1, limit=4
    $region2: #{clip_forward.1} parent=1 // loop_pre_header
      _
    $region3: #{clip_forward.1} parent=1 // loop_header
      %s42 = sphi 0, %s46
      %p43 = scmp.ge.s32.totalorder %s42, 4
      %s50 = sphi 0, %s50
      %s52 = sphi 0, %s50
      %s53 = sphi 0, %s52
      %s67 = sphi 0, %s53
      %s73 = sphi 0, %s75
      %s76 = sphi 0, %s73
      %s77 = sphi 0, %s76
      %s93 = sphi 0, %s77
      %s99 = sphi 0, %s101
      %s102 = sphi 0, %s99
      %s103 = sphi 0, %s102
      %s119 = sphi 0, %s103
      %s125 = sphi 0, %s127
      %s128 = sphi 0, %s125
      %s129 = sphi 0, %s128
      %s145 = sphi 0, %s129
      %s151 = sphi 0, %s153
      %s154 = sphi 0, %s151
      %s155 = sphi 0, %s154
      %s171 = sphi 0, %s155
      %s177 = sphi 0, %s179
      %s180 = sphi 0, %s177
      %s181 = sphi 0, %s180
      %s197 = sphi 0, %s181
      %s203 = sphi 0, %s205
      %s206 = sphi 0, %s203
      %s207 = sphi 0, %s206
      %s223 = sphi 0, %s207
      %s229 = sphi 0, %s231
      %s232 = sphi 0, %s229
      %s233 = sphi 0, %s232
      %s249 = sphi 0, %s233
      %s255 = sphi 0, %s257
      %s258 = sphi 0, %s255
      %s259 = sphi 0, %s258
      %s275 = sphi 0, %s259
      %s281 = sphi 0, %s283
      %s284 = sphi 0, %s281
      %s285 = sphi 0, %s284
      %s301 = sphi 0, %s285
      %s307 = sphi 0, %s309
      %s310 = sphi 0, %s307
      %s311 = sphi 0, %s310
      %s327 = sphi 0, %s311
      %s333 = sphi 0, %s335
      %s336 = sphi 0, %s333
      %s337 = sphi 0, %s336
      %s353 = sphi 0, %s337
      %s359 = sphi 0, %s361
      %s362 = sphi 0, %s359
      %s363 = sphi 0, %s362
      %s379 = sphi 0, %s363
      %s383 = sphi 0, %s383
      %s385 = sphi 0, %s383
      %s386 = sphi 0, %s385
      %s400 = sphi 0, %s386
      %s404 = sphi 0, %s404
      %s406 = sphi 0, %s404
      %s407 = sphi 0, %s406
      %s421 = sphi 0, %s407
      %s425 = sphi 0, %s425
      %s427 = sphi 0, %s425
      %s428 = sphi 0, %s427
      %s442 = sphi 0, %s428
    $region4: #{clip_forward.1} parent=1 // loop_header_branch
      %45 = sbr.rel (%p43) target = $region8
    $region5: #{clip_forward.1} parent=1 // loop_body
      %s47 = ssub.s32 %s42, 1
      %s48 = ssub.s32 %s42, 2
      %s49 = sadd.s32 %s42, 1
      %s51 = sadd.s32 %s50, 1
      %p54 = scmp.eq.s32.totalorder %s42, 1
      %p55 = scmp.ne.s32.totalorder %s50, %s52
      %p56 = scmp.eq.s32.totalorder %s42, 0
      %p57 = por %p55, %p56
      %p58 = scmp.ne.s32.totalorder %s50, %s52
      %p59 = scmp.eq.s32.totalorder %s47, 1
      %p60 = por %p58, %p59
      %p61 = scmp.ne.s32.totalorder %s52, %s53
      %p62 = scmp.eq.s32.totalorder %s47, 0
      %p63 = por %p61, %p62
      %p64 = scmp.ne.s32.totalorder %s52, %s53
      %p65 = scmp.eq.s32.totalorder %s48, 1
      %p66 = por %p64, %p65
      %p68 = scmp.ne.s32.totalorder %s53, %s67
      %p69 = scmp.eq.s32.totalorder %s48, 0
      %p70 = por %p68, %p69
      %s71 = ssub.s32 %s42, %s49
      %p72 = scmp.eq.s32.totalorder %s71, 0
      %s74 = sadd.s32 %s73, 1
      %s75 = scalar_select %p72, %s73, %s74
      %p78 = pneg %p72
      %p79 = scmp.eq.s32.totalorder %s42, 1
      %p80 = por %p78, %p79
      %p81 = scmp.ne.s32.totalorder %s73, %s76
      %p82 = scmp.eq.s32.totalorder %s42, 0
      %p83 = por %p81, %p82
      %p84 = scmp.ne.s32.totalorder %s73, %s76
      %p85 = scmp.eq.s32.totalorder %s47, 1
      %p86 = por %p84, %p85
      %p87 = scmp.ne.s32.totalorder %s76, %s77
      %p88 = scmp.eq.s32.totalorder %s47, 0
      %p89 = por %p87, %p88
      %p90 = scmp.ne.s32.totalorder %s76, %s77
      %p91 = scmp.eq.s32.totalorder %s48, 1
      %p92 = por %p90, %p91
      %p94 = scmp.ne.s32.totalorder %s77, %s93
      %p95 = scmp.eq.s32.totalorder %s48, 0
      %p96 = por %p94, %p95
      %s97 = ssub.s32 %s42, %s49
      %p98 = scmp.eq.s32.totalorder %s97, 0
      %s100 = sadd.s32 %s99, 1
      %s101 = scalar_select %p98, %s99, %s100
      %p104 = pneg %p98
      %p105 = scmp.eq.s32.totalorder %s42, 1
      %p106 = por %p104, %p105
      %p107 = scmp.ne.s32.totalorder %s99, %s102
      %p108 = scmp.eq.s32.totalorder %s42, 0
      %p109 = por %p107, %p108
      %p110 = scmp.ne.s32.totalorder %s99, %s102
      %p111 = scmp.eq.s32.totalorder %s47, 1
      %p112 = por %p110, %p111
      %p113 = scmp.ne.s32.totalorder %s102, %s103
      %p114 = scmp.eq.s32.totalorder %s47, 0
      %p115 = por %p113, %p114
      %p116 = scmp.ne.s32.totalorder %s102, %s103
      %p117 = scmp.eq.s32.totalorder %s48, 1
      %p118 = por %p116, %p117
      %p120 = scmp.ne.s32.totalorder %s103, %s119
      %p121 = scmp.eq.s32.totalorder %s48, 0
      %p122 = por %p120, %p121
      %s123 = ssub.s32 %s42, %s49
      %p124 = scmp.eq.s32.totalorder %s123, 0
      %s126 = sadd.s32 %s125, 1
      %s127 = scalar_select %p124, %s125, %s126
      %p130 = pneg %p124
      %p131 = scmp.eq.s32.totalorder %s42, 1
      %p132 = por %p130, %p131
      %p133 = scmp.ne.s32.totalorder %s125, %s128
      %p134 = scmp.eq.s32.totalorder %s42, 0
      %p135 = por %p133, %p134
      %p136 = scmp.ne.s32.totalorder %s125, %s128
      %p137 = scmp.eq.s32.totalorder %s47, 1
      %p138 = por %p136, %p137
      %p139 = scmp.ne.s32.totalorder %s128, %s129
      %p140 = scmp.eq.s32.totalorder %s47, 0
      %p141 = por %p139, %p140
      %p142 = scmp.ne.s32.totalorder %s128, %s129
      %p143 = scmp.eq.s32.totalorder %s48, 1
      %p144 = por %p142, %p143
      %p146 = scmp.ne.s32.totalorder %s129, %s145
      %p147 = scmp.eq.s32.totalorder %s48, 0
      %p148 = por %p146, %p147
      %s149 = ssub.s32 %s42, %s49
      %p150 = scmp.eq.s32.totalorder %s149, 0
      %s152 = sadd.s32 %s151, 1
      %s153 = scalar_select %p150, %s151, %s152
      %p156 = pneg %p150
      %p157 = scmp.eq.s32.totalorder %s42, 1
      %p158 = por %p156, %p157
      %p159 = scmp.ne.s32.totalorder %s151, %s154
      %p160 = scmp.eq.s32.totalorder %s42, 0
      %p161 = por %p159, %p160
      %p162 = scmp.ne.s32.totalorder %s151, %s154
      %p163 = scmp.eq.s32.totalorder %s47, 1
      %p164 = por %p162, %p163
      %p165 = scmp.ne.s32.totalorder %s154, %s155
      %p166 = scmp.eq.s32.totalorder %s47, 0
      %p167 = por %p165, %p166
      %p168 = scmp.ne.s32.totalorder %s154, %s155
      %p169 = scmp.eq.s32.totalorder %s48, 1
      %p170 = por %p168, %p169
      %p172 = scmp.ne.s32.totalorder %s155, %s171
      %p173 = scmp.eq.s32.totalorder %s48, 0
      %p174 = por %p172, %p173
      %s175 = ssub.s32 %s42, %s49
      %p176 = scmp.eq.s32.totalorder %s175, 0
      %s178 = sadd.s32 %s177, 1
      %s179 = scalar_select %p176, %s177, %s178
      %p182 = pneg %p176
      %p183 = scmp.eq.s32.totalorder %s42, 1
      %p184 = por %p182, %p183
      %p185 = scmp.ne.s32.totalorder %s177, %s180
      %p186 = scmp.eq.s32.totalorder %s42, 0
      %p187 = por %p185, %p186
      %p188 = scmp.ne.s32.totalorder %s177, %s180
      %p189 = scmp.eq.s32.totalorder %s47, 1
      %p190 = por %p188, %p189
      %p191 = scmp.ne.s32.totalorder %s180, %s181
      %p192 = scmp.eq.s32.totalorder %s47, 0
      %p193 = por %p191, %p192
      %p194 = scmp.ne.s32.totalorder %s180, %s181
      %p195 = scmp.eq.s32.totalorder %s48, 1
      %p196 = por %p194, %p195
      %p198 = scmp.ne.s32.totalorder %s181, %s197
      %p199 = scmp.eq.s32.totalorder %s48, 0
      %p200 = por %p198, %p199
      %s201 = ssub.s32 %s42, %s49
      %p202 = scmp.eq.s32.totalorder %s201, 0
      %s204 = sadd.s32 %s203, 1
      %s205 = scalar_select %p202, %s203, %s204
      %p208 = pneg %p202
      %p209 = scmp.eq.s32.totalorder %s42, 1
      %p210 = por %p208, %p209
      %p211 = scmp.ne.s32.totalorder %s203, %s206
      %p212 = scmp.eq.s32.totalorder %s42, 0
      %p213 = por %p211, %p212
      %p214 = scmp.ne.s32.totalorder %s203, %s206
      %p215 = scmp.eq.s32.totalorder %s47, 1
      %p216 = por %p214, %p215
      %p217 = scmp.ne.s32.totalorder %s206, %s207
      %p218 = scmp.eq.s32.totalorder %s47, 0
      %p219 = por %p217, %p218
      %p220 = scmp.ne.s32.totalorder %s206, %s207
      %p221 = scmp.eq.s32.totalorder %s48, 1
      %p222 = por %p220, %p221
      %p224 = scmp.ne.s32.totalorder %s207, %s223
      %p225 = scmp.eq.s32.totalorder %s48, 0
      %p226 = por %p224, %p225
      %s227 = ssub.s32 %s42, %s49
      %p228 = scmp.eq.s32.totalorder %s227, 0
      %s230 = sadd.s32 %s229, 1
      %s231 = scalar_select %p228, %s229, %s230
      %p234 = pneg %p228
      %p235 = scmp.eq.s32.totalorder %s42, 1
      %p236 = por %p234, %p235
      %p237 = scmp.ne.s32.totalorder %s229, %s232
      %p238 = scmp.eq.s32.totalorder %s42, 0
      %p239 = por %p237, %p238
      %p240 = scmp.ne.s32.totalorder %s229, %s232
      %p241 = scmp.eq.s32.totalorder %s47, 1
      %p242 = por %p240, %p241
      %p243 = scmp.ne.s32.totalorder %s232, %s233
      %p244 = scmp.eq.s32.totalorder %s47, 0
      %p245 = por %p243, %p244
      %p246 = scmp.ne.s32.totalorder %s232, %s233
      %p247 = scmp.eq.s32.totalorder %s48, 1
      %p248 = por %p246, %p247
      %p250 = scmp.ne.s32.totalorder %s233, %s249
      %p251 = scmp.eq.s32.totalorder %s48, 0
      %p252 = por %p250, %p251
      %s253 = ssub.s32 %s42, %s49
      %p254 = scmp.eq.s32.totalorder %s253, 0
      %s256 = sadd.s32 %s255, 1
      %s257 = scalar_select %p254, %s255, %s256
      %p260 = pneg %p254
      %p261 = scmp.eq.s32.totalorder %s42, 1
      %p262 = por %p260, %p261
      %p263 = scmp.ne.s32.totalorder %s255, %s258
      %p264 = scmp.eq.s32.totalorder %s42, 0
      %p265 = por %p263, %p264
      %p266 = scmp.ne.s32.totalorder %s255, %s258
      %p267 = scmp.eq.s32.totalorder %s47, 1
      %p268 = por %p266, %p267
      %p269 = scmp.ne.s32.totalorder %s258, %s259
      %p270 = scmp.eq.s32.totalorder %s47, 0
      %p271 = por %p269, %p270
      %p272 = scmp.ne.s32.totalorder %s258, %s259
      %p273 = scmp.eq.s32.totalorder %s48, 1
      %p274 = por %p272, %p273
      %p276 = scmp.ne.s32.totalorder %s259, %s275
      %p277 = scmp.eq.s32.totalorder %s48, 0
      %p278 = por %p276, %p277
      %s279 = ssub.s32 %s42, %s49
      %p280 = scmp.eq.s32.totalorder %s279, 0
      %s282 = sadd.s32 %s281, 1
      %s283 = scalar_select %p280, %s281, %s282
      %p286 = pneg %p280
      %p287 = scmp.eq.s32.totalorder %s42, 1
      %p288 = por %p286, %p287
      %p289 = scmp.ne.s32.totalorder %s281, %s284
      %p290 = scmp.eq.s32.totalorder %s42, 0
      %p291 = por %p289, %p290
      %p292 = scmp.ne.s32.totalorder %s281, %s284
      %p293 = scmp.eq.s32.totalorder %s47, 1
      %p294 = por %p292, %p293
      %p295 = scmp.ne.s32.totalorder %s284, %s285
      %p296 = scmp.eq.s32.totalorder %s47, 0
      %p297 = por %p295, %p296
      %p298 = scmp.ne.s32.totalorder %s284, %s285
      %p299 = scmp.eq.s32.totalorder %s48, 1
      %p300 = por %p298, %p299
      %p302 = scmp.ne.s32.totalorder %s285, %s301
      %p303 = scmp.eq.s32.totalorder %s48, 0
      %p304 = por %p302, %p303
      %s305 = ssub.s32 %s42, %s49
      %p306 = scmp.eq.s32.totalorder %s305, 0
      %s308 = sadd.s32 %s307, 1
      %s309 = scalar_select %p306, %s307, %s308
      %p312 = pneg %p306
      %p313 = scmp.eq.s32.totalorder %s42, 1
      %p314 = por %p312, %p313
      %p315 = scmp.ne.s32.totalorder %s307, %s310
      %p316 = scmp.eq.s32.totalorder %s42, 0
      %p317 = por %p315, %p316
      %p318 = scmp.ne.s32.totalorder %s307, %s310
      %p319 = scmp.eq.s32.totalorder %s47, 1
      %p320 = por %p318, %p319
      %p321 = scmp.ne.s32.totalorder %s310, %s311
      %p322 = scmp.eq.s32.totalorder %s47, 0
      %p323 = por %p321, %p322
      %p324 = scmp.ne.s32.totalorder %s310, %s311
      %p325 = scmp.eq.s32.totalorder %s48, 1
      %p326 = por %p324, %p325
      %p328 = scmp.ne.s32.totalorder %s311, %s327
      %p329 = scmp.eq.s32.totalorder %s48, 0
      %p330 = por %p328, %p329
      %s331 = ssub.s32 %s42, %s49
      %p332 = scmp.eq.s32.totalorder %s331, 0
      %s334 = sadd.s32 %s333, 1
      %s335 = scalar_select %p332, %s333, %s334
      %p338 = pneg %p332
      %p339 = scmp.eq.s32.totalorder %s42, 1
      %p340 = por %p338, %p339
      %p341 = scmp.ne.s32.totalorder %s333, %s336
      %p342 = scmp.eq.s32.totalorder %s42, 0
      %p343 = por %p341, %p342
      %p344 = scmp.ne.s32.totalorder %s333, %s336
      %p345 = scmp.eq.s32.totalorder %s47, 1
      %p346 = por %p344, %p345
      %p347 = scmp.ne.s32.totalorder %s336, %s337
      %p348 = scmp.eq.s32.totalorder %s47, 0
      %p349 = por %p347, %p348
      %p350 = scmp.ne.s32.totalorder %s336, %s337
      %p351 = scmp.eq.s32.totalorder %s48, 1
      %p352 = por %p350, %p351
      %p354 = scmp.ne.s32.totalorder %s337, %s353
      %p355 = scmp.eq.s32.totalorder %s48, 0
      %p356 = por %p354, %p355
      %s357 = ssub.s32 %s42, %s49
      %p358 = scmp.eq.s32.totalorder %s357, 0
      %s360 = sadd.s32 %s359, 1
      %s361 = scalar_select %p358, %s359, %s360
      %p364 = pneg %p358
      %p365 = scmp.eq.s32.totalorder %s42, 1
      %p366 = por %p364, %p365
      %p367 = scmp.ne.s32.totalorder %s359, %s362
      %p368 = scmp.eq.s32.totalorder %s42, 0
      %p369 = por %p367, %p368
      %p370 = scmp.ne.s32.totalorder %s359, %s362
      %p371 = scmp.eq.s32.totalorder %s47, 1
      %p372 = por %p370, %p371
      %p373 = scmp.ne.s32.totalorder %s362, %s363
      %p374 = scmp.eq.s32.totalorder %s47, 0
      %p375 = por %p373, %p374
      %p376 = scmp.ne.s32.totalorder %s362, %s363
      %p377 = scmp.eq.s32.totalorder %s48, 1
      %p378 = por %p376, %p377
      %p380 = scmp.ne.s32.totalorder %s363, %s379
      %p381 = scmp.eq.s32.totalorder %s48, 0
      %p382 = por %p380, %p381
      %s384 = sadd.s32 %s383, 1
      %p387 = scmp.eq.s32.totalorder %s42, 1
      %p388 = scmp.ne.s32.totalorder %s383, %s385
      %p389 = scmp.eq.s32.totalorder %s42, 0
      %p390 = por %p388, %p389
      %p391 = scmp.ne.s32.totalorder %s383, %s385
      %p392 = scmp.eq.s32.totalorder %s47, 1
      %p393 = por %p391, %p392
      %p394 = scmp.ne.s32.totalorder %s385, %s386
      %p395 = scmp.eq.s32.totalorder %s47, 0
      %p396 = por %p394, %p395
      %p397 = scmp.ne.s32.totalorder %s385, %s386
      %p398 = scmp.eq.s32.totalorder %s48, 1
      %p399 = por %p397, %p398
      %p401 = scmp.ne.s32.totalorder %s386, %s400
      %p402 = scmp.eq.s32.totalorder %s48, 0
      %p403 = por %p401, %p402
      %s405 = sadd.s32 %s404, 1
      %p408 = scmp.eq.s32.totalorder %s42, 1
      %p409 = scmp.ne.s32.totalorder %s404, %s406
      %p410 = scmp.eq.s32.totalorder %s42, 0
      %p411 = por %p409, %p410
      %p412 = scmp.ne.s32.totalorder %s404, %s406
      %p413 = scmp.eq.s32.totalorder %s47, 1
      %p414 = por %p412, %p413
      %p415 = scmp.ne.s32.totalorder %s406, %s407
      %p416 = scmp.eq.s32.totalorder %s47, 0
      %p417 = por %p415, %p416
      %p418 = scmp.ne.s32.totalorder %s406, %s407
      %p419 = scmp.eq.s32.totalorder %s48, 1
      %p420 = por %p418, %p419
      %p422 = scmp.ne.s32.totalorder %s407, %s421
      %p423 = scmp.eq.s32.totalorder %s48, 0
      %p424 = por %p422, %p423
      %s426 = sadd.s32 %s425, 1
      %p429 = scmp.eq.s32.totalorder %s42, 1
      %p430 = scmp.ne.s32.totalorder %s425, %s427
      %p431 = scmp.eq.s32.totalorder %s42, 0
      %p432 = por %p430, %p431
      %p433 = scmp.ne.s32.totalorder %s425, %s427
      %p434 = scmp.eq.s32.totalorder %s47, 1
      %p435 = por %p433, %p434
      %p436 = scmp.ne.s32.totalorder %s427, %s428
      %p437 = scmp.eq.s32.totalorder %s47, 0
      %p438 = por %p436, %p437
      %p439 = scmp.ne.s32.totalorder %s427, %s428
      %p440 = scmp.eq.s32.totalorder %s48, 1
      %p441 = por %p439, %p440
      %p443 = scmp.ne.s32.totalorder %s428, %s442
      %p444 = scmp.eq.s32.totalorder %s48, 0
      %p445 = por %p443, %p444
      %p446 = scmp.le.s32.totalorder 1, %s42
      %p447 = scmp.lt.s32.totalorder %s42, 3
      %p448 = pnand %p446, %p447
      %p449 = pneg %p448
      // Predicated region
      $region9: #{clip_forward.1} parent=5 // pred_check
        _
      $region10: #{clip_forward.1} parent=5 // pred_check_branch
        %451 = sbr.rel (%p448) target = $region12
      $region11: #{clip_forward.1} parent=5 // pred_region
        %s452 = ssub.s32 %s42, 1
        // Predicated region
        $region13: #{clip_forward.1} parent=11 // pred_check
          %p453 = pneg %p63
        $region14: #{clip_forward.1} parent=11 // pred_check_branch
          %455 = sbr.rel (%p453) target = $region16
        $region15: #{clip_forward.1} parent=11 // pred_region
          %s457 = ssub.s32 512, 512
          %458 = vsyncadd [#allocation5], %s457
          %s459 = sshll.u32 [#allocation4], 4
          %s460 = int_to_ptr.vmem [resolvable:$true] %s459
          %465 = dma.hbm_to_vmem [thread:$0]  %s0, 512, %s460, [#allocation5], 128, 128, 8
        $region16: #{clip_forward.1} parent=11 // pred_fallthru
          _
        // Predicated region
        $region17: #{clip_forward.1} parent=11 // pred_check
          %p466 = pneg %p396
        $region18: #{clip_forward.1} parent=11 // pred_check_branch
          %468 = sbr.rel (%p466) target = $region20
        $region19: #{clip_forward.1} parent=11 // pred_region
          %s470 = ssub.s32 16, 16
          %471 = vsyncadd [#allocation26], %s470
          %s473 = sshll.u32 [#allocation25], 4
          %s474 = int_to_ptr.vmem [resolvable:$true] %s473
          %476 = dma.hbm_to_vmem [thread:$0]  %s13, 16, %s474, [#allocation26]
        $region20: #{clip_forward.1} parent=11 // pred_fallthru
          _
        // Predicated region
        $region21: #{clip_forward.1} parent=11 // pred_check
          %p477 = pneg %p417
        $region22: #{clip_forward.1} parent=11 // pred_check_branch
          %479 = sbr.rel (%p477) target = $region24
        $region23: #{clip_forward.1} parent=11 // pred_region
          %s481 = ssub.s32 16, 16
          %482 = vsyncadd [#allocation26], %s481
          %s484 = sshll.u32 [#allocation27], 4
          %s485 = int_to_ptr.vmem [resolvable:$true] %s484
          %487 = dma.hbm_to_vmem [thread:$0]  %s14, 16, %s485, [#allocation26]
        $region24: #{clip_forward.1} parent=11 // pred_fallthru
          _
      $region12: #{clip_forward.1} parent=5 // pred_fallthru
        _
      %p488 = scmp.lt.s32.totalorder %s42, 2
      // Predicated region
      $region25: #{clip_forward.1} parent=5 // pred_check
        %p489 = pneg %p488
      $region26: #{clip_forward.1} parent=5 // pred_check_branch
        %491 = sbr.rel (%p489) target = $region28
      $region27: #{clip_forward.1} parent=5 // pred_region
        // Predicated region
        $region29: #{clip_forward.1} parent=27 // pred_check
          %p492 = pneg %p83
        $region30: #{clip_forward.1} parent=27 // pred_check_branch
          %494 = sbr.rel (%p492) target = $region32
        $region31: #{clip_forward.1} parent=27 // pred_region
          %s495 = sand.u32 %s42, 1
          %s496 = scalar_lea.sflag [#allocation8], %s495
          %s497 = sand.u32 %s73, 1
          %s498 = scalar_lea.vmem [#allocation7], %s497
          %s500 = ssub.s32 16, 16
          %501 = vsyncadd %s496, %s500
          %s502 = smul.addr %s42, 16
          %s503 = scalar_lea.hbm %s1, %s502
          %s505 = sshll.u32 %s498, 4
          %s506 = int_to_ptr.vmem [resolvable:$true] %s505
          %508 = dma.hbm_to_vmem [thread:$0]  %s503, 16, %s506, %s496
        $region32: #{clip_forward.1} parent=27 // pred_fallthru
          _
        // Predicated region
        $region33: #{clip_forward.1} parent=27 // pred_check
          %p509 = pneg %p109
        $region34: #{clip_forward.1} parent=27 // pred_check_branch
          %511 = sbr.rel (%p509) target = $region36
        $region35: #{clip_forward.1} parent=27 // pred_region
          %s512 = sand.u32 %s42, 1
          %s513 = scalar_lea.sflag [#allocation8], %s512
          %s514 = sand.u32 %s99, 1
          %s515 = scalar_lea.vmem [#allocation9], %s514
          %s517 = ssub.s32 16, 16
          %518 = vsyncadd %s513, %s517
          %s519 = smul.addr %s42, 16
          %s520 = scalar_lea.hbm %s2, %s519
          %s522 = sshll.u32 %s515, 4
          %s523 = int_to_ptr.vmem [resolvable:$true] %s522
          %525 = dma.hbm_to_vmem [thread:$0]  %s520, 16, %s523, %s513
        $region36: #{clip_forward.1} parent=27 // pred_fallthru
          _
        // Predicated region
        $region37: #{clip_forward.1} parent=27 // pred_check
          %p526 = pneg %p135
        $region38: #{clip_forward.1} parent=27 // pred_check_branch
          %528 = sbr.rel (%p526) target = $region40
        $region39: #{clip_forward.1} parent=27 // pred_region
          %s529 = sand.u32 %s42, 1
          %s530 = scalar_lea.sflag [#allocation11], %s529
          %s531 = sand.u32 %s125, 1
          %s532 = smul.addr %s531, 192
          %s533 = scalar_lea.vmem [#allocation10], %s532
          %s535 = ssub.s32 3072, 3072
          %536 = vsyncadd %s530, %s535
          %s537 = smul.addr %s42, 48
          %s538 = smul.addr %s537, 64
          %s539 = scalar_lea.hbm %s3, %s538
          %s540 = sshll.u32 %s533, 4
          %s541 = int_to_ptr.vmem [resolvable:$true] %s540
          %546 = dma.hbm_to_vmem [thread:$0]  %s539, 3072, %s541, %s530, 192, 192, 12
        $region40: #{clip_forward.1} parent=27 // pred_fallthru
          _
        // Predicated region
        $region41: #{clip_forward.1} parent=27 // pred_check
          %p547 = pneg %p161
        $region42: #{clip_forward.1} parent=27 // pred_check_branch
          %549 = sbr.rel (%p547) target = $region44
        $region43: #{clip_forward.1} parent=27 // pred_region
          %s550 = sand.u32 %s42, 1
          %s551 = scalar_lea.sflag [#allocation11], %s550
          %s552 = sand.u32 %s151, 1
          %s553 = smul.addr %s552, 3
          %s554 = scalar_lea.vmem [#allocation12], %s553
          %s556 = ssub.s32 48, 48
          %557 = vsyncadd %s551, %s556
          %s558 = smul.addr %s42, 3
          %s559 = smul.addr %s558, 16
          %s560 = scalar_lea.hbm %s4, %s559
          %s562 = sshll.u32 %s554, 4
          %s563 = int_to_ptr.vmem [resolvable:$true] %s562
          %565 = dma.hbm_to_vmem [thread:$0]  %s560, 48, %s563, %s551
        $region44: #{clip_forward.1} parent=27 // pred_fallthru
          _
        // Predicated region
        $region45: #{clip_forward.1} parent=27 // pred_check
          %p566 = pneg %p187
        $region46: #{clip_forward.1} parent=27 // pred_check_branch
          %568 = sbr.rel (%p566) target = $region48
        $region47: #{clip_forward.1} parent=27 // pred_region
          %s569 = sand.u32 %s42, 1
          %s570 = scalar_lea.sflag [#allocation14], %s569
          %s571 = sand.u32 %s177, 1
          %s572 = smul.addr %s571, 64
          %s573 = scalar_lea.vmem [#allocation13], %s572
          %s575 = ssub.s32 1024, 1024
          %576 = vsyncadd %s570, %s575
          %s577 = smul.addr %s42, 16
          %s578 = smul.addr %s577, 64
          %s579 = scalar_lea.hbm %s5, %s578
          %s580 = sshll.u32 %s573, 4
          %s581 = int_to_ptr.vmem [resolvable:$true] %s580
          %586 = dma.hbm_to_vmem [thread:$0]  %s579, 1024, %s581, %s570, 64, 64, 4
        $region48: #{clip_forward.1} parent=27 // pred_fallthru
          _
        // Predicated region
        $region49: #{clip_forward.1} parent=27 // pred_check
          %p587 = pneg %p213
        $region50: #{clip_forward.1} parent=27 // pred_check_branch
          %589 = sbr.rel (%p587) target = $region52
        $region51: #{clip_forward.1} parent=27 // pred_region
          %s590 = sand.u32 %s42, 1
          %s591 = scalar_lea.sflag [#allocation14], %s590
          %s592 = sand.u32 %s203, 1
          %s593 = scalar_lea.vmem [#allocation15], %s592
          %s595 = ssub.s32 16, 16
          %596 = vsyncadd %s591, %s595
          %s597 = smul.addr %s42, 16
          %s598 = scalar_lea.hbm %s6, %s597
          %s600 = sshll.u32 %s593, 4
          %s601 = int_to_ptr.vmem [resolvable:$true] %s600
          %603 = dma.hbm_to_vmem [thread:$0]  %s598, 16, %s601, %s591
        $region52: #{clip_forward.1} parent=27 // pred_fallthru
          _
        // Predicated region
        $region53: #{clip_forward.1} parent=27 // pred_check
          %p604 = pneg %p239
        $region54: #{clip_forward.1} parent=27 // pred_check_branch
          %606 = sbr.rel (%p604) target = $region56
        $region55: #{clip_forward.1} parent=27 // pred_region
          %s607 = sand.u32 %s42, 1
          %s608 = scalar_lea.sflag [#allocation17], %s607
          %s609 = sand.u32 %s229, 1
          %s610 = scalar_lea.vmem [#allocation16], %s609
          %s612 = ssub.s32 16, 16
          %613 = vsyncadd %s608, %s612
          %s614 = smul.addr %s42, 16
          %s615 = scalar_lea.hbm %s7, %s614
          %s617 = sshll.u32 %s610, 4
          %s618 = int_to_ptr.vmem [resolvable:$true] %s617
          %620 = dma.hbm_to_vmem [thread:$0]  %s615, 16, %s618, %s608
        $region56: #{clip_forward.1} parent=27 // pred_fallthru
          _
        // Predicated region
        $region57: #{clip_forward.1} parent=27 // pred_check
          %p621 = pneg %p265
        $region58: #{clip_forward.1} parent=27 // pred_check_branch
          %623 = sbr.rel (%p621) target = $region60
        $region59: #{clip_forward.1} parent=27 // pred_region
          %s624 = sand.u32 %s42, 1
          %s625 = scalar_lea.sflag [#allocation17], %s624
          %s626 = sand.u32 %s255, 1
          %s627 = scalar_lea.vmem [#allocation18], %s626
          %s629 = ssub.s32 16, 16
          %630 = vsyncadd %s625, %s629
          %s631 = smul.addr %s42, 16
          %s632 = scalar_lea.hbm %s8, %s631
          %s634 = sshll.u32 %s627, 4
          %s635 = int_to_ptr.vmem [resolvable:$true] %s634
          %637 = dma.hbm_to_vmem [thread:$0]  %s632, 16, %s635, %s625
        $region60: #{clip_forward.1} parent=27 // pred_fallthru
          _
        // Predicated region
        $region61: #{clip_forward.1} parent=27 // pred_check
          %p638 = pneg %p291
        $region62: #{clip_forward.1} parent=27 // pred_check_branch
          %640 = sbr.rel (%p638) target = $region64
        $region63: #{clip_forward.1} parent=27 // pred_region
          %s641 = sand.u32 %s42, 1
          %s642 = scalar_lea.sflag [#allocation20], %s641
          %s643 = sand.u32 %s281, 1
          %s644 = smul.addr %s643, 256
          %s645 = scalar_lea.vmem [#allocation19], %s644
          %s647 = ssub.s32 4096, 4096
          %648 = vsyncadd %s642, %s647
          %s649 = smul.addr %s42, 64
          %s650 = smul.addr %s649, 64
          %s651 = scalar_lea.hbm %s9, %s650
          %s652 = sshll.u32 %s645, 4
          %s653 = int_to_ptr.vmem [resolvable:$true] %s652
          %658 = dma.hbm_to_vmem [thread:$0]  %s651, 4096, %s653, %s642, 256, 256, 16
        $region64: #{clip_forward.1} parent=27 // pred_fallthru
          _
        // Predicated region
        $region65: #{clip_forward.1} parent=27 // pred_check
          %p659 = pneg %p317
        $region66: #{clip_forward.1} parent=27 // pred_check_branch
          %661 = sbr.rel (%p659) target = $region68
        $region67: #{clip_forward.1} parent=27 // pred_region
          %s662 = sand.u32 %s42, 1
          %s663 = scalar_lea.sflag [#allocation20], %s662
          %s664 = sand.u32 %s307, 1
          %s665 = smul.addr %s664, 4
          %s666 = scalar_lea.vmem [#allocation21], %s665
          %s668 = ssub.s32 64, 64
          %669 = vsyncadd %s663, %s668
          %s670 = smul.addr %s42, 4
          %s671 = smul.addr %s670, 16
          %s672 = scalar_lea.hbm %s10, %s671
          %s674 = sshll.u32 %s666, 4
          %s675 = int_to_ptr.vmem [resolvable:$true] %s674
          %677 = dma.hbm_to_vmem [thread:$0]  %s672, 64, %s675, %s663
        $region68: #{clip_forward.1} parent=27 // pred_fallthru
          _
        // Predicated region
        $region69: #{clip_forward.1} parent=27 // pred_check
          %p678 = pneg %p343
        $region70: #{clip_forward.1} parent=27 // pred_check_branch
          %680 = sbr.rel (%p678) target = $region72
        $region71: #{clip_forward.1} parent=27 // pred_region
          %s681 = sand.u32 %s42, 1
          %s682 = scalar_lea.sflag [#allocation23], %s681
          %s683 = sand.u32 %s333, 1
          %s684 = smul.addr %s683, 256
          %s685 = scalar_lea.vmem [#allocation22], %s684
          %s687 = ssub.s32 4096, 4096
          %688 = vsyncadd %s682, %s687
          %s689 = smul.addr %s42, 64
          %s690 = smul.addr %s689, 64
          %s691 = scalar_lea.hbm %s11, %s690
          %s692 = sshll.u32 %s685, 4
          %s693 = int_to_ptr.vmem [resolvable:$true] %s692
          %698 = dma.hbm_to_vmem [thread:$0]  %s691, 4096, %s693, %s682, 64, 64, 4
        $region72: #{clip_forward.1} parent=27 // pred_fallthru
          _
        // Predicated region
        $region73: #{clip_forward.1} parent=27 // pred_check
          %p699 = pneg %p369
        $region74: #{clip_forward.1} parent=27 // pred_check_branch
          %701 = sbr.rel (%p699) target = $region76
        $region75: #{clip_forward.1} parent=27 // pred_region
          %s702 = sand.u32 %s42, 1
          %s703 = scalar_lea.sflag [#allocation23], %s702
          %s704 = sand.u32 %s359, 1
          %s705 = scalar_lea.vmem [#allocation24], %s704
          %s707 = ssub.s32 16, 16
          %708 = vsyncadd %s703, %s707
          %s709 = smul.addr %s42, 16
          %s710 = scalar_lea.hbm %s12, %s709
          %s712 = sshll.u32 %s705, 4
          %s713 = int_to_ptr.vmem [resolvable:$true] %s712
          %715 = dma.hbm_to_vmem [thread:$0]  %s710, 16, %s713, %s703
        $region76: #{clip_forward.1} parent=27 // pred_fallthru
          _
      $region28: #{clip_forward.1} parent=5 // pred_fallthru
        _
      %p716 = scmp.le.s32.totalorder 1, %s42
      %p717 = scmp.lt.s32.totalorder %s42, 3
      %p718 = pnand %p716, %p717
      %p719 = pneg %p718
      // Predicated region
      $region77: #{clip_forward.1} parent=5 // pred_check
        _
      $region78: #{clip_forward.1} parent=5 // pred_check_branch
        %721 = sbr.rel (%p718) target = $region80
      $region79: #{clip_forward.1} parent=5 // pred_region
        %s722 = ssub.s32 %s42, 1
        // Predicated region
        $region81: #{clip_forward.1} parent=79 // pred_check
          %p723 = pneg %p63
        $region82: #{clip_forward.1} parent=79 // pred_check_branch
          %725 = sbr.rel (%p723) target = $region84
        $region83: #{clip_forward.1} parent=79 // pred_region
          %726 = dma.done [#allocation5], 512
        $region84: #{clip_forward.1} parent=79 // pred_fallthru
          _
        %s727 = sand.u32 %s47, 1
        %s728 = scalar_lea.sflag [#allocation8], %s727
        %s729 = sand.u32 %s76, 1
        %s730 = scalar_lea.vmem [#allocation7], %s729
        // Predicated region
        $region85: #{clip_forward.1} parent=79 // pred_check
          %p731 = pneg %p89
        $region86: #{clip_forward.1} parent=79 // pred_check_branch
          %733 = sbr.rel (%p731) target = $region88
        $region87: #{clip_forward.1} parent=79 // pred_region
          %734 = dma.done %s728, 16
        $region88: #{clip_forward.1} parent=79 // pred_fallthru
          _
        %s735 = sand.u32 %s47, 1
        %s736 = scalar_lea.sflag [#allocation8], %s735
        %s737 = sand.u32 %s102, 1
        %s738 = scalar_lea.vmem [#allocation9], %s737
        // Predicated region
        $region89: #{clip_forward.1} parent=79 // pred_check
          %p739 = pneg %p115
        $region90: #{clip_forward.1} parent=79 // pred_check_branch
          %741 = sbr.rel (%p739) target = $region92
        $region91: #{clip_forward.1} parent=79 // pred_region
          %742 = dma.done %s736, 16
        $region92: #{clip_forward.1} parent=79 // pred_fallthru
          _
        %s743 = sand.u32 %s47, 1
        %s744 = scalar_lea.sflag [#allocation11], %s743
        %s745 = sand.u32 %s128, 1
        %s746 = smul.addr %s745, 192
        %s747 = scalar_lea.vmem [#allocation10], %s746
        // Predicated region
        $region93: #{clip_forward.1} parent=79 // pred_check
          %p748 = pneg %p141
        $region94: #{clip_forward.1} parent=79 // pred_check_branch
          %750 = sbr.rel (%p748) target = $region96
        $region95: #{clip_forward.1} parent=79 // pred_region
          %751 = dma.done %s744, 3072
        $region96: #{clip_forward.1} parent=79 // pred_fallthru
          _
        %s752 = sand.u32 %s47, 1
        %s753 = scalar_lea.sflag [#allocation11], %s752
        %s754 = sand.u32 %s154, 1
        %s755 = smul.addr %s754, 3
        %s756 = scalar_lea.vmem [#allocation12], %s755
        // Predicated region
        $region97: #{clip_forward.1} parent=79 // pred_check
          %p757 = pneg %p167
        $region98: #{clip_forward.1} parent=79 // pred_check_branch
          %759 = sbr.rel (%p757) target = $region100
        $region99: #{clip_forward.1} parent=79 // pred_region
          %760 = dma.done %s753, 48
        $region100: #{clip_forward.1} parent=79 // pred_fallthru
          _
        %s761 = sand.u32 %s47, 1
        %s762 = scalar_lea.sflag [#allocation14], %s761
        %s763 = sand.u32 %s180, 1
        %s764 = smul.addr %s763, 64
        %s765 = scalar_lea.vmem [#allocation13], %s764
        // Predicated region
        $region101: #{clip_forward.1} parent=79 // pred_check
          %p766 = pneg %p193
        $region102: #{clip_forward.1} parent=79 // pred_check_branch
          %768 = sbr.rel (%p766) target = $region104
        $region103: #{clip_forward.1} parent=79 // pred_region
          %769 = dma.done %s762, 1024
        $region104: #{clip_forward.1} parent=79 // pred_fallthru
          _
        %s770 = sand.u32 %s47, 1
        %s771 = scalar_lea.sflag [#allocation14], %s770
        %s772 = sand.u32 %s206, 1
        %s773 = scalar_lea.vmem [#allocation15], %s772
        // Predicated region
        $region105: #{clip_forward.1} parent=79 // pred_check
          %p774 = pneg %p219
        $region106: #{clip_forward.1} parent=79 // pred_check_branch
          %776 = sbr.rel (%p774) target = $region108
        $region107: #{clip_forward.1} parent=79 // pred_region
          %777 = dma.done %s771, 16
        $region108: #{clip_forward.1} parent=79 // pred_fallthru
          _
        %s778 = sand.u32 %s47, 1
        %s779 = scalar_lea.sflag [#allocation17], %s778
        %s780 = sand.u32 %s232, 1
        %s781 = scalar_lea.vmem [#allocation16], %s780
        // Predicated region
        $region109: #{clip_forward.1} parent=79 // pred_check
          %p782 = pneg %p245
        $region110: #{clip_forward.1} parent=79 // pred_check_branch
          %784 = sbr.rel (%p782) target = $region112
        $region111: #{clip_forward.1} parent=79 // pred_region
          %785 = dma.done %s779, 16
        $region112: #{clip_forward.1} parent=79 // pred_fallthru
          _
        %s786 = sand.u32 %s47, 1
        %s787 = scalar_lea.sflag [#allocation17], %s786
        %s788 = sand.u32 %s258, 1
        %s789 = scalar_lea.vmem [#allocation18], %s788
        // Predicated region
        $region113: #{clip_forward.1} parent=79 // pred_check
          %p790 = pneg %p271
        $region114: #{clip_forward.1} parent=79 // pred_check_branch
          %792 = sbr.rel (%p790) target = $region116
        $region115: #{clip_forward.1} parent=79 // pred_region
          %793 = dma.done %s787, 16
        $region116: #{clip_forward.1} parent=79 // pred_fallthru
          _
        %s794 = sand.u32 %s47, 1
        %s795 = scalar_lea.sflag [#allocation20], %s794
        %s796 = sand.u32 %s284, 1
        %s797 = smul.addr %s796, 256
        %s798 = scalar_lea.vmem [#allocation19], %s797
        // Predicated region
        $region117: #{clip_forward.1} parent=79 // pred_check
          %p799 = pneg %p297
        $region118: #{clip_forward.1} parent=79 // pred_check_branch
          %801 = sbr.rel (%p799) target = $region120
        $region119: #{clip_forward.1} parent=79 // pred_region
          %802 = dma.done %s795, 4096
        $region120: #{clip_forward.1} parent=79 // pred_fallthru
          _
        %s803 = sand.u32 %s47, 1
        %s804 = scalar_lea.sflag [#allocation20], %s803
        %s805 = sand.u32 %s310, 1
        %s806 = smul.addr %s805, 4
        %s807 = scalar_lea.vmem [#allocation21], %s806
        // Predicated region
        $region121: #{clip_forward.1} parent=79 // pred_check
          %p808 = pneg %p323
        $region122: #{clip_forward.1} parent=79 // pred_check_branch
          %810 = sbr.rel (%p808) target = $region124
        $region123: #{clip_forward.1} parent=79 // pred_region
          %811 = dma.done %s804, 64
        $region124: #{clip_forward.1} parent=79 // pred_fallthru
          _
        %s812 = sand.u32 %s47, 1
        %s813 = scalar_lea.sflag [#allocation23], %s812
        %s814 = sand.u32 %s336, 1
        %s815 = smul.addr %s814, 256
        %s816 = scalar_lea.vmem [#allocation22], %s815
        // Predicated region
        $region125: #{clip_forward.1} parent=79 // pred_check
          %p817 = pneg %p349
        $region126: #{clip_forward.1} parent=79 // pred_check_branch
          %819 = sbr.rel (%p817) target = $region128
        $region127: #{clip_forward.1} parent=79 // pred_region
          %820 = dma.done %s813, 4096
        $region128: #{clip_forward.1} parent=79 // pred_fallthru
          _
        %s821 = sand.u32 %s47, 1
        %s822 = scalar_lea.sflag [#allocation23], %s821
        %s823 = sand.u32 %s362, 1
        %s824 = scalar_lea.vmem [#allocation24], %s823
        // Predicated region
        $region129: #{clip_forward.1} parent=79 // pred_check
          %p825 = pneg %p375
        $region130: #{clip_forward.1} parent=79 // pred_check_branch
          %827 = sbr.rel (%p825) target = $region132
        $region131: #{clip_forward.1} parent=79 // pred_region
          %828 = dma.done %s822, 16
        $region132: #{clip_forward.1} parent=79 // pred_fallthru
          _
        // Predicated region
        $region133: #{clip_forward.1} parent=79 // pred_check
          %p829 = pneg %p396
        $region134: #{clip_forward.1} parent=79 // pred_check_branch
          %831 = sbr.rel (%p829) target = $region136
        $region135: #{clip_forward.1} parent=79 // pred_region
          %832 = dma.done [#allocation26], 16
        $region136: #{clip_forward.1} parent=79 // pred_fallthru
          _
        // Predicated region
        $region137: #{clip_forward.1} parent=79 // pred_check
          %p833 = pneg %p417
        $region138: #{clip_forward.1} parent=79 // pred_check_branch
          %835 = sbr.rel (%p833) target = $region140
        $region139: #{clip_forward.1} parent=79 // pred_region
          %836 = dma.done [#allocation26], 16
        $region140: #{clip_forward.1} parent=79 // pred_fallthru
          _
        %p837 = pneg %p63
        %p838 = pneg %p60
        %s839 = sand.u32 %s47, 1
        %s840 = scalar_lea.sflag [#allocation8], %s839
        %s841 = sand.u32 %s76, 1
        %s842 = scalar_lea.vmem [#allocation7], %s841
        %p843 = pneg %p89
        %p844 = pneg %p86
        %s845 = sand.u32 %s47, 1
        %s846 = scalar_lea.sflag [#allocation8], %s845
        %s847 = sand.u32 %s102, 1
        %s848 = scalar_lea.vmem [#allocation9], %s847
        %p849 = pneg %p115
        %p850 = pneg %p112
        %s851 = sand.u32 %s47, 1
        %s852 = scalar_lea.sflag [#allocation11], %s851
        %s853 = sand.u32 %s128, 1
        %s854 = smul.addr %s853, 192
        %s855 = scalar_lea.vmem [#allocation10], %s854
        %p856 = pneg %p141
        %p857 = pneg %p138
        %s858 = sand.u32 %s47, 1
        %s859 = scalar_lea.sflag [#allocation11], %s858
        %s860 = sand.u32 %s154, 1
        %s861 = smul.addr %s860, 3
        %s862 = scalar_lea.vmem [#allocation12], %s861
        %p863 = pneg %p167
        %p864 = pneg %p164
        %s865 = sand.u32 %s47, 1
        %s866 = scalar_lea.sflag [#allocation14], %s865
        %s867 = sand.u32 %s180, 1
        %s868 = smul.addr %s867, 64
        %s869 = scalar_lea.vmem [#allocation13], %s868
        %p870 = pneg %p193
        %p871 = pneg %p190
        %s872 = sand.u32 %s47, 1
        %s873 = scalar_lea.sflag [#allocation14], %s872
        %s874 = sand.u32 %s206, 1
        %s875 = scalar_lea.vmem [#allocation15], %s874
        %p876 = pneg %p219
        %p877 = pneg %p216
        %s878 = sand.u32 %s47, 1
        %s879 = scalar_lea.sflag [#allocation17], %s878
        %s880 = sand.u32 %s232, 1
        %s881 = scalar_lea.vmem [#allocation16], %s880
        %p882 = pneg %p245
        %p883 = pneg %p242
        %s884 = sand.u32 %s47, 1
        %s885 = scalar_lea.sflag [#allocation17], %s884
        %s886 = sand.u32 %s258, 1
        %s887 = scalar_lea.vmem [#allocation18], %s886
        %p888 = pneg %p271
        %p889 = pneg %p268
        %s890 = sand.u32 %s47, 1
        %s891 = scalar_lea.sflag [#allocation20], %s890
        %s892 = sand.u32 %s284, 1
        %s893 = smul.addr %s892, 256
        %s894 = scalar_lea.vmem [#allocation19], %s893
        %p895 = pneg %p297
        %p896 = pneg %p294
        %s897 = sand.u32 %s47, 1
        %s898 = scalar_lea.sflag [#allocation20], %s897
        %s899 = sand.u32 %s310, 1
        %s900 = smul.addr %s899, 4
        %s901 = scalar_lea.vmem [#allocation21], %s900
        %p902 = pneg %p323
        %p903 = pneg %p320
        %s904 = sand.u32 %s47, 1
        %s905 = scalar_lea.sflag [#allocation23], %s904
        %s906 = sand.u32 %s336, 1
        %s907 = smul.addr %s906, 256
        %s908 = scalar_lea.vmem [#allocation22], %s907
        %p909 = pneg %p349
        %p910 = pneg %p346
        %s911 = sand.u32 %s47, 1
        %s912 = scalar_lea.sflag [#allocation23], %s911
        %s913 = sand.u32 %s362, 1
        %s914 = scalar_lea.vmem [#allocation24], %s913
        %p915 = pneg %p375
        %p916 = pneg %p372
        %p917 = pneg %p396
        %p918 = pneg %p393
        %p919 = pneg %p417
        %p920 = pneg %p414
        %p921 = pneg %p438
        %p922 = pneg %p435
        %p926 = scmp.eq.s32.totalorder %s47, 0
        // Predicated region
        $region141: #{clip_forward.1} parent=79 // pred_check
          %p927 = pneg %p926
        $region142: #{clip_forward.1} parent=79 // pred_check_branch
          %929 = sbr.rel (%p927) target = $region144
        $region143: #{clip_forward.1} parent=79 // pred_region
          %v930 = vld [vmem:[#allocation4] sm:$0xff]
          %v931 = vld [vmem:[#allocation4 + $0x8] sm:$0xff]
          %v932 = vld [vmem:[#allocation4 + $0x10] sm:$0xff]
          %v933 = vld [vmem:[#allocation4 + $0x18] sm:$0xff]
          %934 = vst [vmem:[#allocation2] sm:$0xff] %v930
          %935 = vst [vmem:[#allocation2 + $0x8] sm:$0xff] %v931
          %936 = vst [vmem:[#allocation2 + $0x10] sm:$0xff] %v932
          %937 = vst [vmem:[#allocation2 + $0x18] sm:$0xff] %v933
          %v938 = vlaneseq
          %v939 = vshrl.u32 %v938, 7
          %v940 = vadd.s32 %v939, 8
          %v941 = vlaneseq
          %v942 = vand.u32 %v941, 127
          %vm943 = vcmp.gt.s32.totalorder %v942, %v939
          %vm944 = vcmp.gt.s32.totalorder %v942, %v940
          %v945 = vsel %vm943, -1e+30, 0.0
          %v946 = vsel %vm944, -1e+30, 0.0
          %vm947 = vcmask 130048
          %948 = vst.msk [vmem:[#allocation3] sm:$0xff] %vm947, %v945
          %949 = vst.msk [vmem:[#allocation3 + $0x8] sm:$0xff] %vm947, %v946
        $region144: #{clip_forward.1} parent=79 // pred_fallthru
          _
        %v950 = vld [vmem:[#allocation2] sm:$0xff]
        %v951 = vld [vmem:[#allocation2 + $0x8] sm:$0xff]
        %v952 = vld [vmem:[#allocation2 + $0x10] sm:$0xff]
        %v953 = vld [vmem:[#allocation2 + $0x18] sm:$0xff]
        %v954 = vld [vmem:[#allocation3] sm:$0xff]
        %v955 = vld [vmem:[#allocation3 + $0x8] sm:$0xff]
        %v956 = vld [vmem:[%s730] sm:$0x1]
        %v957 = vld [vmem:[%s738] sm:$0x1]
        %958 = vadd.xlane.f32.xlu0 %v950
        %v959 = vpop.xlane.xlu0 %958
        %960 = vadd.xlane.f32.xlu0 %v951
        %v961 = vpop.xlane.xlu0 %960
        %962 = vadd.xlane.f32.xlu0 %v952
        %v963 = vpop.xlane.xlu0 %962
        %964 = vadd.xlane.f32.xlu0 %v953
        %v965 = vpop.xlane.xlu0 %964
        %v966 = vrcp.pop 128.0
        %v967 = vmul.f32 %v959, %v966
        %v968 = vmul.f32 %v961, %v966
        %v969 = vmul.f32 %v963, %v966
        %v970 = vmul.f32 %v965, %v966
        %v971 = vsub.f32 %v950, %v967
        %v972 = vsub.f32 %v951, %v968
        %v973 = vsub.f32 %v952, %v969
        %v974 = vsub.f32 %v953, %v970
        %v975 = vmul.f32 %v971, %v971
        %v976 = vmul.f32 %v972, %v972
        %v977 = vmul.f32 %v973, %v973
        %v978 = vmul.f32 %v974, %v974
        %979 = vadd.xlane.f32.xlu0 %v975
        %v980 = vpop.xlane.xlu0 %979
        %981 = vadd.xlane.f32.xlu0 %v976
        %v982 = vpop.xlane.xlu0 %981
        %983 = vadd.xlane.f32.xlu0 %v977
        %v984 = vpop.xlane.xlu0 %983
        %985 = vadd.xlane.f32.xlu0 %v978
        %v986 = vpop.xlane.xlu0 %985
        %v987 = vmul.f32 %v980, %v966
        %v988 = vmul.f32 %v982, %v966
        %v989 = vmul.f32 %v984, %v966
        %v990 = vmul.f32 %v986, %v966
        %v991 = vadd.f32 %v987, 1e-05
        %v992 = vadd.f32 %v988, 1e-05
        %v993 = vadd.f32 %v989, 1e-05
        %v994 = vadd.f32 %v990, 1e-05
        %v995 = vrsqrt.pop %v991
        %v996 = vrsqrt.pop %v992
        %v997 = vrsqrt.pop %v993
        %v998 = vrsqrt.pop %v994
        %v999 = vmul.f32 %v971, %v995
        %v1000 = vmul.f32 %v972, %v996
        %v1001 = vmul.f32 %v973, %v997
        %v1002 = vmul.f32 %v974, %v998
        %v1004 = vlaneseq
        %v1005 = vshrl.u32 %v1004, 7
        %v1006 = vsub.s32 0, %v1005
        %v1007 = vrot.slane %v956, %v1006
        %v1009 = vmul.f32 %v999, %v1007
        %v1010 = vmul.f32 %v1000, %v1007
        %v1011 = vmul.f32 %v1001, %v1007
        %v1012 = vmul.f32 %v1002, %v1007
        %v1014 = vlaneseq
        %v1015 = vshrl.u32 %v1014, 7
        %v1016 = vsub.s32 0, %v1015
        %v1017 = vrot.slane %v957, %v1016
        %v1019 = vadd.f32 %v1009, %v1017
        %v1020 = vadd.f32 %v1010, %v1017
        %v1021 = vadd.f32 %v1011, %v1017
        %v1022 = vadd.f32 %v1012, %v1017
        %v1023 = vpack.c.bf16 %v1020, %v1019
        %v1024 = vpack.c.bf16 %v1022, %v1021
        %v1025 = vld [vmem:[%s747] sm:$0xff]
        %v1026 = vld [vmem:[%s747 + $0x8] sm:$0xf]
        %v1027 = vld [vmem:[%s747 + $0xc] sm:$0xff]
        %v1028 = vld [vmem:[%s747 + $0x14] sm:$0xf]
        %v1029 = vld [vmem:[%s747 + $0x18] sm:$0xff]
        %v1030 = vld [vmem:[%s747 + $0x20] sm:$0xf]
        %v1031 = vld [vmem:[%s747 + $0x24] sm:$0xff]
        %v1032 = vld [vmem:[%s747 + $0x2c] sm:$0xf]
        %v1033 = vld [vmem:[%s747 + $0x30] sm:$0xff]
        %v1034 = vld [vmem:[%s747 + $0x38] sm:$0xf]
        %v1035 = vld [vmem:[%s747 + $0x3c] sm:$0xff]
        %v1036 = vld [vmem:[%s747 + $0x44] sm:$0xf]
        %v1037 = vld [vmem:[%s747 + $0x48] sm:$0xff]
        %v1038 = vld [vmem:[%s747 + $0x50] sm:$0xf]
        %v1039 = vld [vmem:[%s747 + $0x54] sm:$0xff]
        %v1040 = vld [vmem:[%s747 + $0x5c] sm:$0xf]
        %v1041 = vld [vmem:[%s747 + $0x60] sm:$0xff]
        %v1042 = vld [vmem:[%s747 + $0x68] sm:$0xf]
        %v1043 = vld [vmem:[%s747 + $0x6c] sm:$0xff]
        %v1044 = vld [vmem:[%s747 + $0x74] sm:$0xf]
        %v1045 = vld [vmem:[%s747 + $0x78] sm:$0xff]
        %v1046 = vld [vmem:[%s747 + $0x80] sm:$0xf]
        %v1047 = vld [vmem:[%s747 + $0x84] sm:$0xff]
        %v1048 = vld [vmem:[%s747 + $0x8c] sm:$0xf]
        %v1049 = vld [vmem:[%s747 + $0x90] sm:$0xff]
        %v1050 = vld [vmem:[%s747 + $0x98] sm:$0xf]
        %v1051 = vld [vmem:[%s747 + $0x9c] sm:$0xff]
        %v1052 = vld [vmem:[%s747 + $0xa4] sm:$0xf]
        %v1053 = vld [vmem:[%s747 + $0xa8] sm:$0xff]
        %v1054 = vld [vmem:[%s747 + $0xb0] sm:$0xf]
        %v1055 = vld [vmem:[%s747 + $0xb4] sm:$0xff]
        %v1056 = vld [vmem:[%s747 + $0xbc] sm:$0xf]
        %v1057 = vld [vmem:[%s756] sm:$0x7]
        %v1059 = vlaneseq
        %v1060 = vshrl.u32 %v1059, 7
        %v1061 = vsub.s32 0, %v1060
        %v1062 = vrot.slane %v1057, %v1061
        %v1063 = vlaneseq
        %v1064 = vshrl.u32 %v1063, 7
        %v1065 = vsub.s32 1, %v1064
        %v1066 = vrot.slane %v1057, %v1065
        %v1067 = vlaneseq
        %v1068 = vshrl.u32 %v1067, 7
        %v1069 = vsub.s32 2, %v1068
        %v1070 = vrot.slane %v1057, %v1069
        %v1106 = vunpack.c.l.b16 %v1025
        %v1107 = vunpack.c.h.b16 %v1025
        %v1108 = vunpack.c.l.b16 %v1026
        %v1109 = vunpack.c.l.b16 %v1027
        %v1110 = vunpack.c.h.b16 %v1027
        %v1111 = vunpack.c.l.b16 %v1028
        %v1112 = vunpack.c.l.b16 %v1029
        %v1113 = vunpack.c.h.b16 %v1029
        %v1114 = vunpack.c.l.b16 %v1030
        %v1115 = vunpack.c.l.b16 %v1031
        %v1116 = vunpack.c.h.b16 %v1031
        %v1117 = vunpack.c.l.b16 %v1032
        %v1118 = vunpack.c.l.b16 %v1033
        %v1119 = vunpack.c.h.b16 %v1033
        %v1120 = vunpack.c.l.b16 %v1034
        %v1121 = vunpack.c.l.b16 %v1035
        %v1122 = vunpack.c.h.b16 %v1035
        %v1123 = vunpack.c.l.b16 %v1036
        %v1124 = vunpack.c.l.b16 %v1037
        %v1125 = vunpack.c.h.b16 %v1037
        %v1126 = vunpack.c.l.b16 %v1038
        %v1127 = vunpack.c.l.b16 %v1039
        %v1128 = vunpack.c.h.b16 %v1039
        %v1129 = vunpack.c.l.b16 %v1040
        %v1130 = vunpack.c.l.b16 %v1041
        %v1131 = vunpack.c.h.b16 %v1041
        %v1132 = vunpack.c.l.b16 %v1042
        %v1133 = vunpack.c.l.b16 %v1043
        %v1134 = vunpack.c.h.b16 %v1043
        %v1135 = vunpack.c.l.b16 %v1044
        %v1136 = vunpack.c.l.b16 %v1045
        %v1137 = vunpack.c.h.b16 %v1045
        %v1138 = vunpack.c.l.b16 %v1046
        %v1139 = vunpack.c.l.b16 %v1047
        %v1140 = vunpack.c.h.b16 %v1047
        %v1141 = vunpack.c.l.b16 %v1048
        %v1142 = vunpack.c.l.b16 %v1049
        %v1143 = vunpack.c.h.b16 %v1049
        %v1144 = vunpack.c.l.b16 %v1050
        %v1145 = vunpack.c.l.b16 %v1051
        %v1146 = vunpack.c.h.b16 %v1051
        %v1147 = vunpack.c.l.b16 %v1052
        %v1148 = vunpack.c.l.b16 %v1053
        %v1149 = vunpack.c.h.b16 %v1053
        %v1150 = vunpack.c.l.b16 %v1054
        %v1151 = vunpack.c.l.b16 %v1055
        %v1152 = vunpack.c.h.b16 %v1055
        %v1153 = vunpack.c.l.b16 %v1056
        %v1154 = vpack.c.b16 %v1109, %v1106
        %v1155 = vpack.c.b16 %v1110, %v1107
        %v1156 = vpack.c.b16 %v1111, %v1108
        %v1157 = vpack.c.b16 %v1115, %v1112
        %v1158 = vpack.c.b16 %v1116, %v1113
        %v1159 = vpack.c.b16 %v1117, %v1114
        %v1160 = vpack.c.b16 %v1121, %v1118
        %v1161 = vpack.c.b16 %v1122, %v1119
        %v1162 = vpack.c.b16 %v1123, %v1120
        %v1163 = vpack.c.b16 %v1127, %v1124
        %v1164 = vpack.c.b16 %v1128, %v1125
        %v1165 = vpack.c.b16 %v1129, %v1126
        %v1166 = vpack.c.b16 %v1133, %v1130
        %v1167 = vpack.c.b16 %v1134, %v1131
        %v1168 = vpack.c.b16 %v1135, %v1132
        %v1169 = vpack.c.b16 %v1139, %v1136
        %v1170 = vpack.c.b16 %v1140, %v1137
        %v1171 = vpack.c.b16 %v1141, %v1138
        %v1172 = vpack.c.b16 %v1145, %v1142
        %v1173 = vpack.c.b16 %v1146, %v1143
        %v1174 = vpack.c.b16 %v1147, %v1144
        %v1175 = vpack.c.b16 %v1151, %v1148
        %v1176 = vpack.c.b16 %v1152, %v1149
        %v1177 = vpack.c.b16 %v1153, %v1150
        %1202 = vmatprep.subr.bf16.mxu0 %v1155
        %1203 = vmatpush1.bf16.msra.mxu0 %v1154
        %1204 = vmatprep.subr.bf16.mxu0 %v1158
        %1205 = vmatpush1.bf16.msra.mxu0 %v1157
        %1206 = vmatprep.subr.bf16.mxu0 %v1161
        %1207 = vmatpush1.bf16.msra.mxu0 %v1160
        %1208 = vmatprep.subr.bf16.mxu0 %v1164
        %1209 = vmatpush1.bf16.msra.mxu0 %v1163
        %1210 = vmatprep.subr.bf16.mxu0 %v1167
        %1211 = vmatpush1.bf16.msra.mxu0 %v1166
        %1212 = vmatprep.subr.bf16.mxu0 %v1170
        %1213 = vmatpush1.bf16.msra.mxu0 %v1169
        %1214 = vmatprep.subr.bf16.mxu0 %v1173
        %1215 = vmatpush1.bf16.msra.mxu0 %v1172
        %1216 = vmatprep.subr.bf16.mxu0 %v1176
        %1217 = vmatpush1.bf16.msra.mxu0 %v1175
        %1218 = vmatprep.subr.bf16.mxu0 0
        %1219 = vmatpush1.bf16.msra.mxu0 0
        %1220 = vmatprep.subr.bf16.mxu0 0
        %1221 = vmatpush1.bf16.msra.mxu0 0
        %1222 = vmatprep.subr.bf16.mxu0 0
        %1223 = vmatpush1.bf16.msra.mxu0 0
        %1224 = vmatprep.subr.bf16.mxu0 0
        %1225 = vmatpush1.bf16.msra.mxu0 0
        %1226 = vmatprep.subr.bf16.mxu0 0
        %1227 = vmatpush1.bf16.msra.mxu0 0
        %1228 = vmatprep.subr.bf16.mxu0 0
        %1229 = vmatpush1.bf16.msra.mxu0 0
        %1230 = vmatprep.subr.bf16.mxu0 0
        %1231 = vmatpush1.bf16.msra.mxu0 0
        %1232 = vmatprep.subr.bf16.mxu0 0
        %1233 = vmatpush1.bf16.msra.mxu0 0
        %1234 = vmatprep.mubr.bf16.mxu0 0
        %1235 = vmatmul.mubr.bf16.gmra.mrb[0].mxu0 %v1023
        %v1236 = vpop.f32.mrb[0].mxu0
        %v1237 = vadd.f32 %v1062, %v1236
        %v1238 = vpop.f32.mrb[0].mxu0
        %v1239 = vadd.f32 %v1066, %v1238
        %v1240 = vpop.f32.mrb[0].mxu0
        %v1241 = vadd.f32 %v1062, %v1240
        %v1242 = vpop.f32.mrb[0].mxu0
        %v1243 = vadd.f32 %v1066, %v1242
        %1244 = vmatprep.mubr.bf16.mxu0 0
        %1245 = vmatmul.mubr.bf16.gmra.mrb[0].mxu0 %v1024
        %v1246 = vpop.f32.mrb[0].mxu0
        %v1247 = vadd.f32 %v1062, %v1246
        %v1248 = vpop.f32.mrb[0].mxu0
        %v1249 = vadd.f32 %v1066, %v1248
        %v1250 = vpop.f32.mrb[0].mxu0
        %v1251 = vadd.f32 %v1062, %v1250
        %v1252 = vpop.f32.mrb[0].mxu0
        %v1253 = vadd.f32 %v1066, %v1252
        %1254 = vdwg.mxu0
        %1255 = vmatprep.subr.bf16.mxu0 0
        %1256 = vmatpush1.bf16.msra.mxu0 %v1156
        %1257 = vmatprep.subr.bf16.mxu0 0
        %1258 = vmatpush1.bf16.msra.mxu0 %v1159
        %1259 = vmatprep.subr.bf16.mxu0 0
        %1260 = vmatpush1.bf16.msra.mxu0 %v1162
        %1261 = vmatprep.subr.bf16.mxu0 0
        %1262 = vmatpush1.bf16.msra.mxu0 %v1165
        %1263 = vmatprep.subr.bf16.mxu0 0
        %1264 = vmatpush1.bf16.msra.mxu0 %v1168
        %1265 = vmatprep.subr.bf16.mxu0 0
        %1266 = vmatpush1.bf16.msra.mxu0 %v1171
        %1267 = vmatprep.subr.bf16.mxu0 0
        %1268 = vmatpush1.bf16.msra.mxu0 %v1174
        %1269 = vmatprep.subr.bf16.mxu0 0
        %1270 = vmatpush1.bf16.msra.mxu0 %v1177
        %1271 = vmatprep.subr.bf16.mxu0 0
        %1272 = vmatpush1.bf16.msra.mxu0 0
        %1273 = vmatprep.subr.bf16.mxu0 0
        %1274 = vmatpush1.bf16.msra.mxu0 0
        %1275 = vmatprep.subr.bf16.mxu0 0
        %1276 = vmatpush1.bf16.msra.mxu0 0
        %1277 = vmatprep.subr.bf16.mxu0 0
        %1278 = vmatpush1.bf16.msra.mxu0 0
        %1279 = vmatprep.subr.bf16.mxu0 0
        %1280 = vmatpush1.bf16.msra.mxu0 0
        %1281 = vmatprep.subr.bf16.mxu0 0
        %1282 = vmatpush1.bf16.msra.mxu0 0
        %1283 = vmatprep.subr.bf16.mxu0 0
        %1284 = vmatpush1.bf16.msra.mxu0 0
        %1285 = vmatprep.subr.bf16.mxu0 0
        %1286 = vmatpush1.bf16.msra.mxu0 0
        %1287 = vmatprep.mubr.bf16.mxu0 0
        %1288 = vmatmul.mubr.bf16.gmra.mrb[0].mxu0 %v1023
        %v1289 = vpop.f32.mrb[0].mxu0
        %v1290 = vadd.f32 %v1070, %v1289
        %v1291 = vpop.f32.mrb[0].mxu0
        %v1292 = vpop.f32.mrb[0].mxu0
        %v1293 = vadd.f32 %v1070, %v1292
        %v1294 = vpop.f32.mrb[0].mxu0
        %1295 = vmatprep.mubr.bf16.mxu0 0
        %1296 = vmatmul.mubr.bf16.gmra.mrb[0].mxu0 %v1024
        %v1297 = vpop.f32.mrb[0].mxu0
        %v1298 = vadd.f32 %v1070, %v1297
        %v1299 = vpop.f32.mrb[0].mxu0
        %v1300 = vpop.f32.mrb[0].mxu0
        %v1301 = vadd.f32 %v1070, %v1300
        %v1302 = vpop.f32.mrb[0].mxu0
        %1303 = vdwg.mxu0
        %v1304 = vpack.c.bf16 %v1241, %v1237
        %v1305 = vpack.c.bf16 %v1251, %v1247
        %v1306 = vpack.c.bf16 %v1243, %v1239
        %v1307 = vpack.c.bf16 %v1253, %v1249
        %v1308 = vpack.c.bf16 %v1293, %v1290
        %v1309 = vpack.c.bf16 %v1301, %v1298
        %vm1310 = vcmask 261120
        %v1312 = vsel %vm1310, %v1304, 0
        %v1315 = vsel %vm1310, %v1306, 0
        %1317 = vmatprep.subr.bf16.mxu0 0
        %1318 = vmatpush1.bf16.xpose.msra.mxu0 %v1315
        %1319 = vmatprep.subr.bf16.mxu0 0
        %1320 = vmatpush1.bf16.xpose.msra.mxu0 0
        %1321 = vmatprep.subr.bf16.mxu0 0
        %1322 = vmatpush1.bf16.xpose.msra.mxu0 0
        %1323 = vmatprep.subr.bf16.mxu0 0
        %1324 = vmatpush1.bf16.xpose.msra.mxu0 0
        %1325 = vmatprep.subr.bf16.mxu0 0
        %1326 = vmatpush1.bf16.xpose.msra.mxu0 0
        %1327 = vmatprep.subr.bf16.mxu0 0
        %1328 = vmatpush1.bf16.xpose.msra.mxu0 0
        %1329 = vmatprep.subr.bf16.mxu0 0
        %1330 = vmatpush1.bf16.xpose.msra.mxu0 0
        %1331 = vmatprep.subr.bf16.mxu0 0
        %1332 = vmatpush1.bf16.xpose.msra.mxu0 0
        %1333 = vmatprep.subr.bf16.mxu0 0
        %1334 = vmatpush1.bf16.xpose.msra.mxu0 0
        %1335 = vmatprep.subr.bf16.mxu0 0
        %1336 = vmatpush1.bf16.xpose.msra.mxu0 0
        %1337 = vmatprep.subr.bf16.mxu0 0
        %1338 = vmatpush1.bf16.xpose.msra.mxu0 0
        %1339 = vmatprep.subr.bf16.mxu0 0
        %1340 = vmatpush1.bf16.xpose.msra.mxu0 0
        %1341 = vmatprep.subr.bf16.mxu0 0
        %1342 = vmatpush1.bf16.xpose.msra.mxu0 0
        %1343 = vmatprep.subr.bf16.mxu0 0
        %1344 = vmatpush1.bf16.xpose.msra.mxu0 0
        %1345 = vmatprep.subr.bf16.mxu0 0
        %1346 = vmatpush1.bf16.xpose.msra.mxu0 0
        %1347 = vmatprep.subr.bf16.mxu0 0
        %1348 = vmatpush1.bf16.xpose.msra.mxu0 0
        %1349 = vmatprep.mubr.bf16.mxu0 0
        %1350 = vmatmul.mubr.bf16.gmra.mrb[0].mxu0 %v1312
        %v1351 = vpop.f32.mrb[0].mxu0
        %v1352 = vadd.f32 %v954, %v1351
        %v1353 = vpop.f32.mrb[0].mxu0
        %v1354 = vpop.f32.mrb[0].mxu0
        %v1355 = vadd.f32 %v955, %v1354
        %v1356 = vpop.f32.mrb[0].mxu0
        %1357 = vdwg.mxu0
        %v1359 = vsel %vm1310, %v1305, 0
        %v1362 = vsel %vm1310, %v1307, 0
        %1364 = vmatprep.subr.bf16.mxu0 0
        %1365 = vmatpush1.bf16.xpose.msra.mxu0 %v1362
        %1366 = vmatprep.subr.bf16.mxu0 0
        %1367 = vmatpush1.bf16.xpose.msra.mxu0 0
        %1368 = vmatprep.subr.bf16.mxu0 0
        %1369 = vmatpush1.bf16.xpose.msra.mxu0 0
        %1370 = vmatprep.subr.bf16.mxu0 0
        %1371 = vmatpush1.bf16.xpose.msra.mxu0 0
        %1372 = vmatprep.subr.bf16.mxu0 0
        %1373 = vmatpush1.bf16.xpose.msra.mxu0 0
        %1374 = vmatprep.subr.bf16.mxu0 0
        %1375 = vmatpush1.bf16.xpose.msra.mxu0 0
        %1376 = vmatprep.subr.bf16.mxu0 0
        %1377 = vmatpush1.bf16.xpose.msra.mxu0 0
        %1378 = vmatprep.subr.bf16.mxu0 0
        %1379 = vmatpush1.bf16.xpose.msra.mxu0 0
        %1380 = vmatprep.subr.bf16.mxu0 0
        %1381 = vmatpush1.bf16.xpose.msra.mxu0 0
        %1382 = vmatprep.subr.bf16.mxu0 0
        %1383 = vmatpush1.bf16.xpose.msra.mxu0 0
        %1384 = vmatprep.subr.bf16.mxu0 0
        %1385 = vmatpush1.bf16.xpose.msra.mxu0 0
        %1386 = vmatprep.subr.bf16.mxu0 0
        %1387 = vmatpush1.bf16.xpose.msra.mxu0 0
        %1388 = vmatprep.subr.bf16.mxu0 0
        %1389 = vmatpush1.bf16.xpose.msra.mxu0 0
        %1390 = vmatprep.subr.bf16.mxu0 0
        %1391 = vmatpush1.bf16.xpose.msra.mxu0 0
        %1392 = vmatprep.subr.bf16.mxu0 0
        %1393 = vmatpush1.bf16.xpose.msra.mxu0 0
        %1394 = vmatprep.subr.bf16.mxu0 0
        %1395 = vmatpush1.bf16.xpose.msra.mxu0 0
        %1396 = vmatprep.mubr.bf16.mxu0 0
        %1397 = vmatmul.mubr.bf16.gmra.mrb[0].mxu0 %v1359
        %v1398 = vpop.f32.mrb[0].mxu0
        %v1399 = vadd.f32 %v954, %v1398
        %v1400 = vpop.f32.mrb[0].mxu0
        %v1401 = vpop.f32.mrb[0].mxu0
        %v1402 = vadd.f32 %v955, %v1401
        %v1403 = vpop.f32.mrb[0].mxu0
        %1404 = vdwg.mxu0
        %vm1405 = vcmask 130048
        %v1406 = vsel %vm1405, %v1352, -inf
        %1407 = vmax.xlane.f32.xlu0 %v1406
        %v1408 = vpop.xlane.xlu0 %1407
        %v1409 = vsel %vm1405, %v1355, -inf
        %1410 = vmax.xlane.f32.xlu0 %v1409
        %v1411 = vpop.xlane.xlu0 %1410
        %v1412 = vsel %vm1405, %v1399, -inf
        %1413 = vmax.xlane.f32.xlu0 %v1412
        %v1414 = vpop.xlane.xlu0 %1413
        %v1415 = vsel %vm1405, %v1402, -inf
        %1416 = vmax.xlane.f32.xlu0 %v1415
        %v1417 = vpop.xlane.xlu0 %1416
        %v1418 = vsub.f32 %v1352, %v1408
        %v1419 = vsub.f32 %v1355, %v1411
        %v1420 = vsub.f32 %v1399, %v1414
        %v1421 = vsub.f32 %v1402, %v1417
        %v1422 = vmul.f32 %v1418, 1.442695
        %v1423 = vpow.pop %v1422
        %v1424 = vmul.f32 %v1419, 1.442695
        %v1425 = vpow.pop %v1424
        %v1426 = vmul.f32 %v1420, 1.442695
        %v1427 = vpow.pop %v1426
        %v1428 = vmul.f32 %v1421, 1.442695
        %v1429 = vpow.pop %v1428
        %v1430 = vsel %vm1405, %v1423, 0.0
        %1431 = vadd.xlane.f32.xlu0 %v1430
        %v1432 = vpop.xlane.xlu0 %1431
        %v1433 = vsel %vm1405, %v1425, 0.0
        %1434 = vadd.xlane.f32.xlu0 %v1433
        %v1435 = vpop.xlane.xlu0 %1434
        %v1436 = vsel %vm1405, %v1427, 0.0
        %1437 = vadd.xlane.f32.xlu0 %v1436
        %v1438 = vpop.xlane.xlu0 %1437
        %v1439 = vsel %vm1405, %v1429, 0.0
        %1440 = vadd.xlane.f32.xlu0 %v1439
        %v1441 = vpop.xlane.xlu0 %1440
        %v1442 = vrcp.pop %v1432
        %v1443 = vrcp.pop %v1435
        %v1444 = vrcp.pop %v1438
        %v1445 = vrcp.pop %v1441
        %v1446 = vmul.f32 %v1423, %v1442
        %v1447 = vmul.f32 %v1425, %v1443
        %v1448 = vmul.f32 %v1427, %v1444
        %v1449 = vmul.f32 %v1429, %v1445
        %v1450 = vpack.c.bf16 %v1447, %v1446
        %v1451 = vpack.c.bf16 %v1449, %v1448
        %v1453 = vsel %vm1405, %v1450, 0
        %1455 = vmatprep.subr.bf16.mxu0 0
        %1456 = vmatpush1.bf16.msra.mxu0 %v1308
        %1457 = vmatprep.subr.bf16.mxu0 0
        %1458 = vmatpush1.bf16.msra.mxu0 0
        %1459 = vmatprep.subr.bf16.mxu0 0
        %1460 = vmatpush1.bf16.msra.mxu0 0
        %1461 = vmatprep.subr.bf16.mxu0 0
        %1462 = vmatpush1.bf16.msra.mxu0 0
        %1463 = vmatprep.subr.bf16.mxu0 0
        %1464 = vmatpush1.bf16.msra.mxu0 0
        %1465 = vmatprep.subr.bf16.mxu0 0
        %1466 = vmatpush1.bf16.msra.mxu0 0
        %1467 = vmatprep.subr.bf16.mxu0 0
        %1468 = vmatpush1.bf16.msra.mxu0 0
        %1469 = vmatprep.subr.bf16.mxu0 0
        %1470 = vmatpush1.bf16.msra.mxu0 0
        %1471 = vmatprep.subr.bf16.mxu0 0
        %1472 = vmatpush1.bf16.msra.mxu0 0
        %1473 = vmatprep.subr.bf16.mxu0 0
        %1474 = vmatpush1.bf16.msra.mxu0 0
        %1475 = vmatprep.subr.bf16.mxu0 0
        %1476 = vmatpush1.bf16.msra.mxu0 0
        %1477 = vmatprep.subr.bf16.mxu0 0
        %1478 = vmatpush1.bf16.msra.mxu0 0
        %1479 = vmatprep.subr.bf16.mxu0 0
        %1480 = vmatpush1.bf16.msra.mxu0 0
        %1481 = vmatprep.subr.bf16.mxu0 0
        %1482 = vmatpush1.bf16.msra.mxu0 0
        %1483 = vmatprep.subr.bf16.mxu0 0
        %1484 = vmatpush1.bf16.msra.mxu0 0
        %1485 = vmatprep.subr.bf16.mxu0 0
        %1486 = vmatpush1.bf16.msra.mxu0 0
        %1487 = vmatprep.mubr.bf16.mxu0 0
        %1488 = vmatmul.mubr.bf16.gmra.mrb[0].mxu0 %v1453
        %v1489 = vpop.f32.mrb[0].mxu0
        %v1490 = vadd.f32 0.0, %v1489
        %v1491 = vpop.f32.mrb[0].mxu0
        %v1492 = vpop.f32.mrb[0].mxu0
        %v1493 = vadd.f32 0.0, %v1492
        %v1494 = vpop.f32.mrb[0].mxu0
        %1495 = vdwg.mxu0
        %v1497 = vsel %vm1405, %v1451, 0
        %1499 = vmatprep.subr.bf16.mxu0 0
        %1500 = vmatpush1.bf16.msra.mxu0 %v1309
        %1501 = vmatprep.subr.bf16.mxu0 0
        %1502 = vmatpush1.bf16.msra.mxu0 0
        %1503 = vmatprep.subr.bf16.mxu0 0
        %1504 = vmatpush1.bf16.msra.mxu0 0
        %1505 = vmatprep.subr.bf16.mxu0 0
        %1506 = vmatpush1.bf16.msra.mxu0 0
        %1507 = vmatprep.subr.bf16.mxu0 0
        %1508 = vmatpush1.bf16.msra.mxu0 0
        %1509 = vmatprep.subr.bf16.mxu0 0
        %1510 = vmatpush1.bf16.msra.mxu0 0
        %1511 = vmatprep.subr.bf16.mxu0 0
        %1512 = vmatpush1.bf16.msra.mxu0 0
        %1513 = vmatprep.subr.bf16.mxu0 0
        %1514 = vmatpush1.bf16.msra.mxu0 0
        %1515 = vmatprep.subr.bf16.mxu0 0
        %1516 = vmatpush1.bf16.msra.mxu0 0
        %1517 = vmatprep.subr.bf16.mxu0 0
        %1518 = vmatpush1.bf16.msra.mxu0 0
        %1519 = vmatprep.subr.bf16.mxu0 0
        %1520 = vmatpush1.bf16.msra.mxu0 0
        %1521 = vmatprep.subr.bf16.mxu0 0
        %1522 = vmatpush1.bf16.msra.mxu0 0
        %1523 = vmatprep.subr.bf16.mxu0 0
        %1524 = vmatpush1.bf16.msra.mxu0 0
        %1525 = vmatprep.subr.bf16.mxu0 0
        %1526 = vmatpush1.bf16.msra.mxu0 0
        %1527 = vmatprep.subr.bf16.mxu0 0
        %1528 = vmatpush1.bf16.msra.mxu0 0
        %1529 = vmatprep.subr.bf16.mxu0 0
        %1530 = vmatpush1.bf16.msra.mxu0 0
        %1531 = vmatprep.mubr.bf16.mxu0 0
        %1532 = vmatmul.mubr.bf16.gmra.mrb[0].mxu0 %v1497
        %v1533 = vpop.f32.mrb[0].mxu0
        %v1534 = vadd.f32 0.0, %v1533
        %v1535 = vpop.f32.mrb[0].mxu0
        %v1536 = vpop.f32.mrb[0].mxu0
        %v1537 = vadd.f32 0.0, %v1536
        %v1538 = vpop.f32.mrb[0].mxu0
        %1539 = vdwg.mxu0
        %1541 = vrot.lane.b32.xlu0 %v1304, 96
        %v1542 = vpop.permute.xlu0 %1541
        %1544 = vrot.lane.b32.xlu0 %v1306, 96
        %v1545 = vpop.permute.xlu0 %1544
        %v1547 = vsel %vm1310, %v1542, 0
        %v1550 = vsel %vm1310, %v1545, 0
        %1552 = vmatprep.subr.bf16.mxu0 0
        %1553 = vmatpush1.bf16.xpose.msra.mxu0 %v1550
        %1554 = vmatprep.subr.bf16.mxu0 0
        %1555 = vmatpush1.bf16.xpose.msra.mxu0 0
        %1556 = vmatprep.subr.bf16.mxu0 0
        %1557 = vmatpush1.bf16.xpose.msra.mxu0 0
        %1558 = vmatprep.subr.bf16.mxu0 0
        %1559 = vmatpush1.bf16.xpose.msra.mxu0 0
        %1560 = vmatprep.subr.bf16.mxu0 0
        %1561 = vmatpush1.bf16.xpose.msra.mxu0 0
        %1562 = vmatprep.subr.bf16.mxu0 0
        %1563 = vmatpush1.bf16.xpose.msra.mxu0 0
        %1564 = vmatprep.subr.bf16.mxu0 0
        %1565 = vmatpush1.bf16.xpose.msra.mxu0 0
        %1566 = vmatprep.subr.bf16.mxu0 0
        %1567 = vmatpush1.bf16.xpose.msra.mxu0 0
        %1568 = vmatprep.subr.bf16.mxu0 0
        %1569 = vmatpush1.bf16.xpose.msra.mxu0 0
        %1570 = vmatprep.subr.bf16.mxu0 0
        %1571 = vmatpush1.bf16.xpose.msra.mxu0 0
        %1572 = vmatprep.subr.bf16.mxu0 0
        %1573 = vmatpush1.bf16.xpose.msra.mxu0 0
        %1574 = vmatprep.subr.bf16.mxu0 0
        %1575 = vmatpush1.bf16.xpose.msra.mxu0 0
        %1576 = vmatprep.subr.bf16.mxu0 0
        %1577 = vmatpush1.bf16.xpose.msra.mxu0 0
        %1578 = vmatprep.subr.bf16.mxu0 0
        %1579 = vmatpush1.bf16.xpose.msra.mxu0 0
        %1580 = vmatprep.subr.bf16.mxu0 0
        %1581 = vmatpush1.bf16.xpose.msra.mxu0 0
        %1582 = vmatprep.subr.bf16.mxu0 0
        %1583 = vmatpush1.bf16.xpose.msra.mxu0 0
        %1584 = vmatprep.mubr.bf16.mxu0 0
        %1585 = vmatmul.mubr.bf16.gmra.mrb[0].mxu0 %v1547
        %v1586 = vpop.f32.mrb[0].mxu0
        %v1587 = vadd.f32 %v954, %v1586
        %v1588 = vpop.f32.mrb[0].mxu0
        %v1589 = vpop.f32.mrb[0].mxu0
        %v1590 = vadd.f32 %v955, %v1589
        %v1591 = vpop.f32.mrb[0].mxu0
        %1592 = vdwg.mxu0
        %1594 = vrot.lane.b32.xlu0 %v1305, 96
        %v1595 = vpop.permute.xlu0 %1594
        %1597 = vrot.lane.b32.xlu0 %v1307, 96
        %v1598 = vpop.permute.xlu0 %1597
        %v1600 = vsel %vm1310, %v1595, 0
        %v1603 = vsel %vm1310, %v1598, 0
        %1605 = vmatprep.subr.bf16.mxu0 0
        %1606 = vmatpush1.bf16.xpose.msra.mxu0 %v1603
        %1607 = vmatprep.subr.bf16.mxu0 0
        %1608 = vmatpush1.bf16.xpose.msra.mxu0 0
        %1609 = vmatprep.subr.bf16.mxu0 0
        %1610 = vmatpush1.bf16.xpose.msra.mxu0 0
        %1611 = vmatprep.subr.bf16.mxu0 0
        %1612 = vmatpush1.bf16.xpose.msra.mxu0 0
        %1613 = vmatprep.subr.bf16.mxu0 0
        %1614 = vmatpush1.bf16.xpose.msra.mxu0 0
        %1615 = vmatprep.subr.bf16.mxu0 0
        %1616 = vmatpush1.bf16.xpose.msra.mxu0 0
        %1617 = vmatprep.subr.bf16.mxu0 0
        %1618 = vmatpush1.bf16.xpose.msra.mxu0 0
        %1619 = vmatprep.subr.bf16.mxu0 0
        %1620 = vmatpush1.bf16.xpose.msra.mxu0 0
        %1621 = vmatprep.subr.bf16.mxu0 0
        %1622 = vmatpush1.bf16.xpose.msra.mxu0 0
        %1623 = vmatprep.subr.bf16.mxu0 0
        %1624 = vmatpush1.bf16.xpose.msra.mxu0 0
        %1625 = vmatprep.subr.bf16.mxu0 0
        %1626 = vmatpush1.bf16.xpose.msra.mxu0 0
        %1627 = vmatprep.subr.bf16.mxu0 0
        %1628 = vmatpush1.bf16.xpose.msra.mxu0 0
        %1629 = vmatprep.subr.bf16.mxu0 0
        %1630 = vmatpush1.bf16.xpose.msra.mxu0 0
        %1631 = vmatprep.subr.bf16.mxu0 0
        %1632 = vmatpush1.bf16.xpose.msra.mxu0 0
        %1633 = vmatprep.subr.bf16.mxu0 0
        %1634 = vmatpush1.bf16.xpose.msra.mxu0 0
        %1635 = vmatprep.subr.bf16.mxu0 0
        %1636 = vmatpush1.bf16.xpose.msra.mxu0 0
        %1637 = vmatprep.mubr.bf16.mxu0 0
        %1638 = vmatmul.mubr.bf16.gmra.mrb[0].mxu0 %v1600
        %v1639 = vpop.f32.mrb[0].mxu0
        %v1640 = vadd.f32 %v954, %v1639
        %v1641 = vpop.f32.mrb[0].mxu0
        %v1642 = vpop.f32.mrb[0].mxu0
        %v1643 = vadd.f32 %v955, %v1642
        %v1644 = vpop.f32.mrb[0].mxu0
        %1645 = vdwg.mxu0
        %v1646 = vsel %vm1405, %v1587, -inf
        %1647 = vmax.xlane.f32.xlu0 %v1646
        %v1648 = vpop.xlane.xlu0 %1647
        %v1649 = vsel %vm1405, %v1590, -inf
        %1650 = vmax.xlane.f32.xlu0 %v1649
        %v1651 = vpop.xlane.xlu0 %1650
        %v1652 = vsel %vm1405, %v1640, -inf
        %1653 = vmax.xlane.f32.xlu0 %v1652
        %v1654 = vpop.xlane.xlu0 %1653
        %v1655 = vsel %vm1405, %v1643, -inf
        %1656 = vmax.xlane.f32.xlu0 %v1655
        %v1657 = vpop.xlane.xlu0 %1656
        %v1658 = vsub.f32 %v1587, %v1648
        %v1659 = vsub.f32 %v1590, %v1651
        %v1660 = vsub.f32 %v1640, %v1654
        %v1661 = vsub.f32 %v1643, %v1657
        %v1662 = vmul.f32 %v1658, 1.442695
        %v1663 = vpow.pop %v1662
        %v1664 = vmul.f32 %v1659, 1.442695
        %v1665 = vpow.pop %v1664
        %v1666 = vmul.f32 %v1660, 1.442695
        %v1667 = vpow.pop %v1666
        %v1668 = vmul.f32 %v1661, 1.442695
        %v1669 = vpow.pop %v1668
        %v1670 = vsel %vm1405, %v1663, 0.0
        %1671 = vadd.xlane.f32.xlu0 %v1670
        %v1672 = vpop.xlane.xlu0 %1671
        %v1673 = vsel %vm1405, %v1665, 0.0
        %1674 = vadd.xlane.f32.xlu0 %v1673
        %v1675 = vpop.xlane.xlu0 %1674
        %v1676 = vsel %vm1405, %v1667, 0.0
        %1677 = vadd.xlane.f32.xlu0 %v1676
        %v1678 = vpop.xlane.xlu0 %1677
        %v1679 = vsel %vm1405, %v1669, 0.0
        %1680 = vadd.xlane.f32.xlu0 %v1679
        %v1681 = vpop.xlane.xlu0 %1680
        %v1682 = vrcp.pop %v1672
        %v1683 = vrcp.pop %v1675
        %v1684 = vrcp.pop %v1678
        %v1685 = vrcp.pop %v1681
        %v1686 = vmul.f32 %v1663, %v1682
        %v1687 = vmul.f32 %v1665, %v1683
        %v1688 = vmul.f32 %v1667, %v1684
        %v1689 = vmul.f32 %v1669, %v1685
        %v1690 = vpack.c.bf16 %v1687, %v1686
        %v1691 = vpack.c.bf16 %v1689, %v1688
        %1693 = vrot.lane.b32.xlu0 %v1308, 96
        %v1694 = vpop.permute.xlu0 %1693
        %v1697 = vsel %vm1405, %v1690, 0
        %1699 = vmatprep.subr.bf16.mxu0 0
        %1700 = vmatpush1.bf16.msra.mxu0 %v1694
        %1701 = vmatprep.subr.bf16.mxu0 0
        %1702 = vmatpush1.bf16.msra.mxu0 0
        %1703 = vmatprep.subr.bf16.mxu0 0
        %1704 = vmatpush1.bf16.msra.mxu0 0
        %1705 = vmatprep.subr.bf16.mxu0 0
        %1706 = vmatpush1.bf16.msra.mxu0 0
        %1707 = vmatprep.subr.bf16.mxu0 0
        %1708 = vmatpush1.bf16.msra.mxu0 0
        %1709 = vmatprep.subr.bf16.mxu0 0
        %1710 = vmatpush1.bf16.msra.mxu0 0
        %1711 = vmatprep.subr.bf16.mxu0 0
        %1712 = vmatpush1.bf16.msra.mxu0 0
        %1713 = vmatprep.subr.bf16.mxu0 0
        %1714 = vmatpush1.bf16.msra.mxu0 0
        %1715 = vmatprep.subr.bf16.mxu0 0
        %1716 = vmatpush1.bf16.msra.mxu0 0
        %1717 = vmatprep.subr.bf16.mxu0 0
        %1718 = vmatpush1.bf16.msra.mxu0 0
        %1719 = vmatprep.subr.bf16.mxu0 0
        %1720 = vmatpush1.bf16.msra.mxu0 0
        %1721 = vmatprep.subr.bf16.mxu0 0
        %1722 = vmatpush1.bf16.msra.mxu0 0
        %1723 = vmatprep.subr.bf16.mxu0 0
        %1724 = vmatpush1.bf16.msra.mxu0 0
        %1725 = vmatprep.subr.bf16.mxu0 0
        %1726 = vmatpush1.bf16.msra.mxu0 0
        %1727 = vmatprep.subr.bf16.mxu0 0
        %1728 = vmatpush1.bf16.msra.mxu0 0
        %1729 = vmatprep.subr.bf16.mxu0 0
        %1730 = vmatpush1.bf16.msra.mxu0 0
        %1731 = vmatprep.mubr.bf16.mxu0 0
        %1732 = vmatmul.mubr.bf16.gmra.mrb[0].mxu0 %v1697
        %v1733 = vpop.f32.mrb[0].mxu0
        %v1734 = vadd.f32 0.0, %v1733
        %v1735 = vpop.f32.mrb[0].mxu0
        %v1736 = vpop.f32.mrb[0].mxu0
        %v1737 = vadd.f32 0.0, %v1736
        %v1738 = vpop.f32.mrb[0].mxu0
        %1739 = vdwg.mxu0
        %1741 = vrot.lane.b32.xlu0 %v1309, 96
        %v1742 = vpop.permute.xlu0 %1741
        %v1745 = vsel %vm1405, %v1691, 0
        %1747 = vmatprep.subr.bf16.mxu0 0
        %1748 = vmatpush1.bf16.msra.mxu0 %v1742
        %1749 = vmatprep.subr.bf16.mxu0 0
        %1750 = vmatpush1.bf16.msra.mxu0 0
        %1751 = vmatprep.subr.bf16.mxu0 0
        %1752 = vmatpush1.bf16.msra.mxu0 0
        %1753 = vmatprep.subr.bf16.mxu0 0
        %1754 = vmatpush1.bf16.msra.mxu0 0
        %1755 = vmatprep.subr.bf16.mxu0 0
        %1756 = vmatpush1.bf16.msra.mxu0 0
        %1757 = vmatprep.subr.bf16.mxu0 0
        %1758 = vmatpush1.bf16.msra.mxu0 0
        %1759 = vmatprep.subr.bf16.mxu0 0
        %1760 = vmatpush1.bf16.msra.mxu0 0
        %1761 = vmatprep.subr.bf16.mxu0 0
        %1762 = vmatpush1.bf16.msra.mxu0 0
        %1763 = vmatprep.subr.bf16.mxu0 0
        %1764 = vmatpush1.bf16.msra.mxu0 0
        %1765 = vmatprep.subr.bf16.mxu0 0
        %1766 = vmatpush1.bf16.msra.mxu0 0
        %1767 = vmatprep.subr.bf16.mxu0 0
        %1768 = vmatpush1.bf16.msra.mxu0 0
        %1769 = vmatprep.subr.bf16.mxu0 0
        %1770 = vmatpush1.bf16.msra.mxu0 0
        %1771 = vmatprep.subr.bf16.mxu0 0
        %1772 = vmatpush1.bf16.msra.mxu0 0
        %1773 = vmatprep.subr.bf16.mxu0 0
        %1774 = vmatpush1.bf16.msra.mxu0 0
        %1775 = vmatprep.subr.bf16.mxu0 0
        %1776 = vmatpush1.bf16.msra.mxu0 0
        %1777 = vmatprep.subr.bf16.mxu0 0
        %1778 = vmatpush1.bf16.msra.mxu0 0
        %1779 = vmatprep.mubr.bf16.mxu0 0
        %1780 = vmatmul.mubr.bf16.gmra.mrb[0].mxu0 %v1745
        %v1781 = vpop.f32.mrb[0].mxu0
        %v1782 = vadd.f32 0.0, %v1781
        %v1783 = vpop.f32.mrb[0].mxu0
        %v1784 = vpop.f32.mrb[0].mxu0
        %v1785 = vadd.f32 0.0, %v1784
        %v1786 = vpop.f32.mrb[0].mxu0
        %1787 = vdwg.mxu0
        %1788 = vrot.lane.b32.xlu0 %v1304, 64
        %v1789 = vpop.permute.xlu0 %1788
        %1790 = vrot.lane.b32.xlu0 %v1306, 64
        %v1791 = vpop.permute.xlu0 %1790
        %v1793 = vsel %vm1310, %v1789, 0
        %v1796 = vsel %vm1310, %v1791, 0
        %1798 = vmatprep.subr.bf16.mxu0 0
        %1799 = vmatpush1.bf16.xpose.msra.mxu0 %v1796
        %1800 = vmatprep.subr.bf16.mxu0 0
        %1801 = vmatpush1.bf16.xpose.msra.mxu0 0
        %1802 = vmatprep.subr.bf16.mxu0 0
        %1803 = vmatpush1.bf16.xpose.msra.mxu0 0
        %1804 = vmatprep.subr.bf16.mxu0 0
        %1805 = vmatpush1.bf16.xpose.msra.mxu0 0
        %1806 = vmatprep.subr.bf16.mxu0 0
        %1807 = vmatpush1.bf16.xpose.msra.mxu0 0
        %1808 = vmatprep.subr.bf16.mxu0 0
        %1809 = vmatpush1.bf16.xpose.msra.mxu0 0
        %1810 = vmatprep.subr.bf16.mxu0 0
        %1811 = vmatpush1.bf16.xpose.msra.mxu0 0
        %1812 = vmatprep.subr.bf16.mxu0 0
        %1813 = vmatpush1.bf16.xpose.msra.mxu0 0
        %1814 = vmatprep.subr.bf16.mxu0 0
        %1815 = vmatpush1.bf16.xpose.msra.mxu0 0
        %1816 = vmatprep.subr.bf16.mxu0 0
        %1817 = vmatpush1.bf16.xpose.msra.mxu0 0
        %1818 = vmatprep.subr.bf16.mxu0 0
        %1819 = vmatpush1.bf16.xpose.msra.mxu0 0
        %1820 = vmatprep.subr.bf16.mxu0 0
        %1821 = vmatpush1.bf16.xpose.msra.mxu0 0
        %1822 = vmatprep.subr.bf16.mxu0 0
        %1823 = vmatpush1.bf16.xpose.msra.mxu0 0
        %1824 = vmatprep.subr.bf16.mxu0 0
        %1825 = vmatpush1.bf16.xpose.msra.mxu0 0
        %1826 = vmatprep.subr.bf16.mxu0 0
        %1827 = vmatpush1.bf16.xpose.msra.mxu0 0
        %1828 = vmatprep.subr.bf16.mxu0 0
        %1829 = vmatpush1.bf16.xpose.msra.mxu0 0
        %1830 = vmatprep.mubr.bf16.mxu0 0
        %1831 = vmatmul.mubr.bf16.gmra.mrb[0].mxu0 %v1793
        %v1832 = vpop.f32.mrb[0].mxu0
        %v1833 = vadd.f32 %v954, %v1832
        %v1834 = vpop.f32.mrb[0].mxu0
        %v1835 = vpop.f32.mrb[0].mxu0
        %v1836 = vadd.f32 %v955, %v1835
        %v1837 = vpop.f32.mrb[0].mxu0
        %1838 = vdwg.mxu0
        %1839 = vrot.lane.b32.xlu0 %v1305, 64
        %v1840 = vpop.permute.xlu0 %1839
        %1841 = vrot.lane.b32.xlu0 %v1307, 64
        %v1842 = vpop.permute.xlu0 %1841
        %v1844 = vsel %vm1310, %v1840, 0
        %v1847 = vsel %vm1310, %v1842, 0
        %1849 = vmatprep.subr.bf16.mxu0 0
        %1850 = vmatpush1.bf16.xpose.msra.mxu0 %v1847
        %1851 = vmatprep.subr.bf16.mxu0 0
        %1852 = vmatpush1.bf16.xpose.msra.mxu0 0
        %1853 = vmatprep.subr.bf16.mxu0 0
        %1854 = vmatpush1.bf16.xpose.msra.mxu0 0
        %1855 = vmatprep.subr.bf16.mxu0 0
        %1856 = vmatpush1.bf16.xpose.msra.mxu0 0
        %1857 = vmatprep.subr.bf16.mxu0 0
        %1858 = vmatpush1.bf16.xpose.msra.mxu0 0
        %1859 = vmatprep.subr.bf16.mxu0 0
        %1860 = vmatpush1.bf16.xpose.msra.mxu0 0
        %1861 = vmatprep.subr.bf16.mxu0 0
        %1862 = vmatpush1.bf16.xpose.msra.mxu0 0
        %1863 = vmatprep.subr.bf16.mxu0 0
        %1864 = vmatpush1.bf16.xpose.msra.mxu0 0
        %1865 = vmatprep.subr.bf16.mxu0 0
        %1866 = vmatpush1.bf16.xpose.msra.mxu0 0
        %1867 = vmatprep.subr.bf16.mxu0 0
        %1868 = vmatpush1.bf16.xpose.msra.mxu0 0
        %1869 = vmatprep.subr.bf16.mxu0 0
        %1870 = vmatpush1.bf16.xpose.msra.mxu0 0
        %1871 = vmatprep.subr.bf16.mxu0 0
        %1872 = vmatpush1.bf16.xpose.msra.mxu0 0
        %1873 = vmatprep.subr.bf16.mxu0 0
        %1874 = vmatpush1.bf16.xpose.msra.mxu0 0
        %1875 = vmatprep.subr.bf16.mxu0 0
        %1876 = vmatpush1.bf16.xpose.msra.mxu0 0
        %1877 = vmatprep.subr.bf16.mxu0 0
        %1878 = vmatpush1.bf16.xpose.msra.mxu0 0
        %1879 = vmatprep.subr.bf16.mxu0 0
        %1880 = vmatpush1.bf16.xpose.msra.mxu0 0
        %1881 = vmatprep.mubr.bf16.mxu0 0
        %1882 = vmatmul.mubr.bf16.gmra.mrb[0].mxu0 %v1844
        %v1883 = vpop.f32.mrb[0].mxu0
        %v1884 = vadd.f32 %v954, %v1883
        %v1885 = vpop.f32.mrb[0].mxu0
        %v1886 = vpop.f32.mrb[0].mxu0
        %v1887 = vadd.f32 %v955, %v1886
        %v1888 = vpop.f32.mrb[0].mxu0
        %1889 = vdwg.mxu0
        %v1890 = vsel %vm1405, %v1833, -inf
        %1891 = vmax.xlane.f32.xlu0 %v1890
        %v1892 = vpop.xlane.xlu0 %1891
        %v1893 = vsel %vm1405, %v1836, -inf
        %1894 = vmax.xlane.f32.xlu0 %v1893
        %v1895 = vpop.xlane.xlu0 %1894
        %v1896 = vsel %vm1405, %v1884, -inf
        %1897 = vmax.xlane.f32.xlu0 %v1896
        %v1898 = vpop.xlane.xlu0 %1897
        %v1899 = vsel %vm1405, %v1887, -inf
        %1900 = vmax.xlane.f32.xlu0 %v1899
        %v1901 = vpop.xlane.xlu0 %1900
        %v1902 = vsub.f32 %v1833, %v1892
        %v1903 = vsub.f32 %v1836, %v1895
        %v1904 = vsub.f32 %v1884, %v1898
        %v1905 = vsub.f32 %v1887, %v1901
        %v1906 = vmul.f32 %v1902, 1.442695
        %v1907 = vpow.pop %v1906
        %v1908 = vmul.f32 %v1903, 1.442695
        %v1909 = vpow.pop %v1908
        %v1910 = vmul.f32 %v1904, 1.442695
        %v1911 = vpow.pop %v1910
        %v1912 = vmul.f32 %v1905, 1.442695
        %v1913 = vpow.pop %v1912
        %v1914 = vsel %vm1405, %v1907, 0.0
        %1915 = vadd.xlane.f32.xlu0 %v1914
        %v1916 = vpop.xlane.xlu0 %1915
        %v1917 = vsel %vm1405, %v1909, 0.0
        %1918 = vadd.xlane.f32.xlu0 %v1917
        %v1919 = vpop.xlane.xlu0 %1918
        %v1920 = vsel %vm1405, %v1911, 0.0
        %1921 = vadd.xlane.f32.xlu0 %v1920
        %v1922 = vpop.xlane.xlu0 %1921
        %v1923 = vsel %vm1405, %v1913, 0.0
        %1924 = vadd.xlane.f32.xlu0 %v1923
        %v1925 = vpop.xlane.xlu0 %1924
        %v1926 = vrcp.pop %v1916
        %v1927 = vrcp.pop %v1919
        %v1928 = vrcp.pop %v1922
        %v1929 = vrcp.pop %v1925
        %v1930 = vmul.f32 %v1907, %v1926
        %v1931 = vmul.f32 %v1909, %v1927
        %v1932 = vmul.f32 %v1911, %v1928
        %v1933 = vmul.f32 %v1913, %v1929
        %v1934 = vpack.c.bf16 %v1931, %v1930
        %v1935 = vpack.c.bf16 %v1933, %v1932
        %1936 = vrot.lane.b32.xlu0 %v1308, 64
        %v1937 = vpop.permute.xlu0 %1936
        %v1940 = vsel %vm1405, %v1934, 0
        %1942 = vmatprep.subr.bf16.mxu0 0
        %1943 = vmatpush1.bf16.msra.mxu0 %v1937
        %1944 = vmatprep.subr.bf16.mxu0 0
        %1945 = vmatpush1.bf16.msra.mxu0 0
        %1946 = vmatprep.subr.bf16.mxu0 0
        %1947 = vmatpush1.bf16.msra.mxu0 0
        %1948 = vmatprep.subr.bf16.mxu0 0
        %1949 = vmatpush1.bf16.msra.mxu0 0
        %1950 = vmatprep.subr.bf16.mxu0 0
        %1951 = vmatpush1.bf16.msra.mxu0 0
        %1952 = vmatprep.subr.bf16.mxu0 0
        %1953 = vmatpush1.bf16.msra.mxu0 0
        %1954 = vmatprep.subr.bf16.mxu0 0
        %1955 = vmatpush1.bf16.msra.mxu0 0
        %1956 = vmatprep.subr.bf16.mxu0 0
        %1957 = vmatpush1.bf16.msra.mxu0 0
        %1958 = vmatprep.subr.bf16.mxu0 0
        %1959 = vmatpush1.bf16.msra.mxu0 0
        %1960 = vmatprep.subr.bf16.mxu0 0
        %1961 = vmatpush1.bf16.msra.mxu0 0
        %1962 = vmatprep.subr.bf16.mxu0 0
        %1963 = vmatpush1.bf16.msra.mxu0 0
        %1964 = vmatprep.subr.bf16.mxu0 0
        %1965 = vmatpush1.bf16.msra.mxu0 0
        %1966 = vmatprep.subr.bf16.mxu0 0
        %1967 = vmatpush1.bf16.msra.mxu0 0
        %1968 = vmatprep.subr.bf16.mxu0 0
        %1969 = vmatpush1.bf16.msra.mxu0 0
        %1970 = vmatprep.subr.bf16.mxu0 0
        %1971 = vmatpush1.bf16.msra.mxu0 0
        %1972 = vmatprep.subr.bf16.mxu0 0
        %1973 = vmatpush1.bf16.msra.mxu0 0
        %1974 = vmatprep.mubr.bf16.mxu0 0
        %1975 = vmatmul.mubr.bf16.gmra.mrb[0].mxu0 %v1940
        %v1976 = vpop.f32.mrb[0].mxu0
        %v1977 = vadd.f32 0.0, %v1976
        %v1978 = vpop.f32.mrb[0].mxu0
        %v1979 = vpop.f32.mrb[0].mxu0
        %v1980 = vadd.f32 0.0, %v1979
        %v1981 = vpop.f32.mrb[0].mxu0
        %1982 = vdwg.mxu0
        %1983 = vrot.lane.b32.xlu0 %v1309, 64
        %v1984 = vpop.permute.xlu0 %1983
        %v1987 = vsel %vm1405, %v1935, 0
        %1989 = vmatprep.subr.bf16.mxu0 0
        %1990 = vmatpush1.bf16.msra.mxu0 %v1984
        %1991 = vmatprep.subr.bf16.mxu0 0
        %1992 = vmatpush1.bf16.msra.mxu0 0
        %1993 = vmatprep.subr.bf16.mxu0 0
        %1994 = vmatpush1.bf16.msra.mxu0 0
        %1995 = vmatprep.subr.bf16.mxu0 0
        %1996 = vmatpush1.bf16.msra.mxu0 0
        %1997 = vmatprep.subr.bf16.mxu0 0
        %1998 = vmatpush1.bf16.msra.mxu0 0
        %1999 = vmatprep.subr.bf16.mxu0 0
        %2000 = vmatpush1.bf16.msra.mxu0 0
        %2001 = vmatprep.subr.bf16.mxu0 0
        %2002 = vmatpush1.bf16.msra.mxu0 0
        %2003 = vmatprep.subr.bf16.mxu0 0
        %2004 = vmatpush1.bf16.msra.mxu0 0
        %2005 = vmatprep.subr.bf16.mxu0 0
        %2006 = vmatpush1.bf16.msra.mxu0 0
        %2007 = vmatprep.subr.bf16.mxu0 0
        %2008 = vmatpush1.bf16.msra.mxu0 0
        %2009 = vmatprep.subr.bf16.mxu0 0
        %2010 = vmatpush1.bf16.msra.mxu0 0
        %2011 = vmatprep.subr.bf16.mxu0 0
        %2012 = vmatpush1.bf16.msra.mxu0 0
        %2013 = vmatprep.subr.bf16.mxu0 0
        %2014 = vmatpush1.bf16.msra.mxu0 0
        %2015 = vmatprep.subr.bf16.mxu0 0
        %2016 = vmatpush1.bf16.msra.mxu0 0
        %2017 = vmatprep.subr.bf16.mxu0 0
        %2018 = vmatpush1.bf16.msra.mxu0 0
        %2019 = vmatprep.subr.bf16.mxu0 0
        %2020 = vmatpush1.bf16.msra.mxu0 0
        %2021 = vmatprep.mubr.bf16.mxu0 0
        %2022 = vmatmul.mubr.bf16.gmra.mrb[0].mxu0 %v1987
        %v2023 = vpop.f32.mrb[0].mxu0
        %v2024 = vadd.f32 0.0, %v2023
        %v2025 = vpop.f32.mrb[0].mxu0
        %v2026 = vpop.f32.mrb[0].mxu0
        %v2027 = vadd.f32 0.0, %v2026
        %v2028 = vpop.f32.mrb[0].mxu0
        %2029 = vdwg.mxu0
        %2030 = vrot.lane.b32.xlu0 %v1304, 32
        %v2031 = vpop.permute.xlu0 %2030
        %2032 = vrot.lane.b32.xlu0 %v1306, 32
        %v2033 = vpop.permute.xlu0 %2032
        %v2035 = vsel %vm1310, %v2031, 0
        %v2038 = vsel %vm1310, %v2033, 0
        %2040 = vmatprep.subr.bf16.mxu0 0
        %2041 = vmatpush1.bf16.xpose.msra.mxu0 %v2038
        %2042 = vmatprep.subr.bf16.mxu0 0
        %2043 = vmatpush1.bf16.xpose.msra.mxu0 0
        %2044 = vmatprep.subr.bf16.mxu0 0
        %2045 = vmatpush1.bf16.xpose.msra.mxu0 0
        %2046 = vmatprep.subr.bf16.mxu0 0
        %2047 = vmatpush1.bf16.xpose.msra.mxu0 0
        %2048 = vmatprep.subr.bf16.mxu0 0
        %2049 = vmatpush1.bf16.xpose.msra.mxu0 0
        %2050 = vmatprep.subr.bf16.mxu0 0
        %2051 = vmatpush1.bf16.xpose.msra.mxu0 0
        %2052 = vmatprep.subr.bf16.mxu0 0
        %2053 = vmatpush1.bf16.xpose.msra.mxu0 0
        %2054 = vmatprep.subr.bf16.mxu0 0
        %2055 = vmatpush1.bf16.xpose.msra.mxu0 0
        %2056 = vmatprep.subr.bf16.mxu0 0
        %2057 = vmatpush1.bf16.xpose.msra.mxu0 0
        %2058 = vmatprep.subr.bf16.mxu0 0
        %2059 = vmatpush1.bf16.xpose.msra.mxu0 0
        %2060 = vmatprep.subr.bf16.mxu0 0
        %2061 = vmatpush1.bf16.xpose.msra.mxu0 0
        %2062 = vmatprep.subr.bf16.mxu0 0
        %2063 = vmatpush1.bf16.xpose.msra.mxu0 0
        %2064 = vmatprep.subr.bf16.mxu0 0
        %2065 = vmatpush1.bf16.xpose.msra.mxu0 0
        %2066 = vmatprep.subr.bf16.mxu0 0
        %2067 = vmatpush1.bf16.xpose.msra.mxu0 0
        %2068 = vmatprep.subr.bf16.mxu0 0
        %2069 = vmatpush1.bf16.xpose.msra.mxu0 0
        %2070 = vmatprep.subr.bf16.mxu0 0
        %2071 = vmatpush1.bf16.xpose.msra.mxu0 0
        %2072 = vmatprep.mubr.bf16.mxu0 0
        %2073 = vmatmul.mubr.bf16.gmra.mrb[0].mxu0 %v2035
        %v2074 = vpop.f32.mrb[0].mxu0
        %v2075 = vadd.f32 %v954, %v2074
        %v2076 = vpop.f32.mrb[0].mxu0
        %v2077 = vpop.f32.mrb[0].mxu0
        %v2078 = vadd.f32 %v955, %v2077
        %v2079 = vpop.f32.mrb[0].mxu0
        %2080 = vdwg.mxu0
        %2081 = vrot.lane.b32.xlu0 %v1305, 32
        %v2082 = vpop.permute.xlu0 %2081
        %2083 = vrot.lane.b32.xlu0 %v1307, 32
        %v2084 = vpop.permute.xlu0 %2083
        %v2086 = vsel %vm1310, %v2082, 0
        %v2089 = vsel %vm1310, %v2084, 0
        %2091 = vmatprep.subr.bf16.mxu0 0
        %2092 = vmatpush1.bf16.xpose.msra.mxu0 %v2089
        %2093 = vmatprep.subr.bf16.mxu0 0
        %2094 = vmatpush1.bf16.xpose.msra.mxu0 0
        %2095 = vmatprep.subr.bf16.mxu0 0
        %2096 = vmatpush1.bf16.xpose.msra.mxu0 0
        %2097 = vmatprep.subr.bf16.mxu0 0
        %2098 = vmatpush1.bf16.xpose.msra.mxu0 0
        %2099 = vmatprep.subr.bf16.mxu0 0
        %2100 = vmatpush1.bf16.xpose.msra.mxu0 0
        %2101 = vmatprep.subr.bf16.mxu0 0
        %2102 = vmatpush1.bf16.xpose.msra.mxu0 0
        %2103 = vmatprep.subr.bf16.mxu0 0
        %2104 = vmatpush1.bf16.xpose.msra.mxu0 0
        %2105 = vmatprep.subr.bf16.mxu0 0
        %2106 = vmatpush1.bf16.xpose.msra.mxu0 0
        %2107 = vmatprep.subr.bf16.mxu0 0
        %2108 = vmatpush1.bf16.xpose.msra.mxu0 0
        %2109 = vmatprep.subr.bf16.mxu0 0
        %2110 = vmatpush1.bf16.xpose.msra.mxu0 0
        %2111 = vmatprep.subr.bf16.mxu0 0
        %2112 = vmatpush1.bf16.xpose.msra.mxu0 0
        %2113 = vmatprep.subr.bf16.mxu0 0
        %2114 = vmatpush1.bf16.xpose.msra.mxu0 0
        %2115 = vmatprep.subr.bf16.mxu0 0
        %2116 = vmatpush1.bf16.xpose.msra.mxu0 0
        %2117 = vmatprep.subr.bf16.mxu0 0
        %2118 = vmatpush1.bf16.xpose.msra.mxu0 0
        %2119 = vmatprep.subr.bf16.mxu0 0
        %2120 = vmatpush1.bf16.xpose.msra.mxu0 0
        %2121 = vmatprep.subr.bf16.mxu0 0
        %2122 = vmatpush1.bf16.xpose.msra.mxu0 0
        %2123 = vmatprep.mubr.bf16.mxu0 0
        %2124 = vmatmul.mubr.bf16.gmra.mrb[0].mxu0 %v2086
        %v2125 = vpop.f32.mrb[0].mxu0
        %v2126 = vadd.f32 %v954, %v2125
        %v2127 = vpop.f32.mrb[0].mxu0
        %v2128 = vpop.f32.mrb[0].mxu0
        %v2129 = vadd.f32 %v955, %v2128
        %v2130 = vpop.f32.mrb[0].mxu0
        %2131 = vdwg.mxu0
        %v2132 = vsel %vm1405, %v2075, -inf
        %2133 = vmax.xlane.f32.xlu0 %v2132
        %v2134 = vpop.xlane.xlu0 %2133
        %v2135 = vsel %vm1405, %v2078, -inf
        %2136 = vmax.xlane.f32.xlu0 %v2135
        %v2137 = vpop.xlane.xlu0 %2136
        %v2138 = vsel %vm1405, %v2126, -inf
        %2139 = vmax.xlane.f32.xlu0 %v2138
        %v2140 = vpop.xlane.xlu0 %2139
        %v2141 = vsel %vm1405, %v2129, -inf
        %2142 = vmax.xlane.f32.xlu0 %v2141
        %v2143 = vpop.xlane.xlu0 %2142
        %v2144 = vsub.f32 %v2075, %v2134
        %v2145 = vsub.f32 %v2078, %v2137
        %v2146 = vsub.f32 %v2126, %v2140
        %v2147 = vsub.f32 %v2129, %v2143
        %v2148 = vmul.f32 %v2144, 1.442695
        %v2149 = vpow.pop %v2148
        %v2150 = vmul.f32 %v2145, 1.442695
        %v2151 = vpow.pop %v2150
        %v2152 = vmul.f32 %v2146, 1.442695
        %v2153 = vpow.pop %v2152
        %v2154 = vmul.f32 %v2147, 1.442695
        %v2155 = vpow.pop %v2154
        %v2156 = vsel %vm1405, %v2149, 0.0
        %2157 = vadd.xlane.f32.xlu0 %v2156
        %v2158 = vpop.xlane.xlu0 %2157
        %v2159 = vsel %vm1405, %v2151, 0.0
        %2160 = vadd.xlane.f32.xlu0 %v2159
        %v2161 = vpop.xlane.xlu0 %2160
        %v2162 = vsel %vm1405, %v2153, 0.0
        %2163 = vadd.xlane.f32.xlu0 %v2162
        %v2164 = vpop.xlane.xlu0 %2163
        %v2165 = vsel %vm1405, %v2155, 0.0
        %2166 = vadd.xlane.f32.xlu0 %v2165
        %v2167 = vpop.xlane.xlu0 %2166
        %v2168 = vrcp.pop %v2158
        %v2169 = vrcp.pop %v2161
        %v2170 = vrcp.pop %v2164
        %v2171 = vrcp.pop %v2167
        %v2172 = vmul.f32 %v2149, %v2168
        %v2173 = vmul.f32 %v2151, %v2169
        %v2174 = vmul.f32 %v2153, %v2170
        %v2175 = vmul.f32 %v2155, %v2171
        %v2176 = vpack.c.bf16 %v2173, %v2172
        %v2177 = vpack.c.bf16 %v2175, %v2174
        %2178 = vrot.lane.b32.xlu0 %v1308, 32
        %v2179 = vpop.permute.xlu0 %2178
        %v2182 = vsel %vm1405, %v2176, 0
        %2184 = vmatprep.subr.bf16.mxu0 0
        %2185 = vmatpush1.bf16.msra.mxu0 %v2179
        %2186 = vmatprep.subr.bf16.mxu0 0
        %2187 = vmatpush1.bf16.msra.mxu0 0
        %2188 = vmatprep.subr.bf16.mxu0 0
        %2189 = vmatpush1.bf16.msra.mxu0 0
        %2190 = vmatprep.subr.bf16.mxu0 0
        %2191 = vmatpush1.bf16.msra.mxu0 0
        %2192 = vmatprep.subr.bf16.mxu0 0
        %2193 = vmatpush1.bf16.msra.mxu0 0
        %2194 = vmatprep.subr.bf16.mxu0 0
        %2195 = vmatpush1.bf16.msra.mxu0 0
        %2196 = vmatprep.subr.bf16.mxu0 0
        %2197 = vmatpush1.bf16.msra.mxu0 0
        %2198 = vmatprep.subr.bf16.mxu0 0
        %2199 = vmatpush1.bf16.msra.mxu0 0
        %2200 = vmatprep.subr.bf16.mxu0 0
        %2201 = vmatpush1.bf16.msra.mxu0 0
        %2202 = vmatprep.subr.bf16.mxu0 0
        %2203 = vmatpush1.bf16.msra.mxu0 0
        %2204 = vmatprep.subr.bf16.mxu0 0
        %2205 = vmatpush1.bf16.msra.mxu0 0
        %2206 = vmatprep.subr.bf16.mxu0 0
        %2207 = vmatpush1.bf16.msra.mxu0 0
        %2208 = vmatprep.subr.bf16.mxu0 0
        %2209 = vmatpush1.bf16.msra.mxu0 0
        %2210 = vmatprep.subr.bf16.mxu0 0
        %2211 = vmatpush1.bf16.msra.mxu0 0
        %2212 = vmatprep.subr.bf16.mxu0 0
        %2213 = vmatpush1.bf16.msra.mxu0 0
        %2214 = vmatprep.subr.bf16.mxu0 0
        %2215 = vmatpush1.bf16.msra.mxu0 0
        %2216 = vmatprep.mubr.bf16.mxu0 0
        %2217 = vmatmul.mubr.bf16.gmra.mrb[0].mxu0 %v2182
        %v2218 = vpop.f32.mrb[0].mxu0
        %v2219 = vadd.f32 0.0, %v2218
        %v2220 = vpop.f32.mrb[0].mxu0
        %v2221 = vpop.f32.mrb[0].mxu0
        %v2222 = vadd.f32 0.0, %v2221
        %v2223 = vpop.f32.mrb[0].mxu0
        %2224 = vdwg.mxu0
        %2225 = vrot.lane.b32.xlu0 %v1309, 32
        %v2226 = vpop.permute.xlu0 %2225
        %v2229 = vsel %vm1405, %v2177, 0
        %2231 = vmatprep.subr.bf16.mxu0 0
        %2232 = vmatpush1.bf16.msra.mxu0 %v2226
        %2233 = vmatprep.subr.bf16.mxu0 0
        %2234 = vmatpush1.bf16.msra.mxu0 0
        %2235 = vmatprep.subr.bf16.mxu0 0
        %2236 = vmatpush1.bf16.msra.mxu0 0
        %2237 = vmatprep.subr.bf16.mxu0 0
        %2238 = vmatpush1.bf16.msra.mxu0 0
        %2239 = vmatprep.subr.bf16.mxu0 0
        %2240 = vmatpush1.bf16.msra.mxu0 0
        %2241 = vmatprep.subr.bf16.mxu0 0
        %2242 = vmatpush1.bf16.msra.mxu0 0
        %2243 = vmatprep.subr.bf16.mxu0 0
        %2244 = vmatpush1.bf16.msra.mxu0 0
        %2245 = vmatprep.subr.bf16.mxu0 0
        %2246 = vmatpush1.bf16.msra.mxu0 0
        %2247 = vmatprep.subr.bf16.mxu0 0
        %2248 = vmatpush1.bf16.msra.mxu0 0
        %2249 = vmatprep.subr.bf16.mxu0 0
        %2250 = vmatpush1.bf16.msra.mxu0 0
        %2251 = vmatprep.subr.bf16.mxu0 0
        %2252 = vmatpush1.bf16.msra.mxu0 0
        %2253 = vmatprep.subr.bf16.mxu0 0
        %2254 = vmatpush1.bf16.msra.mxu0 0
        %2255 = vmatprep.subr.bf16.mxu0 0
        %2256 = vmatpush1.bf16.msra.mxu0 0
        %2257 = vmatprep.subr.bf16.mxu0 0
        %2258 = vmatpush1.bf16.msra.mxu0 0
        %2259 = vmatprep.subr.bf16.mxu0 0
        %2260 = vmatpush1.bf16.msra.mxu0 0
        %2261 = vmatprep.subr.bf16.mxu0 0
        %2262 = vmatpush1.bf16.msra.mxu0 0
        %2263 = vmatprep.mubr.bf16.mxu0 0
        %2264 = vmatmul.mubr.bf16.gmra.mrb[0].mxu0 %v2229
        %v2265 = vpop.f32.mrb[0].mxu0
        %v2266 = vadd.f32 0.0, %v2265
        %v2267 = vpop.f32.mrb[0].mxu0
        %v2268 = vpop.f32.mrb[0].mxu0
        %v2269 = vadd.f32 0.0, %v2268
        %v2270 = vpop.f32.mrb[0].mxu0
        %2271 = vdwg.mxu0
        %2276 = vrot.lane.b32.xlu0 %v1734, 32
        %v2277 = vpop.permute.xlu0 %2276
        %2278 = vrot.lane.b32.xlu0 %v1737, 32
        %v2279 = vpop.permute.xlu0 %2278
        %2280 = vrot.lane.b32.xlu0 %v1782, 32
        %v2281 = vpop.permute.xlu0 %2280
        %2282 = vrot.lane.b32.xlu0 %v1785, 32
        %v2283 = vpop.permute.xlu0 %2282
        %2292 = vrot.lane.b32.xlu0 %v1977, 64
        %v2293 = vpop.permute.xlu0 %2292
        %2294 = vrot.lane.b32.xlu0 %v1980, 64
        %v2295 = vpop.permute.xlu0 %2294
        %2296 = vrot.lane.b32.xlu0 %v2024, 64
        %v2297 = vpop.permute.xlu0 %2296
        %2298 = vrot.lane.b32.xlu0 %v2027, 64
        %v2299 = vpop.permute.xlu0 %2298
        %2308 = vrot.lane.b32.xlu0 %v2219, 96
        %v2309 = vpop.permute.xlu0 %2308
        %2310 = vrot.lane.b32.xlu0 %v2222, 96
        %v2311 = vpop.permute.xlu0 %2310
        %2312 = vrot.lane.b32.xlu0 %v2266, 96
        %v2313 = vpop.permute.xlu0 %2312
        %2314 = vrot.lane.b32.xlu0 %v2269, 96
        %v2315 = vpop.permute.xlu0 %2314
        %v2320 = vsel %vm1310, %v1490, %v2277
        %v2321 = vsel %vm1310, %v1493, %v2279
        %v2322 = vsel %vm1310, %v1534, %v2281
        %v2323 = vsel %vm1310, %v1537, %v2283
        %vm2324 = vcmask 523264
        %v2325 = vsel %vm2324, %v2320, %v2293
        %v2326 = vsel %vm2324, %v2321, %v2295
        %v2327 = vsel %vm2324, %v2322, %v2297
        %v2328 = vsel %vm2324, %v2323, %v2299
        %vm2329 = vcmask 785408
        %v2330 = vsel %vm2329, %v2325, %v2309
        %v2331 = vsel %vm2329, %v2326, %v2311
        %v2332 = vsel %vm2329, %v2327, %v2313
        %v2333 = vsel %vm2329, %v2328, %v2315
        %v2334 = vpack.c.bf16 %v2331, %v2330
        %v2335 = vpack.c.bf16 %v2333, %v2332
        %v2336 = vld [vmem:[%s765] sm:$0xf]
        %v2337 = vld [vmem:[%s765 + $0x4] sm:$0xf]
        %v2338 = vld [vmem:[%s765 + $0x8] sm:$0xf]
        %v2339 = vld [vmem:[%s765 + $0xc] sm:$0xf]
        %v2340 = vld [vmem:[%s765 + $0x10] sm:$0xf]
        %v2341 = vld [vmem:[%s765 + $0x14] sm:$0xf]
        %v2342 = vld [vmem:[%s765 + $0x18] sm:$0xf]
        %v2343 = vld [vmem:[%s765 + $0x1c] sm:$0xf]
        %v2344 = vld [vmem:[%s765 + $0x20] sm:$0xf]
        %v2345 = vld [vmem:[%s765 + $0x24] sm:$0xf]
        %v2346 = vld [vmem:[%s765 + $0x28] sm:$0xf]
        %v2347 = vld [vmem:[%s765 + $0x2c] sm:$0xf]
        %v2348 = vld [vmem:[%s765 + $0x30] sm:$0xf]
        %v2349 = vld [vmem:[%s765 + $0x34] sm:$0xf]
        %v2350 = vld [vmem:[%s765 + $0x38] sm:$0xf]
        %v2351 = vld [vmem:[%s765 + $0x3c] sm:$0xf]
        %v2352 = vld [vmem:[%s773] sm:$0x1]
        %v2354 = vlaneseq
        %v2355 = vshrl.u32 %v2354, 7
        %v2356 = vsub.s32 0, %v2355
        %v2357 = vrot.slane %v2352, %v2356
        %v2375 = vunpack.c.l.b16 %v2336
        %v2376 = vunpack.c.l.b16 %v2337
        %v2377 = vunpack.c.l.b16 %v2338
        %v2378 = vunpack.c.l.b16 %v2339
        %v2379 = vunpack.c.l.b16 %v2340
        %v2380 = vunpack.c.l.b16 %v2341
        %v2381 = vunpack.c.l.b16 %v2342
        %v2382 = vunpack.c.l.b16 %v2343
        %v2383 = vunpack.c.l.b16 %v2344
        %v2384 = vunpack.c.l.b16 %v2345
        %v2385 = vunpack.c.l.b16 %v2346
        %v2386 = vunpack.c.l.b16 %v2347
        %v2387 = vunpack.c.l.b16 %v2348
        %v2388 = vunpack.c.l.b16 %v2349
        %v2389 = vunpack.c.l.b16 %v2350
        %v2390 = vunpack.c.l.b16 %v2351
        %v2391 = vpack.c.b16 %v2376, %v2375
        %v2392 = vpack.c.b16 %v2378, %v2377
        %v2393 = vpack.c.b16 %v2380, %v2379
        %v2394 = vpack.c.b16 %v2382, %v2381
        %v2395 = vpack.c.b16 %v2384, %v2383
        %v2396 = vpack.c.b16 %v2386, %v2385
        %v2397 = vpack.c.b16 %v2388, %v2387
        %v2398 = vpack.c.b16 %v2390, %v2389
        %2407 = vmatprep.subr.bf16.mxu0 0
        %2408 = vmatpush1.bf16.msra.mxu0 %v2391
        %2409 = vmatprep.subr.bf16.mxu0 0
        %2410 = vmatpush1.bf16.msra.mxu0 %v2392
        %2411 = vmatprep.subr.bf16.mxu0 0
        %2412 = vmatpush1.bf16.msra.mxu0 %v2393
        %2413 = vmatprep.subr.bf16.mxu0 0
        %2414 = vmatpush1.bf16.msra.mxu0 %v2394
        %2415 = vmatprep.subr.bf16.mxu0 0
        %2416 = vmatpush1.bf16.msra.mxu0 %v2395
        %2417 = vmatprep.subr.bf16.mxu0 0
        %2418 = vmatpush1.bf16.msra.mxu0 %v2396
        %2419 = vmatprep.subr.bf16.mxu0 0
        %2420 = vmatpush1.bf16.msra.mxu0 %v2397
        %2421 = vmatprep.subr.bf16.mxu0 0
        %2422 = vmatpush1.bf16.msra.mxu0 %v2398
        %2423 = vmatprep.subr.bf16.mxu0 0
        %2424 = vmatpush1.bf16.msra.mxu0 0
        %2425 = vmatprep.subr.bf16.mxu0 0
        %2426 = vmatpush1.bf16.msra.mxu0 0
        %2427 = vmatprep.subr.bf16.mxu0 0
        %2428 = vmatpush1.bf16.msra.mxu0 0
        %2429 = vmatprep.subr.bf16.mxu0 0
        %2430 = vmatpush1.bf16.msra.mxu0 0
        %2431 = vmatprep.subr.bf16.mxu0 0
        %2432 = vmatpush1.bf16.msra.mxu0 0
        %2433 = vmatprep.subr.bf16.mxu0 0
        %2434 = vmatpush1.bf16.msra.mxu0 0
        %2435 = vmatprep.subr.bf16.mxu0 0
        %2436 = vmatpush1.bf16.msra.mxu0 0
        %2437 = vmatprep.subr.bf16.mxu0 0
        %2438 = vmatpush1.bf16.msra.mxu0 0
        %2439 = vmatprep.mubr.bf16.mxu0 0
        %2440 = vmatmul.mubr.bf16.gmra.mrb[0].mxu0 %v2334
        %v2441 = vpop.f32.mrb[0].mxu0
        %v2442 = vadd.f32 %v2357, %v2441
        %v2443 = vpop.f32.mrb[0].mxu0
        %v2444 = vpop.f32.mrb[0].mxu0
        %v2445 = vadd.f32 %v2357, %v2444
        %v2446 = vpop.f32.mrb[0].mxu0
        %2447 = vmatprep.mubr.bf16.mxu0 0
        %2448 = vmatmul.mubr.bf16.gmra.mrb[0].mxu0 %v2335
        %v2449 = vpop.f32.mrb[0].mxu0
        %v2450 = vadd.f32 %v2357, %v2449
        %v2451 = vpop.f32.mrb[0].mxu0
        %v2452 = vpop.f32.mrb[0].mxu0
        %v2453 = vadd.f32 %v2357, %v2452
        %v2454 = vpop.f32.mrb[0].mxu0
        %2455 = vdwg.mxu0
        %v2456 = vadd.f32 %v950, %v2442
        %v2457 = vadd.f32 %v951, %v2445
        %v2458 = vadd.f32 %v952, %v2450
        %v2459 = vadd.f32 %v953, %v2453
        %v2460 = vld [vmem:[%s781] sm:$0x1]
        %v2461 = vld [vmem:[%s789] sm:$0x1]
        %2462 = vadd.xlane.f32.xlu0 %v2456
        %v2463 = vpop.xlane.xlu0 %2462
        %2464 = vadd.xlane.f32.xlu0 %v2457
        %v2465 = vpop.xlane.xlu0 %2464
        %2466 = vadd.xlane.f32.xlu0 %v2458
        %v2467 = vpop.xlane.xlu0 %2466
        %2468 = vadd.xlane.f32.xlu0 %v2459
        %v2469 = vpop.xlane.xlu0 %2468
        %v2470 = vmul.f32 %v2463, %v966
        %v2471 = vmul.f32 %v2465, %v966
        %v2472 = vmul.f32 %v2467, %v966
        %v2473 = vmul.f32 %v2469, %v966
        %v2474 = vsub.f32 %v2456, %v2470
        %v2475 = vsub.f32 %v2457, %v2471
        %v2476 = vsub.f32 %v2458, %v2472
        %v2477 = vsub.f32 %v2459, %v2473
        %v2478 = vmul.f32 %v2474, %v2474
        %v2479 = vmul.f32 %v2475, %v2475
        %v2480 = vmul.f32 %v2476, %v2476
        %v2481 = vmul.f32 %v2477, %v2477
        %2482 = vadd.xlane.f32.xlu0 %v2478
        %v2483 = vpop.xlane.xlu0 %2482
        %2484 = vadd.xlane.f32.xlu0 %v2479
        %v2485 = vpop.xlane.xlu0 %2484
        %2486 = vadd.xlane.f32.xlu0 %v2480
        %v2487 = vpop.xlane.xlu0 %2486
        %2488 = vadd.xlane.f32.xlu0 %v2481
        %v2489 = vpop.xlane.xlu0 %2488
        %v2490 = vmul.f32 %v2483, %v966
        %v2491 = vmul.f32 %v2485, %v966
        %v2492 = vmul.f32 %v2487, %v966
        %v2493 = vmul.f32 %v2489, %v966
        %v2494 = vadd.f32 %v2490, 1e-05
        %v2495 = vadd.f32 %v2491, 1e-05
        %v2496 = vadd.f32 %v2492, 1e-05
        %v2497 = vadd.f32 %v2493, 1e-05
        %v2498 = vrsqrt.pop %v2494
        %v2499 = vrsqrt.pop %v2495
        %v2500 = vrsqrt.pop %v2496
        %v2501 = vrsqrt.pop %v2497
        %v2502 = vmul.f32 %v2474, %v2498
        %v2503 = vmul.f32 %v2475, %v2499
        %v2504 = vmul.f32 %v2476, %v2500
        %v2505 = vmul.f32 %v2477, %v2501
        %v2507 = vlaneseq
        %v2508 = vshrl.u32 %v2507, 7
        %v2509 = vsub.s32 0, %v2508
        %v2510 = vrot.slane %v2460, %v2509
        %v2512 = vmul.f32 %v2502, %v2510
        %v2513 = vmul.f32 %v2503, %v2510
        %v2514 = vmul.f32 %v2504, %v2510
        %v2515 = vmul.f32 %v2505, %v2510
        %v2517 = vlaneseq
        %v2518 = vshrl.u32 %v2517, 7
        %v2519 = vsub.s32 0, %v2518
        %v2520 = vrot.slane %v2461, %v2519
        %v2522 = vadd.f32 %v2512, %v2520
        %v2523 = vadd.f32 %v2513, %v2520
        %v2524 = vadd.f32 %v2514, %v2520
        %v2525 = vadd.f32 %v2515, %v2520
        %v2526 = vpack.c.bf16 %v2523, %v2522
        %v2527 = vpack.c.bf16 %v2525, %v2524
        %v2528 = vld [vmem:[%s798] sm:$0xff]
        %v2529 = vld [vmem:[%s798 + $0x8] sm:$0xff]
        %v2530 = vld [vmem:[%s798 + $0x10] sm:$0xff]
        %v2531 = vld [vmem:[%s798 + $0x18] sm:$0xff]
        %v2532 = vld [vmem:[%s798 + $0x20] sm:$0xff]
        %v2533 = vld [vmem:[%s798 + $0x28] sm:$0xff]
        %v2534 = vld [vmem:[%s798 + $0x30] sm:$0xff]
        %v2535 = vld [vmem:[%s798 + $0x38] sm:$0xff]
        %v2536 = vld [vmem:[%s798 + $0x40] sm:$0xff]
        %v2537 = vld [vmem:[%s798 + $0x48] sm:$0xff]
        %v2538 = vld [vmem:[%s798 + $0x50] sm:$0xff]
        %v2539 = vld [vmem:[%s798 + $0x58] sm:$0xff]
        %v2540 = vld [vmem:[%s798 + $0x60] sm:$0xff]
        %v2541 = vld [vmem:[%s798 + $0x68] sm:$0xff]
        %v2542 = vld [vmem:[%s798 + $0x70] sm:$0xff]
        %v2543 = vld [vmem:[%s798 + $0x78] sm:$0xff]
        %v2544 = vld [vmem:[%s798 + $0x80] sm:$0xff]
        %v2545 = vld [vmem:[%s798 + $0x88] sm:$0xff]
        %v2546 = vld [vmem:[%s798 + $0x90] sm:$0xff]
        %v2547 = vld [vmem:[%s798 + $0x98] sm:$0xff]
        %v2548 = vld [vmem:[%s798 + $0xa0] sm:$0xff]
        %v2549 = vld [vmem:[%s798 + $0xa8] sm:$0xff]
        %v2550 = vld [vmem:[%s798 + $0xb0] sm:$0xff]
        %v2551 = vld [vmem:[%s798 + $0xb8] sm:$0xff]
        %v2552 = vld [vmem:[%s798 + $0xc0] sm:$0xff]
        %v2553 = vld [vmem:[%s798 + $0xc8] sm:$0xff]
        %v2554 = vld [vmem:[%s798 + $0xd0] sm:$0xff]
        %v2555 = vld [vmem:[%s798 + $0xd8] sm:$0xff]
        %v2556 = vld [vmem:[%s798 + $0xe0] sm:$0xff]
        %v2557 = vld [vmem:[%s798 + $0xe8] sm:$0xff]
        %v2558 = vld [vmem:[%s798 + $0xf0] sm:$0xff]
        %v2559 = vld [vmem:[%s798 + $0xf8] sm:$0xff]
        %v2560 = vld [vmem:[%s807] sm:$0xf]
        %v2562 = vlaneseq
        %v2563 = vshrl.u32 %v2562, 7
        %v2564 = vsub.s32 0, %v2563
        %v2565 = vrot.slane %v2560, %v2564
        %v2566 = vlaneseq
        %v2567 = vshrl.u32 %v2566, 7
        %v2568 = vsub.s32 1, %v2567
        %v2569 = vrot.slane %v2560, %v2568
        %v2570 = vlaneseq
        %v2571 = vshrl.u32 %v2570, 7
        %v2572 = vsub.s32 2, %v2571
        %v2573 = vrot.slane %v2560, %v2572
        %v2574 = vlaneseq
        %v2575 = vshrl.u32 %v2574, 7
        %v2576 = vsub.s32 3, %v2575
        %v2577 = vrot.slane %v2560, %v2576
        %v2614 = vunpack.c.l.b16 %v2528
        %v2615 = vunpack.c.h.b16 %v2528
        %v2616 = vunpack.c.l.b16 %v2529
        %v2617 = vunpack.c.h.b16 %v2529
        %v2618 = vunpack.c.l.b16 %v2530
        %v2619 = vunpack.c.h.b16 %v2530
        %v2620 = vunpack.c.l.b16 %v2531
        %v2621 = vunpack.c.h.b16 %v2531
        %v2622 = vunpack.c.l.b16 %v2532
        %v2623 = vunpack.c.h.b16 %v2532
        %v2624 = vunpack.c.l.b16 %v2533
        %v2625 = vunpack.c.h.b16 %v2533
        %v2626 = vunpack.c.l.b16 %v2534
        %v2627 = vunpack.c.h.b16 %v2534
        %v2628 = vunpack.c.l.b16 %v2535
        %v2629 = vunpack.c.h.b16 %v2535
        %v2630 = vunpack.c.l.b16 %v2536
        %v2631 = vunpack.c.h.b16 %v2536
        %v2632 = vunpack.c.l.b16 %v2537
        %v2633 = vunpack.c.h.b16 %v2537
        %v2634 = vunpack.c.l.b16 %v2538
        %v2635 = vunpack.c.h.b16 %v2538
        %v2636 = vunpack.c.l.b16 %v2539
        %v2637 = vunpack.c.h.b16 %v2539
        %v2638 = vunpack.c.l.b16 %v2540
        %v2639 = vunpack.c.h.b16 %v2540
        %v2640 = vunpack.c.l.b16 %v2541
        %v2641 = vunpack.c.h.b16 %v2541
        %v2642 = vunpack.c.l.b16 %v2542
        %v2643 = vunpack.c.h.b16 %v2542
        %v2644 = vunpack.c.l.b16 %v2543
        %v2645 = vunpack.c.h.b16 %v2543
        %v2646 = vunpack.c.l.b16 %v2544
        %v2647 = vunpack.c.h.b16 %v2544
        %v2648 = vunpack.c.l.b16 %v2545
        %v2649 = vunpack.c.h.b16 %v2545
        %v2650 = vunpack.c.l.b16 %v2546
        %v2651 = vunpack.c.h.b16 %v2546
        %v2652 = vunpack.c.l.b16 %v2547
        %v2653 = vunpack.c.h.b16 %v2547
        %v2654 = vunpack.c.l.b16 %v2548
        %v2655 = vunpack.c.h.b16 %v2548
        %v2656 = vunpack.c.l.b16 %v2549
        %v2657 = vunpack.c.h.b16 %v2549
        %v2658 = vunpack.c.l.b16 %v2550
        %v2659 = vunpack.c.h.b16 %v2550
        %v2660 = vunpack.c.l.b16 %v2551
        %v2661 = vunpack.c.h.b16 %v2551
        %v2662 = vunpack.c.l.b16 %v2552
        %v2663 = vunpack.c.h.b16 %v2552
        %v2664 = vunpack.c.l.b16 %v2553
        %v2665 = vunpack.c.h.b16 %v2553
        %v2666 = vunpack.c.l.b16 %v2554
        %v2667 = vunpack.c.h.b16 %v2554
        %v2668 = vunpack.c.l.b16 %v2555
        %v2669 = vunpack.c.h.b16 %v2555
        %v2670 = vunpack.c.l.b16 %v2556
        %v2671 = vunpack.c.h.b16 %v2556
        %v2672 = vunpack.c.l.b16 %v2557
        %v2673 = vunpack.c.h.b16 %v2557
        %v2674 = vunpack.c.l.b16 %v2558
        %v2675 = vunpack.c.h.b16 %v2558
        %v2676 = vunpack.c.l.b16 %v2559
        %v2677 = vunpack.c.h.b16 %v2559
        %v2678 = vpack.c.b16 %v2618, %v2614
        %v2679 = vpack.c.b16 %v2619, %v2615
        %v2680 = vpack.c.b16 %v2620, %v2616
        %v2681 = vpack.c.b16 %v2621, %v2617
        %v2682 = vpack.c.b16 %v2626, %v2622
        %v2683 = vpack.c.b16 %v2627, %v2623
        %v2684 = vpack.c.b16 %v2628, %v2624
        %v2685 = vpack.c.b16 %v2629, %v2625
        %v2686 = vpack.c.b16 %v2634, %v2630
        %v2687 = vpack.c.b16 %v2635, %v2631
        %v2688 = vpack.c.b16 %v2636, %v2632
        %v2689 = vpack.c.b16 %v2637, %v2633
        %v2690 = vpack.c.b16 %v2642, %v2638
        %v2691 = vpack.c.b16 %v2643, %v2639
        %v2692 = vpack.c.b16 %v2644, %v2640
        %v2693 = vpack.c.b16 %v2645, %v2641
        %v2694 = vpack.c.b16 %v2650, %v2646
        %v2695 = vpack.c.b16 %v2651, %v2647
        %v2696 = vpack.c.b16 %v2652, %v2648
        %v2697 = vpack.c.b16 %v2653, %v2649
        %v2698 = vpack.c.b16 %v2658, %v2654
        %v2699 = vpack.c.b16 %v2659, %v2655
        %v2700 = vpack.c.b16 %v2660, %v2656
        %v2701 = vpack.c.b16 %v2661, %v2657
        %v2702 = vpack.c.b16 %v2666, %v2662
        %v2703 = vpack.c.b16 %v2667, %v2663
        %v2704 = vpack.c.b16 %v2668, %v2664
        %v2705 = vpack.c.b16 %v2669, %v2665
        %v2706 = vpack.c.b16 %v2674, %v2670
        %v2707 = vpack.c.b16 %v2675, %v2671
        %v2708 = vpack.c.b16 %v2676, %v2672
        %v2709 = vpack.c.b16 %v2677, %v2673
        %2742 = vmatprep.subr.bf16.mxu0 %v2679
        %2743 = vmatpush1.bf16.msra.mxu0 %v2678
        %2744 = vmatprep.subr.bf16.mxu0 %v2683
        %2745 = vmatpush1.bf16.msra.mxu0 %v2682
        %2746 = vmatprep.subr.bf16.mxu0 %v2687
        %2747 = vmatpush1.bf16.msra.mxu0 %v2686
        %2748 = vmatprep.subr.bf16.mxu0 %v2691
        %2749 = vmatpush1.bf16.msra.mxu0 %v2690
        %2750 = vmatprep.subr.bf16.mxu0 %v2695
        %2751 = vmatpush1.bf16.msra.mxu0 %v2694
        %2752 = vmatprep.subr.bf16.mxu0 %v2699
        %2753 = vmatpush1.bf16.msra.mxu0 %v2698
        %2754 = vmatprep.subr.bf16.mxu0 %v2703
        %2755 = vmatpush1.bf16.msra.mxu0 %v2702
        %2756 = vmatprep.subr.bf16.mxu0 %v2707
        %2757 = vmatpush1.bf16.msra.mxu0 %v2706
        %2758 = vmatprep.subr.bf16.mxu0 0
        %2759 = vmatpush1.bf16.msra.mxu0 0
        %2760 = vmatprep.subr.bf16.mxu0 0
        %2761 = vmatpush1.bf16.msra.mxu0 0
        %2762 = vmatprep.subr.bf16.mxu0 0
        %2763 = vmatpush1.bf16.msra.mxu0 0
        %2764 = vmatprep.subr.bf16.mxu0 0
        %2765 = vmatpush1.bf16.msra.mxu0 0
        %2766 = vmatprep.subr.bf16.mxu0 0
        %2767 = vmatpush1.bf16.msra.mxu0 0
        %2768 = vmatprep.subr.bf16.mxu0 0
        %2769 = vmatpush1.bf16.msra.mxu0 0
        %2770 = vmatprep.subr.bf16.mxu0 0
        %2771 = vmatpush1.bf16.msra.mxu0 0
        %2772 = vmatprep.subr.bf16.mxu0 0
        %2773 = vmatpush1.bf16.msra.mxu0 0
        %2774 = vmatprep.mubr.bf16.mxu0 0
        %2775 = vmatmul.mubr.bf16.gmra.mrb[0].mxu0 %v2526
        %v2776 = vpop.f32.mrb[0].mxu0
        %v2777 = vadd.f32 %v2565, %v2776
        %v2778 = vpop.f32.mrb[0].mxu0
        %v2779 = vadd.f32 %v2569, %v2778
        %v2780 = vpop.f32.mrb[0].mxu0
        %v2781 = vadd.f32 %v2565, %v2780
        %v2782 = vpop.f32.mrb[0].mxu0
        %v2783 = vadd.f32 %v2569, %v2782
        %2784 = vmatprep.mubr.bf16.mxu0 0
        %2785 = vmatmul.mubr.bf16.gmra.mrb[0].mxu0 %v2527
        %v2786 = vpop.f32.mrb[0].mxu0
        %v2787 = vadd.f32 %v2565, %v2786
        %v2788 = vpop.f32.mrb[0].mxu0
        %v2789 = vadd.f32 %v2569, %v2788
        %v2790 = vpop.f32.mrb[0].mxu0
        %v2791 = vadd.f32 %v2565, %v2790
        %v2792 = vpop.f32.mrb[0].mxu0
        %v2793 = vadd.f32 %v2569, %v2792
        %2794 = vdwg.mxu0
        %2795 = vmatprep.subr.bf16.mxu0 %v2681
        %2796 = vmatpush1.bf16.msra.mxu0 %v2680
        %2797 = vmatprep.subr.bf16.mxu0 %v2685
        %2798 = vmatpush1.bf16.msra.mxu0 %v2684
        %2799 = vmatprep.subr.bf16.mxu0 %v2689
        %2800 = vmatpush1.bf16.msra.mxu0 %v2688
        %2801 = vmatprep.subr.bf16.mxu0 %v2693
        %2802 = vmatpush1.bf16.msra.mxu0 %v2692
        %2803 = vmatprep.subr.bf16.mxu0 %v2697
        %2804 = vmatpush1.bf16.msra.mxu0 %v2696
        %2805 = vmatprep.subr.bf16.mxu0 %v2701
        %2806 = vmatpush1.bf16.msra.mxu0 %v2700
        %2807 = vmatprep.subr.bf16.mxu0 %v2705
        %2808 = vmatpush1.bf16.msra.mxu0 %v2704
        %2809 = vmatprep.subr.bf16.mxu0 %v2709
        %2810 = vmatpush1.bf16.msra.mxu0 %v2708
        %2811 = vmatprep.subr.bf16.mxu0 0
        %2812 = vmatpush1.bf16.msra.mxu0 0
        %2813 = vmatprep.subr.bf16.mxu0 0
        %2814 = vmatpush1.bf16.msra.mxu0 0
        %2815 = vmatprep.subr.bf16.mxu0 0
        %2816 = vmatpush1.bf16.msra.mxu0 0
        %2817 = vmatprep.subr.bf16.mxu0 0
        %2818 = vmatpush1.bf16.msra.mxu0 0
        %2819 = vmatprep.subr.bf16.mxu0 0
        %2820 = vmatpush1.bf16.msra.mxu0 0
        %2821 = vmatprep.subr.bf16.mxu0 0
        %2822 = vmatpush1.bf16.msra.mxu0 0
        %2823 = vmatprep.subr.bf16.mxu0 0
        %2824 = vmatpush1.bf16.msra.mxu0 0
        %2825 = vmatprep.subr.bf16.mxu0 0
        %2826 = vmatpush1.bf16.msra.mxu0 0
        %2827 = vmatprep.mubr.bf16.mxu0 0
        %2828 = vmatmul.mubr.bf16.gmra.mrb[0].mxu0 %v2526
        %v2829 = vpop.f32.mrb[0].mxu0
        %v2830 = vadd.f32 %v2573, %v2829
        %v2831 = vpop.f32.mrb[0].mxu0
        %v2832 = vadd.f32 %v2577, %v2831
        %v2833 = vpop.f32.mrb[0].mxu0
        %v2834 = vadd.f32 %v2573, %v2833
        %v2835 = vpop.f32.mrb[0].mxu0
        %v2836 = vadd.f32 %v2577, %v2835
        %2837 = vmatprep.mubr.bf16.mxu0 0
        %2838 = vmatmul.mubr.bf16.gmra.mrb[0].mxu0 %v2527
        %v2839 = vpop.f32.mrb[0].mxu0
        %v2840 = vadd.f32 %v2573, %v2839
        %v2841 = vpop.f32.mrb[0].mxu0
        %v2842 = vadd.f32 %v2577, %v2841
        %v2843 = vpop.f32.mrb[0].mxu0
        %v2844 = vadd.f32 %v2573, %v2843
        %v2845 = vpop.f32.mrb[0].mxu0
        %v2846 = vadd.f32 %v2577, %v2845
        %2847 = vdwg.mxu0
        %v2848 = vpack.c.bf16 %v2781, %v2777
        %v2849 = vpack.c.bf16 %v2783, %v2779
        %v2850 = vpack.c.bf16 %v2834, %v2830
        %v2851 = vpack.c.bf16 %v2836, %v2832
        %v2852 = vpack.c.bf16 %v2791, %v2787
        %v2853 = vpack.c.bf16 %v2793, %v2789
        %v2854 = vpack.c.bf16 %v2844, %v2840
        %v2855 = vpack.c.bf16 %v2846, %v2842
        %v2856 = vmul.bf16 %v2848, 1071267802
        %v2857 = vmul.bf16 %v2849, 1071267802
        %v2858 = vmul.bf16 %v2850, 1071267802
        %v2859 = vmul.bf16 %v2851, 1071267802
        %v2860 = vmul.bf16 %v2852, 1071267802
        %v2861 = vmul.bf16 %v2853, 1071267802
        %v2862 = vmul.bf16 %v2854, 1071267802
        %v2863 = vmul.bf16 %v2855, 1071267802
        %v2864 = vxor.u32 %v2856, 2147516416
        %v2865 = vxor.u32 %v2857, 2147516416
        %v2866 = vxor.u32 %v2858, 2147516416
        %v2867 = vxor.u32 %v2859, 2147516416
        %v2868 = vxor.u32 %v2860, 2147516416
        %v2869 = vxor.u32 %v2861, 2147516416
        %v2870 = vxor.u32 %v2862, 2147516416
        %v2871 = vxor.u32 %v2863, 2147516416
        %v2873 = vmul.bf16 %v2864, 1069105081
        %v2874 = vpow.bf16.pop %v2873
        %v2876 = vmul.bf16 %v2865, 1069105081
        %v2877 = vpow.bf16.pop %v2876
        %v2879 = vmul.bf16 %v2866, 1069105081
        %v2880 = vpow.bf16.pop %v2879
        %v2882 = vmul.bf16 %v2867, 1069105081
        %v2883 = vpow.bf16.pop %v2882
        %v2885 = vmul.bf16 %v2868, 1069105081
        %v2886 = vpow.bf16.pop %v2885
        %v2888 = vmul.bf16 %v2869, 1069105081
        %v2889 = vpow.bf16.pop %v2888
        %v2891 = vmul.bf16 %v2870, 1069105081
        %v2892 = vpow.bf16.pop %v2891
        %v2894 = vmul.bf16 %v2871, 1069105081
        %v2895 = vpow.bf16.pop %v2894
        %v2896 = vadd.bf16 %v2874, 1065369472
        %v2897 = vadd.bf16 %v2877, 1065369472
        %v2898 = vadd.bf16 %v2880, 1065369472
        %v2899 = vadd.bf16 %v2883, 1065369472
        %v2900 = vadd.bf16 %v2886, 1065369472
        %v2901 = vadd.bf16 %v2889, 1065369472
        %v2902 = vadd.bf16 %v2892, 1065369472
        %v2903 = vadd.bf16 %v2895, 1065369472
        %v2904 = vrcp.bf16.pop %v2896
        %v2905 = vmul.bf16 1065369472, %v2904
        %v2906 = vrcp.bf16.pop %v2897
        %v2907 = vmul.bf16 1065369472, %v2906
        %v2908 = vrcp.bf16.pop %v2898
        %v2909 = vmul.bf16 1065369472, %v2908
        %v2910 = vrcp.bf16.pop %v2899
        %v2911 = vmul.bf16 1065369472, %v2910
        %v2912 = vrcp.bf16.pop %v2900
        %v2913 = vmul.bf16 1065369472, %v2912
        %v2914 = vrcp.bf16.pop %v2901
        %v2915 = vmul.bf16 1065369472, %v2914
        %v2916 = vrcp.bf16.pop %v2902
        %v2917 = vmul.bf16 1065369472, %v2916
        %v2918 = vrcp.bf16.pop %v2903
        %v2919 = vmul.bf16 1065369472, %v2918
        %v2920 = vmul.bf16 %v2848, %v2905
        %v2921 = vmul.bf16 %v2849, %v2907
        %v2922 = vmul.bf16 %v2850, %v2909
        %v2923 = vmul.bf16 %v2851, %v2911
        %v2924 = vmul.bf16 %v2852, %v2913
        %v2925 = vmul.bf16 %v2853, %v2915
        %v2926 = vmul.bf16 %v2854, %v2917
        %v2927 = vmul.bf16 %v2855, %v2919
        %v2928 = vld [vmem:[%s816] sm:$0xf]
        %v2929 = vld [vmem:[%s816 + $0x4] sm:$0xf]
        %v2930 = vld [vmem:[%s816 + $0x8] sm:$0xf]
        %v2931 = vld [vmem:[%s816 + $0xc] sm:$0xf]
        %v2932 = vld [vmem:[%s816 + $0x10] sm:$0xf]
        %v2933 = vld [vmem:[%s816 + $0x14] sm:$0xf]
        %v2934 = vld [vmem:[%s816 + $0x18] sm:$0xf]
        %v2935 = vld [vmem:[%s816 + $0x1c] sm:$0xf]
        %v2936 = vld [vmem:[%s816 + $0x20] sm:$0xf]
        %v2937 = vld [vmem:[%s816 + $0x24] sm:$0xf]
        %v2938 = vld [vmem:[%s816 + $0x28] sm:$0xf]
        %v2939 = vld [vmem:[%s816 + $0x2c] sm:$0xf]
        %v2940 = vld [vmem:[%s816 + $0x30] sm:$0xf]
        %v2941 = vld [vmem:[%s816 + $0x34] sm:$0xf]
        %v2942 = vld [vmem:[%s816 + $0x38] sm:$0xf]
        %v2943 = vld [vmem:[%s816 + $0x3c] sm:$0xf]
        %v2944 = vld [vmem:[%s816 + $0x40] sm:$0xf]
        %v2945 = vld [vmem:[%s816 + $0x44] sm:$0xf]
        %v2946 = vld [vmem:[%s816 + $0x48] sm:$0xf]
        %v2947 = vld [vmem:[%s816 + $0x4c] sm:$0xf]
        %v2948 = vld [vmem:[%s816 + $0x50] sm:$0xf]
        %v2949 = vld [vmem:[%s816 + $0x54] sm:$0xf]
        %v2950 = vld [vmem:[%s816 + $0x58] sm:$0xf]
        %v2951 = vld [vmem:[%s816 + $0x5c] sm:$0xf]
        %v2952 = vld [vmem:[%s816 + $0x60] sm:$0xf]
        %v2953 = vld [vmem:[%s816 + $0x64] sm:$0xf]
        %v2954 = vld [vmem:[%s816 + $0x68] sm:$0xf]
        %v2955 = vld [vmem:[%s816 + $0x6c] sm:$0xf]
        %v2956 = vld [vmem:[%s816 + $0x70] sm:$0xf]
        %v2957 = vld [vmem:[%s816 + $0x74] sm:$0xf]
        %v2958 = vld [vmem:[%s816 + $0x78] sm:$0xf]
        %v2959 = vld [vmem:[%s816 + $0x7c] sm:$0xf]
        %v2960 = vld [vmem:[%s816 + $0x80] sm:$0xf]
        %v2961 = vld [vmem:[%s816 + $0x84] sm:$0xf]
        %v2962 = vld [vmem:[%s816 + $0x88] sm:$0xf]
        %v2963 = vld [vmem:[%s816 + $0x8c] sm:$0xf]
        %v2964 = vld [vmem:[%s816 + $0x90] sm:$0xf]
        %v2965 = vld [vmem:[%s816 + $0x94] sm:$0xf]
        %v2966 = vld [vmem:[%s816 + $0x98] sm:$0xf]
        %v2967 = vld [vmem:[%s816 + $0x9c] sm:$0xf]
        %v2968 = vld [vmem:[%s816 + $0xa0] sm:$0xf]
        %v2969 = vld [vmem:[%s816 + $0xa4] sm:$0xf]
        %v2970 = vld [vmem:[%s816 + $0xa8] sm:$0xf]
        %v2971 = vld [vmem:[%s816 + $0xac] sm:$0xf]
        %v2972 = vld [vmem:[%s816 + $0xb0] sm:$0xf]
        %v2973 = vld [vmem:[%s816 + $0xb4] sm:$0xf]
        %v2974 = vld [vmem:[%s816 + $0xb8] sm:$0xf]
        %v2975 = vld [vmem:[%s816 + $0xbc] sm:$0xf]
        %v2976 = vld [vmem:[%s816 + $0xc0] sm:$0xf]
        %v2977 = vld [vmem:[%s816 + $0xc4] sm:$0xf]
        %v2978 = vld [vmem:[%s816 + $0xc8] sm:$0xf]
        %v2979 = vld [vmem:[%s816 + $0xcc] sm:$0xf]
        %v2980 = vld [vmem:[%s816 + $0xd0] sm:$0xf]
        %v2981 = vld [vmem:[%s816 + $0xd4] sm:$0xf]
        %v2982 = vld [vmem:[%s816 + $0xd8] sm:$0xf]
        %v2983 = vld [vmem:[%s816 + $0xdc] sm:$0xf]
        %v2984 = vld [vmem:[%s816 + $0xe0] sm:$0xf]
        %v2985 = vld [vmem:[%s816 + $0xe4] sm:$0xf]
        %v2986 = vld [vmem:[%s816 + $0xe8] sm:$0xf]
        %v2987 = vld [vmem:[%s816 + $0xec] sm:$0xf]
        %v2988 = vld [vmem:[%s816 + $0xf0] sm:$0xf]
        %v2989 = vld [vmem:[%s816 + $0xf4] sm:$0xf]
        %v2990 = vld [vmem:[%s816 + $0xf8] sm:$0xf]
        %v2991 = vld [vmem:[%s816 + $0xfc] sm:$0xf]
        %v2992 = vld [vmem:[%s824] sm:$0x1]
        %v2994 = vlaneseq
        %v2995 = vshrl.u32 %v2994, 7
        %v2996 = vsub.s32 0, %v2995
        %v2997 = vrot.slane %v2992, %v2996
        %v3063 = vunpack.c.l.b16 %v2928
        %v3064 = vunpack.c.l.b16 %v2929
        %v3065 = vunpack.c.l.b16 %v2930
        %v3066 = vunpack.c.l.b16 %v2931
        %v3067 = vunpack.c.l.b16 %v2932
        %v3068 = vunpack.c.l.b16 %v2933
        %v3069 = vunpack.c.l.b16 %v2934
        %v3070 = vunpack.c.l.b16 %v2935
        %v3071 = vunpack.c.l.b16 %v2936
        %v3072 = vunpack.c.l.b16 %v2937
        %v3073 = vunpack.c.l.b16 %v2938
        %v3074 = vunpack.c.l.b16 %v2939
        %v3075 = vunpack.c.l.b16 %v2940
        %v3076 = vunpack.c.l.b16 %v2941
        %v3077 = vunpack.c.l.b16 %v2942
        %v3078 = vunpack.c.l.b16 %v2943
        %v3079 = vunpack.c.l.b16 %v2944
        %v3080 = vunpack.c.l.b16 %v2945
        %v3081 = vunpack.c.l.b16 %v2946
        %v3082 = vunpack.c.l.b16 %v2947
        %v3083 = vunpack.c.l.b16 %v2948
        %v3084 = vunpack.c.l.b16 %v2949
        %v3085 = vunpack.c.l.b16 %v2950
        %v3086 = vunpack.c.l.b16 %v2951
        %v3087 = vunpack.c.l.b16 %v2952
        %v3088 = vunpack.c.l.b16 %v2953
        %v3089 = vunpack.c.l.b16 %v2954
        %v3090 = vunpack.c.l.b16 %v2955
        %v3091 = vunpack.c.l.b16 %v2956
        %v3092 = vunpack.c.l.b16 %v2957
        %v3093 = vunpack.c.l.b16 %v2958
        %v3094 = vunpack.c.l.b16 %v2959
        %v3095 = vunpack.c.l.b16 %v2960
        %v3096 = vunpack.c.l.b16 %v2961
        %v3097 = vunpack.c.l.b16 %v2962
        %v3098 = vunpack.c.l.b16 %v2963
        %v3099 = vunpack.c.l.b16 %v2964
        %v3100 = vunpack.c.l.b16 %v2965
        %v3101 = vunpack.c.l.b16 %v2966
        %v3102 = vunpack.c.l.b16 %v2967
        %v3103 = vunpack.c.l.b16 %v2968
        %v3104 = vunpack.c.l.b16 %v2969
        %v3105 = vunpack.c.l.b16 %v2970
        %v3106 = vunpack.c.l.b16 %v2971
        %v3107 = vunpack.c.l.b16 %v2972
        %v3108 = vunpack.c.l.b16 %v2973
        %v3109 = vunpack.c.l.b16 %v2974
        %v3110 = vunpack.c.l.b16 %v2975
        %v3111 = vunpack.c.l.b16 %v2976
        %v3112 = vunpack.c.l.b16 %v2977
        %v3113 = vunpack.c.l.b16 %v2978
        %v3114 = vunpack.c.l.b16 %v2979
        %v3115 = vunpack.c.l.b16 %v2980
        %v3116 = vunpack.c.l.b16 %v2981
        %v3117 = vunpack.c.l.b16 %v2982
        %v3118 = vunpack.c.l.b16 %v2983
        %v3119 = vunpack.c.l.b16 %v2984
        %v3120 = vunpack.c.l.b16 %v2985
        %v3121 = vunpack.c.l.b16 %v2986
        %v3122 = vunpack.c.l.b16 %v2987
        %v3123 = vunpack.c.l.b16 %v2988
        %v3124 = vunpack.c.l.b16 %v2989
        %v3125 = vunpack.c.l.b16 %v2990
        %v3126 = vunpack.c.l.b16 %v2991
        %v3127 = vpack.c.b16 %v3064, %v3063
        %v3128 = vpack.c.b16 %v3066, %v3065
        %v3129 = vpack.c.b16 %v3068, %v3067
        %v3130 = vpack.c.b16 %v3070, %v3069
        %v3131 = vpack.c.b16 %v3072, %v3071
        %v3132 = vpack.c.b16 %v3074, %v3073
        %v3133 = vpack.c.b16 %v3076, %v3075
        %v3134 = vpack.c.b16 %v3078, %v3077
        %v3135 = vpack.c.b16 %v3080, %v3079
        %v3136 = vpack.c.b16 %v3082, %v3081
        %v3137 = vpack.c.b16 %v3084, %v3083
        %v3138 = vpack.c.b16 %v3086, %v3085
        %v3139 = vpack.c.b16 %v3088, %v3087
        %v3140 = vpack.c.b16 %v3090, %v3089
        %v3141 = vpack.c.b16 %v3092, %v3091
        %v3142 = vpack.c.b16 %v3094, %v3093
        %v3143 = vpack.c.b16 %v3096, %v3095
        %v3144 = vpack.c.b16 %v3098, %v3097
        %v3145 = vpack.c.b16 %v3100, %v3099
        %v3146 = vpack.c.b16 %v3102, %v3101
        %v3147 = vpack.c.b16 %v3104, %v3103
        %v3148 = vpack.c.b16 %v3106, %v3105
        %v3149 = vpack.c.b16 %v3108, %v3107
        %v3150 = vpack.c.b16 %v3110, %v3109
        %v3151 = vpack.c.b16 %v3112, %v3111
        %v3152 = vpack.c.b16 %v3114, %v3113
        %v3153 = vpack.c.b16 %v3116, %v3115
        %v3154 = vpack.c.b16 %v3118, %v3117
        %v3155 = vpack.c.b16 %v3120, %v3119
        %v3156 = vpack.c.b16 %v3122, %v3121
        %v3157 = vpack.c.b16 %v3124, %v3123
        %v3158 = vpack.c.b16 %v3126, %v3125
        %3191 = vmatprep.subr.bf16.mxu0 0
        %3192 = vmatpush1.bf16.msra.mxu0 %v3127
        %3193 = vmatprep.subr.bf16.mxu0 0
        %3194 = vmatpush1.bf16.msra.mxu0 %v3128
        %3195 = vmatprep.subr.bf16.mxu0 0
        %3196 = vmatpush1.bf16.msra.mxu0 %v3129
        %3197 = vmatprep.subr.bf16.mxu0 0
        %3198 = vmatpush1.bf16.msra.mxu0 %v3130
        %3199 = vmatprep.subr.bf16.mxu0 0
        %3200 = vmatpush1.bf16.msra.mxu0 %v3131
        %3201 = vmatprep.subr.bf16.mxu0 0
        %3202 = vmatpush1.bf16.msra.mxu0 %v3132
        %3203 = vmatprep.subr.bf16.mxu0 0
        %3204 = vmatpush1.bf16.msra.mxu0 %v3133
        %3205 = vmatprep.subr.bf16.mxu0 0
        %3206 = vmatpush1.bf16.msra.mxu0 %v3134
        %3207 = vmatprep.subr.bf16.mxu0 0
        %3208 = vmatpush1.bf16.msra.mxu0 %v3135
        %3209 = vmatprep.subr.bf16.mxu0 0
        %3210 = vmatpush1.bf16.msra.mxu0 %v3136
        %3211 = vmatprep.subr.bf16.mxu0 0
        %3212 = vmatpush1.bf16.msra.mxu0 %v3137
        %3213 = vmatprep.subr.bf16.mxu0 0
        %3214 = vmatpush1.bf16.msra.mxu0 %v3138
        %3215 = vmatprep.subr.bf16.mxu0 0
        %3216 = vmatpush1.bf16.msra.mxu0 %v3139
        %3217 = vmatprep.subr.bf16.mxu0 0
        %3218 = vmatpush1.bf16.msra.mxu0 %v3140
        %3219 = vmatprep.subr.bf16.mxu0 0
        %3220 = vmatpush1.bf16.msra.mxu0 %v3141
        %3221 = vmatprep.subr.bf16.mxu0 0
        %3222 = vmatpush1.bf16.msra.mxu0 %v3142
        %3223 = vmatprep.mubr.bf16.mxu0 %v2921
        %3224 = vmatmul.mubr.bf16.gmra.mrb[0].mxu0 %v2920
        %v3225 = vpop.f32.mrb[0].mxu0
        %v3226 = vadd.f32 %v2997, %v3225
        %v3227 = vpop.f32.mrb[0].mxu0
        %v3228 = vpop.f32.mrb[0].mxu0
        %v3229 = vadd.f32 %v2997, %v3228
        %v3230 = vpop.f32.mrb[0].mxu0
        %3231 = vmatprep.mubr.bf16.mxu0 %v2925
        %3232 = vmatmul.mubr.bf16.gmra.mrb[0].mxu0 %v2924
        %v3233 = vpop.f32.mrb[0].mxu0
        %v3234 = vadd.f32 %v2997, %v3233
        %v3235 = vpop.f32.mrb[0].mxu0
        %v3236 = vpop.f32.mrb[0].mxu0
        %v3237 = vadd.f32 %v2997, %v3236
        %v3238 = vpop.f32.mrb[0].mxu0
        %3239 = vdwg.mxu0
        %3240 = vmatprep.subr.bf16.mxu0 0
        %3241 = vmatpush1.bf16.msra.mxu0 %v3143
        %3242 = vmatprep.subr.bf16.mxu0 0
        %3243 = vmatpush1.bf16.msra.mxu0 %v3144
        %3244 = vmatprep.subr.bf16.mxu0 0
        %3245 = vmatpush1.bf16.msra.mxu0 %v3145
        %3246 = vmatprep.subr.bf16.mxu0 0
        %3247 = vmatpush1.bf16.msra.mxu0 %v3146
        %3248 = vmatprep.subr.bf16.mxu0 0
        %3249 = vmatpush1.bf16.msra.mxu0 %v3147
        %3250 = vmatprep.subr.bf16.mxu0 0
        %3251 = vmatpush1.bf16.msra.mxu0 %v3148
        %3252 = vmatprep.subr.bf16.mxu0 0
        %3253 = vmatpush1.bf16.msra.mxu0 %v3149
        %3254 = vmatprep.subr.bf16.mxu0 0
        %3255 = vmatpush1.bf16.msra.mxu0 %v3150
        %3256 = vmatprep.subr.bf16.mxu0 0
        %3257 = vmatpush1.bf16.msra.mxu0 %v3151
        %3258 = vmatprep.subr.bf16.mxu0 0
        %3259 = vmatpush1.bf16.msra.mxu0 %v3152
        %3260 = vmatprep.subr.bf16.mxu0 0
        %3261 = vmatpush1.bf16.msra.mxu0 %v3153
        %3262 = vmatprep.subr.bf16.mxu0 0
        %3263 = vmatpush1.bf16.msra.mxu0 %v3154
        %3264 = vmatprep.subr.bf16.mxu0 0
        %3265 = vmatpush1.bf16.msra.mxu0 %v3155
        %3266 = vmatprep.subr.bf16.mxu0 0
        %3267 = vmatpush1.bf16.msra.mxu0 %v3156
        %3268 = vmatprep.subr.bf16.mxu0 0
        %3269 = vmatpush1.bf16.msra.mxu0 %v3157
        %3270 = vmatprep.subr.bf16.mxu0 0
        %3271 = vmatpush1.bf16.msra.mxu0 %v3158
        %3272 = vmatprep.mubr.bf16.mxu0 %v2923
        %3273 = vmatmul.mubr.bf16.gmra.mrb[0].mxu0 %v2922
        %v3274 = vpop.f32.mrb[0].mxu0
        %v3275 = vadd.f32 %v3226, %v3274
        %v3276 = vpop.f32.mrb[0].mxu0
        %v3277 = vpop.f32.mrb[0].mxu0
        %v3278 = vadd.f32 %v3229, %v3277
        %v3279 = vpop.f32.mrb[0].mxu0
        %3280 = vmatprep.mubr.bf16.mxu0 %v2927
        %3281 = vmatmul.mubr.bf16.gmra.mrb[0].mxu0 %v2926
        %v3282 = vpop.f32.mrb[0].mxu0
        %v3283 = vadd.f32 %v3234, %v3282
        %v3284 = vpop.f32.mrb[0].mxu0
        %v3285 = vpop.f32.mrb[0].mxu0
        %v3286 = vadd.f32 %v3237, %v3285
        %v3287 = vpop.f32.mrb[0].mxu0
        %3288 = vdwg.mxu0
        %v3289 = vadd.f32 %v2456, %v3275
        %v3290 = vadd.f32 %v2457, %v3278
        %v3291 = vadd.f32 %v2458, %v3283
        %v3292 = vadd.f32 %v2459, %v3286
        %3293 = vst [vmem:[#allocation2] sm:$0xff] %v3289
        %3294 = vst [vmem:[#allocation2 + $0x8] sm:$0xff] %v3290
        %3295 = vst [vmem:[#allocation2 + $0x10] sm:$0xff] %v3291
        %3296 = vst [vmem:[#allocation2 + $0x18] sm:$0xff] %v3292
        %p3297 = scmp.eq.s32.totalorder %s47, 1
        // Predicated region
        $region145: #{clip_forward.1} parent=79 // pred_check
          %p3298 = pneg %p3297
        $region146: #{clip_forward.1} parent=79 // pred_check_branch
          %3300 = sbr.rel (%p3298) target = $region148
        $region147: #{clip_forward.1} parent=79 // pred_region
          %v3301 = vld [vmem:[#allocation25] sm:$0x1]
          %v3302 = vld [vmem:[#allocation27] sm:$0x1]
          %3303 = vadd.xlane.f32.xlu0 %v3289
          %v3304 = vpop.xlane.xlu0 %3303
          %3305 = vadd.xlane.f32.xlu0 %v3290
          %v3306 = vpop.xlane.xlu0 %3305
          %3307 = vadd.xlane.f32.xlu0 %v3291
          %v3308 = vpop.xlane.xlu0 %3307
          %3309 = vadd.xlane.f32.xlu0 %v3292
          %v3310 = vpop.xlane.xlu0 %3309
          %v3311 = vmul.f32 %v3304, %v966
          %v3312 = vmul.f32 %v3306, %v966
          %v3313 = vmul.f32 %v3308, %v966
          %v3314 = vmul.f32 %v3310, %v966
          %v3315 = vsub.f32 %v3289, %v3311
          %v3316 = vsub.f32 %v3290, %v3312
          %v3317 = vsub.f32 %v3291, %v3313
          %v3318 = vsub.f32 %v3292, %v3314
          %v3319 = vmul.f32 %v3315, %v3315
          %v3320 = vmul.f32 %v3316, %v3316
          %v3321 = vmul.f32 %v3317, %v3317
          %v3322 = vmul.f32 %v3318, %v3318
          %3323 = vadd.xlane.f32.xlu0 %v3319
          %v3324 = vpop.xlane.xlu0 %3323
          %3325 = vadd.xlane.f32.xlu0 %v3320
          %v3326 = vpop.xlane.xlu0 %3325
          %3327 = vadd.xlane.f32.xlu0 %v3321
          %v3328 = vpop.xlane.xlu0 %3327
          %3329 = vadd.xlane.f32.xlu0 %v3322
          %v3330 = vpop.xlane.xlu0 %3329
          %v3331 = vmul.f32 %v3324, %v966
          %v3332 = vmul.f32 %v3326, %v966
          %v3333 = vmul.f32 %v3328, %v966
          %v3334 = vmul.f32 %v3330, %v966
          %v3335 = vadd.f32 %v3331, 1e-05
          %v3336 = vadd.f32 %v3332, 1e-05
          %v3337 = vadd.f32 %v3333, 1e-05
          %v3338 = vadd.f32 %v3334, 1e-05
          %v3339 = vrsqrt.pop %v3335
          %v3340 = vrsqrt.pop %v3336
          %v3341 = vrsqrt.pop %v3337
          %v3342 = vrsqrt.pop %v3338
          %v3343 = vmul.f32 %v3315, %v3339
          %v3344 = vmul.f32 %v3316, %v3340
          %v3345 = vmul.f32 %v3317, %v3341
          %v3346 = vmul.f32 %v3318, %v3342
          %v3348 = vlaneseq
          %v3349 = vshrl.u32 %v3348, 7
          %v3350 = vsub.s32 0, %v3349
          %v3351 = vrot.slane %v3301, %v3350
          %v3353 = vmul.f32 %v3343, %v3351
          %v3354 = vmul.f32 %v3344, %v3351
          %v3355 = vmul.f32 %v3345, %v3351
          %v3356 = vmul.f32 %v3346, %v3351
          %v3358 = vlaneseq
          %v3359 = vshrl.u32 %v3358, 7
          %v3360 = vsub.s32 0, %v3359
          %v3361 = vrot.slane %v3302, %v3360
          %v3363 = vadd.f32 %v3353, %v3361
          %v3364 = vadd.f32 %v3354, %v3361
          %v3365 = vadd.f32 %v3355, %v3361
          %v3366 = vadd.f32 %v3356, %v3361
          %3367 = vst [vmem:[#allocation28] sm:$0xff] %v3363
          %3368 = vst [vmem:[#allocation28 + $0x8] sm:$0xff] %v3364
          %3369 = vst [vmem:[#allocation28 + $0x10] sm:$0xff] %v3365
          %3370 = vst [vmem:[#allocation28 + $0x18] sm:$0xff] %v3366
        $region148: #{clip_forward.1} parent=79 // pred_fallthru
          _
        // Predicated region
        $region149: #{clip_forward.1} parent=79 // pred_check
          %p3371 = pneg %p435
        $region150: #{clip_forward.1} parent=79 // pred_check_branch
          %3373 = sbr.rel (%p3371) target = $region152
        $region151: #{clip_forward.1} parent=79 // pred_region
          %s3375 = ssub.s32 512, 512
          %3376 = vsyncadd [#allocation6], %s3375
          %s3377 = sshll.u32 [#allocation28], 4
          %s3378 = int_to_ptr.vmem [resolvable:$true] %s3377
          %3383 = dma.vmem_to_hbm [thread:$0]  %s3378, 512, %s15, [#allocation6], 128, 128, 8
        $region152: #{clip_forward.1} parent=79 // pred_fallthru
          _
        // Predicated region
        $region153: #{clip_forward.1} parent=79 // pred_check
          %p3384 = pneg %p435
        $region154: #{clip_forward.1} parent=79 // pred_check_branch
          %3386 = sbr.rel (%p3384) target = $region156
        $region155: #{clip_forward.1} parent=79 // pred_region
          %3387 = dma.done [#allocation6], 512
        $region156: #{clip_forward.1} parent=79 // pred_fallthru
          _
      $region80: #{clip_forward.1} parent=5 // pred_fallthru
        _
      %p3388 = scmp.le.s32.totalorder 2, %s42
      // Predicated region
      $region157: #{clip_forward.1} parent=5 // pred_check
        %p3389 = pneg %p3388
      $region158: #{clip_forward.1} parent=5 // pred_check_branch
        %3391 = sbr.rel (%p3389) target = $region160
      $region159: #{clip_forward.1} parent=5 // pred_region
        %s3392 = ssub.s32 %s42, 2
      $region160: #{clip_forward.1} parent=5 // pred_fallthru
        _
    $region6: #{clip_forward.1} parent=1 // loop_footer
      %s46 = sadd.s32 1, %s42
    $region7: #{clip_forward.1} parent=1 // loop_footer_branch
      %41 = sbr.rel target = $region3
    $region8: #{clip_forward.1} parent=1 // loop_exit
      _
    %3393 = vsyncpa [#allocation5], 1
    %s3394 = scalar_lea.sflag [#allocation5], 1
    %3395 = vsyncpa %s3394, 1
    %3396 = vsyncpa [#allocation8], 1
    %s3397 = scalar_lea.sflag [#allocation8], 1
    %3398 = vsyncpa %s3397, 1
    %3399 = vsyncpa [#allocation11], 1
    %s3400 = scalar_lea.sflag [#allocation11], 1
    %3401 = vsyncpa %s3400, 1
    %3402 = vsyncpa [#allocation14], 1
    %s3403 = scalar_lea.sflag [#allocation14], 1
    %3404 = vsyncpa %s3403, 1
    %3405 = vsyncpa [#allocation17], 1
    %s3406 = scalar_lea.sflag [#allocation17], 1
    %3407 = vsyncpa %s3406, 1
    %3408 = vsyncpa [#allocation20], 1
    %s3409 = scalar_lea.sflag [#allocation20], 1
    %3410 = vsyncpa %s3409, 1
    %3411 = vsyncpa [#allocation23], 1
    %s3412 = scalar_lea.sflag [#allocation23], 1
    %3413 = vsyncpa %s3412, 1
    %3414 = vsyncpa [#allocation26], 1
    %3415 = vsyncpa [#allocation6], 1
    %s3416 = scalar_lea.sflag [#allocation6], 1
    %3417 = vsyncpa %s3416, 1

</llo_original>
